<compile_context>
chip_gen: v5e
topology: v5e:2x2
jax: 0.10.0
libtpu: 0.0.40
codegen_flags: <defaults>
</compile_context>

<pallas_src>
import functools

import jax
import jax.numpy as jnp
from jax.experimental import pallas as pl
from jax.experimental.pallas import tpu as pltpu


def _round_up(x, m):
    return -(-x // m) * m


def _baseline_dnn_kernel(seq_len, batch_tile,
                         # scalar prefetch (SMEM)
                         tok_ref,                       # (B_pad * S,) int32
                         # inputs (VMEM)
                         inv_len_ref,                   # (TB, 1) f32
                         table_ref,                     # (V_pad, E_pad) f32  (VMEM resident)
                         w1m_ref, w1x_ref, b1_ref,      # (E_pad,H_pad) x2, (1,H_pad)
                         w2_ref, b2_ref,                # (H_pad,C_pad), (1,C_pad)
                         # output
                         out_ref,                       # (TB, C_pad) f32
                         # scratch
                         sum_acc, max_acc):             # (TB, E_pad) f32 each
    S = seq_len
    TB = batch_tile
    E_pad = table_ref.shape[1]

    bt = pl.program_id(0)
    base = bt * (TB * S)               # flat token offset of this batch tile

    # Streaming gather + reduction: one pass over the sequence per sample.
    # TB and S are small static ints -> fully unrolled, pure VMEM row loads
    # (no DMAs, no semaphores, nothing latency-exposed).
    for j in range(TB):
        sum_v = jnp.zeros((1, E_pad), jnp.float32)
        max_v = jnp.full((1, E_pad), -jnp.inf, jnp.float32)
        for s in range(S):
            tok = tok_ref[base + j * S + s]             # scalar read from SMEM
            row = table_ref[pl.ds(tok, 1), :]           # (1, E_pad) dynamic row read
            sum_v = sum_v + row
            max_v = jnp.maximum(max_v, row)
        sum_acc[pl.ds(j, 1), :] = sum_v
        max_acc[pl.ds(j, 1), :] = max_v

    # mean = sum * (1/len); reciprocal computed once per row in the wrapper.
    rep_mean = sum_acc[...] * inv_len_ref[...]          # (TB,E_pad) * (TB,1)

    # Split-W1 form of concat([mean, max], 1) @ W1  (no lane concat needed).
    h = (jnp.dot(rep_mean, w1m_ref[...], preferred_element_type=jnp.float32)
         + jnp.dot(max_acc[...], w1x_ref[...], preferred_element_type=jnp.float32)
         + b1_ref[...])
    h = jnp.maximum(h, 0.0)                             # ReLU (lane-dense, H padded)

    out_ref[...] = (jnp.dot(h, w2_ref[...], preferred_element_type=jnp.float32)
                    + b2_ref[...])                      # (TB, C_pad), lane-dense store


def baseline_dnn_forward(x_tokens, lengths, emb_table, w1, b1, w2, b2,
                         *, batch_tile=128):
    """x_tokens: (B, S) int32, lengths: (B,), emb_table: (V, E) f32."""
    B, S = x_tokens.shape
    V, E = emb_table.shape
    H = w1.shape[1]
    C = w2.shape[1]

    # Lane/sublane-friendly padded sizes.
    E_pad = _round_up(E, 128)
    H_pad = _round_up(H, 128)
    C_pad = _round_up(C, 128)
    V_pad = _round_up(V, 8)

    # Batch tile: as large as possible (fills MXU M rows, amortizes grid-step
    # overhead) but keep >= 2 grid steps so v7x megacore can split the
    # "parallel" batch axis across its two TensorCores.
    B8 = _round_up(B, 8)
    TB = min(_round_up(batch_tile, 8), B8)
    if B8 // TB < 2 and TB > 8:
        TB = max(8, _round_up(B8 // 2, 8))
    B_pad = _round_up(B, TB)

    tok = jnp.clip(x_tokens.astype(jnp.int32), 0, V - 1)   # guard OOB row reads
    inv_len = (1.0 / lengths.astype(jnp.float32)).reshape(B, 1)
    if B_pad != B:
        tok = jnp.pad(tok, ((0, B_pad - B), (0, 0)))
        inv_len = jnp.pad(inv_len, ((0, B_pad - B), (0, 0)), constant_values=1.0)
    # Scalar-prefetched (SMEM) flat token ids: next_pow2(4*B_pad*S) bytes —
    # fine at these shapes.
    # TODO(synk): for very large B*S, stream token ids per batch tile instead
    # of scalar-prefetching the whole array.
    tok_flat = tok.reshape(-1)

    # Zero-padded, f32 parameters.  W1 split into mean / max halves.
    table_p = jnp.zeros((V_pad, E_pad), jnp.float32).at[:V, :E].set(
        emb_table.astype(jnp.float32))
    w1m = jnp.zeros((E_pad, H_pad), jnp.float32).at[:E, :H].set(
        w1[:E, :].astype(jnp.float32))
    w1x = jnp.zeros((E_pad, H_pad), jnp.float32).at[:E, :H].set(
        w1[E:, :].astype(jnp.float32))
    b1_p = jnp.zeros((1, H_pad), jnp.float32).at[:, :H].set(
        b1.reshape(1, H).astype(jnp.float32))
    w2_p = jnp.zeros((H_pad, C_pad), jnp.float32).at[:H, :C].set(
        w2.astype(jnp.float32))
    b2_p = jnp.zeros((1, C_pad), jnp.float32).at[:, :C].set(
        b2.reshape(1, C).astype(jnp.float32))

    kernel = functools.partial(_baseline_dnn_kernel, S, TB)

    out = pl.pallas_call(
        kernel,
        out_shape=jax.ShapeDtypeStruct((B_pad, C_pad), jnp.float32),
        grid_spec=pltpu.PrefetchScalarGridSpec(
            num_scalar_prefetch=1,
            grid=(B_pad // TB,),
            in_specs=[
                # (TB,1) per-row reciprocal lengths (pads to one (8,128) tile)
                pl.BlockSpec((TB, 1), lambda bt, tok: (bt, 0)),
                # embedding table: constant index map -> VMEM resident, loaded once
                pl.BlockSpec((V_pad, E_pad), lambda bt, tok: (0, 0)),
                # weights/biases: constant index maps -> VMEM resident
                pl.BlockSpec((E_pad, H_pad), lambda bt, tok: (0, 0)),
                pl.BlockSpec((E_pad, H_pad), lambda bt, tok: (0, 0)),
                pl.BlockSpec((1, H_pad), lambda bt, tok: (0, 0)),
                pl.BlockSpec((H_pad, C_pad), lambda bt, tok: (0, 0)),
                pl.BlockSpec((1, C_pad), lambda bt, tok: (0, 0)),
            ],
            out_specs=pl.BlockSpec((TB, C_pad), lambda bt, tok: (bt, 0)),
            scratch_shapes=[
                pltpu.VMEM((TB, E_pad), jnp.float32),   # per-tile running sum
                pltpu.VMEM((TB, E_pad), jnp.float32),   # per-tile running max
            ],
        ),
        compiler_params=pltpu.CompilerParams(
            dimension_semantics=("parallel",),          # megacore-shard the batch
        ),
    )(tok_flat, inv_len, table_p, w1m, w1x, b1_p, w2_p, b2_p)

    return out[:B, :C]


def reference_forward(x_tokens, lengths, emb_table, w1, b1, w2, b2):
    emb = jnp.take(emb_table, x_tokens, axis=0).astype(jnp.float32)
    mean = jnp.sum(emb, axis=1) / lengths.astype(jnp.float32)[:, None]
    mx = jnp.max(emb, axis=1)
    rep = jnp.concatenate([mean, mx], axis=1)
    h = jnp.maximum(rep @ w1 + b1, 0.0)
    return h @ w2 + b2


if __name__ == "__main__":
    # Small, deterministic shapes consistent with the module.
    B, S = 16, 16        # batch, (padded) sequence length
    V, E = 100, 128      # vocab size, pretrained-embedding dim
    H = 32               # hidden_size (fixed to 32 in the module)
    C = 4                # output_size (number of classes)

    key = jax.random.PRNGKey(0)
    k_emb, k_x, k_len, k_w1, k_b1, k_w2, k_b2 = jax.random.split(key, 7)

    emb_table = jax.random.normal(k_emb, (V, E), dtype=jnp.float32)
    x_tokens = jax.random.randint(k_x, (B, S), 0, V, dtype=jnp.int32)
    lengths = jax.random.randint(k_len, (B,), 1, S + 1, dtype=jnp.int32)

    # Deterministic synthetic parameters (not a checkpoint load).
    w1 = jax.random.normal(k_w1, (2 * E, H), dtype=jnp.float32) * 0.1
    b1 = jax.random.normal(k_b1, (H,), dtype=jnp.float32) * 0.1
    w2 = jax.random.normal(k_w2, (H, C), dtype=jnp.float32) * 0.1
    b2 = jax.random.normal(k_b2, (C,), dtype=jnp.float32) * 0.1

    logits = baseline_dnn_forward(x_tokens, lengths, emb_table, w1, b1, w2, b2)
    logits = jax.block_until_ready(logits)

    ref = reference_forward(x_tokens, lengths, emb_table, w1, b1, w2, b2)
    assert logits.shape == (B, C)
    assert jnp.allclose(logits, ref, atol=1e-4, rtol=1e-4), (logits, ref)

    print("KERNEL_OK")
</pallas_src>

<mosaic_0001>
module attributes {stable_mosaic.version = 11 : i64} {
  func.func @_baseline_dnn_kernel(%arg0: i32, %arg1: memref<256xi32, #tpu.memory_space<smem>>, %arg2: memref<8x1xf32, #tpu.memory_space<vmem>>, %arg3: memref<104x128xf32, #tpu.memory_space<vmem>>, %arg4: memref<128x128xf32, #tpu.memory_space<vmem>>, %arg5: memref<128x128xf32, #tpu.memory_space<vmem>>, %arg6: memref<1x128xf32, #tpu.memory_space<vmem>>, %arg7: memref<128x128xf32, #tpu.memory_space<vmem>>, %arg8: memref<1x128xf32, #tpu.memory_space<vmem>>, %arg9: memref<8x128xf32, #tpu.memory_space<vmem>>, %arg10: memref<8x128xf32, #tpu.memory_space<vmem>>, %arg11: memref<8x128xf32, #tpu.memory_space<vmem>>) attributes {dimension_semantics = [#tpu.dimension_semantics<parallel>], iteration_bounds = array<i64: 2>, scalar_prefetch = 1 : i64, scratch_operands = 2 : i64, tpu.core_type = #tpu.core_type<tc>, window_params = [{transform_indices = @transform_0, window_bounds = array<i64: 8, 1>}, {pipeline_mode = #tpu.pipeline_mode<synchronous>, transform_indices = @transform_1, window_bounds = array<i64: 104, 128>}, {pipeline_mode = #tpu.pipeline_mode<synchronous>, transform_indices = @transform_2, window_bounds = array<i64: 128, 128>}, {pipeline_mode = #tpu.pipeline_mode<synchronous>, transform_indices = @transform_3, window_bounds = array<i64: 128, 128>}, {pipeline_mode = #tpu.pipeline_mode<synchronous>, transform_indices = @transform_4, window_bounds = array<i64: 1, 128>}, {pipeline_mode = #tpu.pipeline_mode<synchronous>, transform_indices = @transform_5, window_bounds = array<i64: 128, 128>}, {pipeline_mode = #tpu.pipeline_mode<synchronous>, transform_indices = @transform_6, window_bounds = array<i64: 1, 128>}, {transform_indices = @transform_7, window_bounds = array<i64: 8, 128>}]} {
    %c128_i32 = arith.constant 128 : i32
    %0 = arith.muli %arg0, %c128_i32 : i32
    %cst = arith.constant 0.000000e+00 : f32
    %1 = vector.broadcast %cst : f32 to vector<1x128xf32>
    %cst_0 = arith.constant 0xFF800000 : f32
    %2 = vector.broadcast %cst_0 : f32 to vector<1x128xf32>
    %c0_i32 = arith.constant 0 : i32
    %3 = arith.addi %0, %c0_i32 : i32
    %c0_i32_1 = arith.constant 0 : i32
    %4 = arith.addi %3, %c0_i32_1 : i32
    %5 = arith.index_cast %4 : i32 to index
    %6 = memref.load %arg1[%5] : memref<256xi32, #tpu.memory_space<smem>>
    %7 = arith.index_cast %6 : i32 to index
    %c0 = arith.constant 0 : index
    %8 = vector.load %arg3[%7, %c0] : memref<104x128xf32, #tpu.memory_space<vmem>>, vector<1x128xf32>
    %9 = arith.addf %1, %8 : vector<1x128xf32>
    %10 = arith.maximumf %2, %8 : vector<1x128xf32>
    %c0_i32_2 = arith.constant 0 : i32
    %11 = arith.addi %0, %c0_i32_2 : i32
    %c1_i32 = arith.constant 1 : i32
    %12 = arith.addi %11, %c1_i32 : i32
    %13 = arith.index_cast %12 : i32 to index
    %14 = memref.load %arg1[%13] : memref<256xi32, #tpu.memory_space<smem>>
    %15 = arith.index_cast %14 : i32 to index
    %c0_3 = arith.constant 0 : index
    %16 = vector.load %arg3[%15, %c0_3] : memref<104x128xf32, #tpu.memory_space<vmem>>, vector<1x128xf32>
    %17 = arith.addf %9, %16 : vector<1x128xf32>
    %18 = arith.maximumf %10, %16 : vector<1x128xf32>
    %c0_i32_4 = arith.constant 0 : i32
    %19 = arith.addi %0, %c0_i32_4 : i32
    %c2_i32 = arith.constant 2 : i32
    %20 = arith.addi %19, %c2_i32 : i32
    %21 = arith.index_cast %20 : i32 to index
    %22 = memref.load %arg1[%21] : memref<256xi32, #tpu.memory_space<smem>>
    %23 = arith.index_cast %22 : i32 to index
    %c0_5 = arith.constant 0 : index
    %24 = vector.load %arg3[%23, %c0_5] : memref<104x128xf32, #tpu.memory_space<vmem>>, vector<1x128xf32>
    %25 = arith.addf %17, %24 : vector<1x128xf32>
    %26 = arith.maximumf %18, %24 : vector<1x128xf32>
    %c0_i32_6 = arith.constant 0 : i32
    %27 = arith.addi %0, %c0_i32_6 : i32
    %c3_i32 = arith.constant 3 : i32
    %28 = arith.addi %27, %c3_i32 : i32
    %29 = arith.index_cast %28 : i32 to index
    %30 = memref.load %arg1[%29] : memref<256xi32, #tpu.memory_space<smem>>
    %31 = arith.index_cast %30 : i32 to index
    %c0_7 = arith.constant 0 : index
    %32 = vector.load %arg3[%31, %c0_7] : memref<104x128xf32, #tpu.memory_space<vmem>>, vector<1x128xf32>
    %33 = arith.addf %25, %32 : vector<1x128xf32>
    %34 = arith.maximumf %26, %32 : vector<1x128xf32>
    %c0_i32_8 = arith.constant 0 : i32
    %35 = arith.addi %0, %c0_i32_8 : i32
    %c4_i32 = arith.constant 4 : i32
    %36 = arith.addi %35, %c4_i32 : i32
    %37 = arith.index_cast %36 : i32 to index
    %38 = memref.load %arg1[%37] : memref<256xi32, #tpu.memory_space<smem>>
    %39 = arith.index_cast %38 : i32 to index
    %c0_9 = arith.constant 0 : index
    %40 = vector.load %arg3[%39, %c0_9] : memref<104x128xf32, #tpu.memory_space<vmem>>, vector<1x128xf32>
    %41 = arith.addf %33, %40 : vector<1x128xf32>
    %42 = arith.maximumf %34, %40 : vector<1x128xf32>
    %c0_i32_10 = arith.constant 0 : i32
    %43 = arith.addi %0, %c0_i32_10 : i32
    %c5_i32 = arith.constant 5 : i32
    %44 = arith.addi %43, %c5_i32 : i32
    %45 = arith.index_cast %44 : i32 to index
    %46 = memref.load %arg1[%45] : memref<256xi32, #tpu.memory_space<smem>>
    %47 = arith.index_cast %46 : i32 to index
    %c0_11 = arith.constant 0 : index
    %48 = vector.load %arg3[%47, %c0_11] : memref<104x128xf32, #tpu.memory_space<vmem>>, vector<1x128xf32>
    %49 = arith.addf %41, %48 : vector<1x128xf32>
    %50 = arith.maximumf %42, %48 : vector<1x128xf32>
    %c0_i32_12 = arith.constant 0 : i32
    %51 = arith.addi %0, %c0_i32_12 : i32
    %c6_i32 = arith.constant 6 : i32
    %52 = arith.addi %51, %c6_i32 : i32
    %53 = arith.index_cast %52 : i32 to index
    %54 = memref.load %arg1[%53] : memref<256xi32, #tpu.memory_space<smem>>
    %55 = arith.index_cast %54 : i32 to index
    %c0_13 = arith.constant 0 : index
    %56 = vector.load %arg3[%55, %c0_13] : memref<104x128xf32, #tpu.memory_space<vmem>>, vector<1x128xf32>
    %57 = arith.addf %49, %56 : vector<1x128xf32>
    %58 = arith.maximumf %50, %56 : vector<1x128xf32>
    %c0_i32_14 = arith.constant 0 : i32
    %59 = arith.addi %0, %c0_i32_14 : i32
    %c7_i32 = arith.constant 7 : i32
    %60 = arith.addi %59, %c7_i32 : i32
    %61 = arith.index_cast %60 : i32 to index
    %62 = memref.load %arg1[%61] : memref<256xi32, #tpu.memory_space<smem>>
    %63 = arith.index_cast %62 : i32 to index
    %c0_15 = arith.constant 0 : index
    %64 = vector.load %arg3[%63, %c0_15] : memref<104x128xf32, #tpu.memory_space<vmem>>, vector<1x128xf32>
    %65 = arith.addf %57, %64 : vector<1x128xf32>
    %66 = arith.maximumf %58, %64 : vector<1x128xf32>
    %c0_i32_16 = arith.constant 0 : i32
    %67 = arith.addi %0, %c0_i32_16 : i32
    %c8_i32 = arith.constant 8 : i32
    %68 = arith.addi %67, %c8_i32 : i32
    %69 = arith.index_cast %68 : i32 to index
    %70 = memref.load %arg1[%69] : memref<256xi32, #tpu.memory_space<smem>>
    %71 = arith.index_cast %70 : i32 to index
    %c0_17 = arith.constant 0 : index
    %72 = vector.load %arg3[%71, %c0_17] : memref<104x128xf32, #tpu.memory_space<vmem>>, vector<1x128xf32>
    %73 = arith.addf %65, %72 : vector<1x128xf32>
    %74 = arith.maximumf %66, %72 : vector<1x128xf32>
    %c0_i32_18 = arith.constant 0 : i32
    %75 = arith.addi %0, %c0_i32_18 : i32
    %c9_i32 = arith.constant 9 : i32
    %76 = arith.addi %75, %c9_i32 : i32
    %77 = arith.index_cast %76 : i32 to index
    %78 = memref.load %arg1[%77] : memref<256xi32, #tpu.memory_space<smem>>
    %79 = arith.index_cast %78 : i32 to index
    %c0_19 = arith.constant 0 : index
    %80 = vector.load %arg3[%79, %c0_19] : memref<104x128xf32, #tpu.memory_space<vmem>>, vector<1x128xf32>
    %81 = arith.addf %73, %80 : vector<1x128xf32>
    %82 = arith.maximumf %74, %80 : vector<1x128xf32>
    %c0_i32_20 = arith.constant 0 : i32
    %83 = arith.addi %0, %c0_i32_20 : i32
    %c10_i32 = arith.constant 10 : i32
    %84 = arith.addi %83, %c10_i32 : i32
    %85 = arith.index_cast %84 : i32 to index
    %86 = memref.load %arg1[%85] : memref<256xi32, #tpu.memory_space<smem>>
    %87 = arith.index_cast %86 : i32 to index
    %c0_21 = arith.constant 0 : index
    %88 = vector.load %arg3[%87, %c0_21] : memref<104x128xf32, #tpu.memory_space<vmem>>, vector<1x128xf32>
    %89 = arith.addf %81, %88 : vector<1x128xf32>
    %90 = arith.maximumf %82, %88 : vector<1x128xf32>
    %c0_i32_22 = arith.constant 0 : i32
    %91 = arith.addi %0, %c0_i32_22 : i32
    %c11_i32 = arith.constant 11 : i32
    %92 = arith.addi %91, %c11_i32 : i32
    %93 = arith.index_cast %92 : i32 to index
    %94 = memref.load %arg1[%93] : memref<256xi32, #tpu.memory_space<smem>>
    %95 = arith.index_cast %94 : i32 to index
    %c0_23 = arith.constant 0 : index
    %96 = vector.load %arg3[%95, %c0_23] : memref<104x128xf32, #tpu.memory_space<vmem>>, vector<1x128xf32>
    %97 = arith.addf %89, %96 : vector<1x128xf32>
    %98 = arith.maximumf %90, %96 : vector<1x128xf32>
    %c0_i32_24 = arith.constant 0 : i32
    %99 = arith.addi %0, %c0_i32_24 : i32
    %c12_i32 = arith.constant 12 : i32
    %100 = arith.addi %99, %c12_i32 : i32
    %101 = arith.index_cast %100 : i32 to index
    %102 = memref.load %arg1[%101] : memref<256xi32, #tpu.memory_space<smem>>
    %103 = arith.index_cast %102 : i32 to index
    %c0_25 = arith.constant 0 : index
    %104 = vector.load %arg3[%103, %c0_25] : memref<104x128xf32, #tpu.memory_space<vmem>>, vector<1x128xf32>
    %105 = arith.addf %97, %104 : vector<1x128xf32>
    %106 = arith.maximumf %98, %104 : vector<1x128xf32>
    %c0_i32_26 = arith.constant 0 : i32
    %107 = arith.addi %0, %c0_i32_26 : i32
    %c13_i32 = arith.constant 13 : i32
    %108 = arith.addi %107, %c13_i32 : i32
    %109 = arith.index_cast %108 : i32 to index
    %110 = memref.load %arg1[%109] : memref<256xi32, #tpu.memory_space<smem>>
    %111 = arith.index_cast %110 : i32 to index
    %c0_27 = arith.constant 0 : index
    %112 = vector.load %arg3[%111, %c0_27] : memref<104x128xf32, #tpu.memory_space<vmem>>, vector<1x128xf32>
    %113 = arith.addf %105, %112 : vector<1x128xf32>
    %114 = arith.maximumf %106, %112 : vector<1x128xf32>
    %c0_i32_28 = arith.constant 0 : i32
    %115 = arith.addi %0, %c0_i32_28 : i32
    %c14_i32 = arith.constant 14 : i32
    %116 = arith.addi %115, %c14_i32 : i32
    %117 = arith.index_cast %116 : i32 to index
    %118 = memref.load %arg1[%117] : memref<256xi32, #tpu.memory_space<smem>>
    %119 = arith.index_cast %118 : i32 to index
    %c0_29 = arith.constant 0 : index
    %120 = vector.load %arg3[%119, %c0_29] : memref<104x128xf32, #tpu.memory_space<vmem>>, vector<1x128xf32>
    %121 = arith.addf %113, %120 : vector<1x128xf32>
    %122 = arith.maximumf %114, %120 : vector<1x128xf32>
    %c0_i32_30 = arith.constant 0 : i32
    %123 = arith.addi %0, %c0_i32_30 : i32
    %c15_i32 = arith.constant 15 : i32
    %124 = arith.addi %123, %c15_i32 : i32
    %125 = arith.index_cast %124 : i32 to index
    %126 = memref.load %arg1[%125] : memref<256xi32, #tpu.memory_space<smem>>
    %127 = arith.index_cast %126 : i32 to index
    %c0_31 = arith.constant 0 : index
    %128 = vector.load %arg3[%127, %c0_31] : memref<104x128xf32, #tpu.memory_space<vmem>>, vector<1x128xf32>
    %129 = arith.addf %121, %128 : vector<1x128xf32>
    %130 = arith.maximumf %122, %128 : vector<1x128xf32>
    %c0_32 = arith.constant 0 : index
    %c0_33 = arith.constant 0 : index
    %131 = vector.load %arg10[%c0_32, %c0_33] : memref<8x128xf32, #tpu.memory_space<vmem>>, vector<1x128xf32>
    tpu.vector_store %arg10[%c0_32, %c0_33], %129 {strides = array<i32>} : memref<8x128xf32, #tpu.memory_space<vmem>>, vector<1x128xf32>,
    %c0_34 = arith.constant 0 : index
    %c0_35 = arith.constant 0 : index
    %132 = vector.load %arg11[%c0_34, %c0_35] : memref<8x128xf32, #tpu.memory_space<vmem>>, vector<1x128xf32>
    tpu.vector_store %arg11[%c0_34, %c0_35], %130 {strides = array<i32>} : memref<8x128xf32, #tpu.memory_space<vmem>>, vector<1x128xf32>,
    %cst_36 = arith.constant 0.000000e+00 : f32
    %133 = vector.broadcast %cst_36 : f32 to vector<1x128xf32>
    %cst_37 = arith.constant 0xFF800000 : f32
    %134 = vector.broadcast %cst_37 : f32 to vector<1x128xf32>
    %c16_i32 = arith.constant 16 : i32
    %135 = arith.addi %0, %c16_i32 : i32
    %c0_i32_38 = arith.constant 0 : i32
    %136 = arith.addi %135, %c0_i32_38 : i32
    %137 = arith.index_cast %136 : i32 to index
    %138 = memref.load %arg1[%137] : memref<256xi32, #tpu.memory_space<smem>>
    %139 = arith.index_cast %138 : i32 to index
    %c0_39 = arith.constant 0 : index
    %140 = vector.load %arg3[%139, %c0_39] : memref<104x128xf32, #tpu.memory_space<vmem>>, vector<1x128xf32>
    %141 = arith.addf %133, %140 : vector<1x128xf32>
    %142 = arith.maximumf %134, %140 : vector<1x128xf32>
    %c16_i32_40 = arith.constant 16 : i32
    %143 = arith.addi %0, %c16_i32_40 : i32
    %c1_i32_41 = arith.constant 1 : i32
    %144 = arith.addi %143, %c1_i32_41 : i32
    %145 = arith.index_cast %144 : i32 to index
    %146 = memref.load %arg1[%145] : memref<256xi32, #tpu.memory_space<smem>>
    %147 = arith.index_cast %146 : i32 to index
    %c0_42 = arith.constant 0 : index
    %148 = vector.load %arg3[%147, %c0_42] : memref<104x128xf32, #tpu.memory_space<vmem>>, vector<1x128xf32>
    %149 = arith.addf %141, %148 : vector<1x128xf32>
    %150 = arith.maximumf %142, %148 : vector<1x128xf32>
    %c16_i32_43 = arith.constant 16 : i32
    %151 = arith.addi %0, %c16_i32_43 : i32
    %c2_i32_44 = arith.constant 2 : i32
    %152 = arith.addi %151, %c2_i32_44 : i32
    %153 = arith.index_cast %152 : i32 to index
    %154 = memref.load %arg1[%153] : memref<256xi32, #tpu.memory_space<smem>>
    %155 = arith.index_cast %154 : i32 to index
    %c0_45 = arith.constant 0 : index
    %156 = vector.load %arg3[%155, %c0_45] : memref<104x128xf32, #tpu.memory_space<vmem>>, vector<1x128xf32>
    %157 = arith.addf %149, %156 : vector<1x128xf32>
    %158 = arith.maximumf %150, %156 : vector<1x128xf32>
    %c16_i32_46 = arith.constant 16 : i32
    %159 = arith.addi %0, %c16_i32_46 : i32
    %c3_i32_47 = arith.constant 3 : i32
    %160 = arith.addi %159, %c3_i32_47 : i32
    %161 = arith.index_cast %160 : i32 to index
    %162 = memref.load %arg1[%161] : memref<256xi32, #tpu.memory_space<smem>>
    %163 = arith.index_cast %162 : i32 to index
    %c0_48 = arith.constant 0 : index
    %164 = vector.load %arg3[%163, %c0_48] : memref<104x128xf32, #tpu.memory_space<vmem>>, vector<1x128xf32>
    %165 = arith.addf %157, %164 : vector<1x128xf32>
    %166 = arith.maximumf %158, %164 : vector<1x128xf32>
    %c16_i32_49 = arith.constant 16 : i32
    %167 = arith.addi %0, %c16_i32_49 : i32
    %c4_i32_50 = arith.constant 4 : i32
    %168 = arith.addi %167, %c4_i32_50 : i32
    %169 = arith.index_cast %168 : i32 to index
    %170 = memref.load %arg1[%169] : memref<256xi32, #tpu.memory_space<smem>>
    %171 = arith.index_cast %170 : i32 to index
    %c0_51 = arith.constant 0 : index
    %172 = vector.load %arg3[%171, %c0_51] : memref<104x128xf32, #tpu.memory_space<vmem>>, vector<1x128xf32>
    %173 = arith.addf %165, %172 : vector<1x128xf32>
    %174 = arith.maximumf %166, %172 : vector<1x128xf32>
    %c16_i32_52 = arith.constant 16 : i32
    %175 = arith.addi %0, %c16_i32_52 : i32
    %c5_i32_53 = arith.constant 5 : i32
    %176 = arith.addi %175, %c5_i32_53 : i32
    %177 = arith.index_cast %176 : i32 to index
    %178 = memref.load %arg1[%177] : memref<256xi32, #tpu.memory_space<smem>>
    %179 = arith.index_cast %178 : i32 to index
    %c0_54 = arith.constant 0 : index
    %180 = vector.load %arg3[%179, %c0_54] : memref<104x128xf32, #tpu.memory_space<vmem>>, vector<1x128xf32>
    %181 = arith.addf %173, %180 : vector<1x128xf32>
    %182 = arith.maximumf %174, %180 : vector<1x128xf32>
    %c16_i32_55 = arith.constant 16 : i32
    %183 = arith.addi %0, %c16_i32_55 : i32
    %c6_i32_56 = arith.constant 6 : i32
    %184 = arith.addi %183, %c6_i32_56 : i32
    %185 = arith.index_cast %184 : i32 to index
    %186 = memref.load %arg1[%185] : memref<256xi32, #tpu.memory_space<smem>>
    %187 = arith.index_cast %186 : i32 to index
    %c0_57 = arith.constant 0 : index
    %188 = vector.load %arg3[%187, %c0_57] : memref<104x128xf32, #tpu.memory_space<vmem>>, vector<1x128xf32>
    %189 = arith.addf %181, %188 : vector<1x128xf32>
    %190 = arith.maximumf %182, %188 : vector<1x128xf32>
    %c16_i32_58 = arith.constant 16 : i32
    %191 = arith.addi %0, %c16_i32_58 : i32
    %c7_i32_59 = arith.constant 7 : i32
    %192 = arith.addi %191, %c7_i32_59 : i32
    %193 = arith.index_cast %192 : i32 to index
    %194 = memref.load %arg1[%193] : memref<256xi32, #tpu.memory_space<smem>>
    %195 = arith.index_cast %194 : i32 to index
    %c0_60 = arith.constant 0 : index
    %196 = vector.load %arg3[%195, %c0_60] : memref<104x128xf32, #tpu.memory_space<vmem>>, vector<1x128xf32>
    %197 = arith.addf %189, %196 : vector<1x128xf32>
    %198 = arith.maximumf %190, %196 : vector<1x128xf32>
    %c16_i32_61 = arith.constant 16 : i32
    %199 = arith.addi %0, %c16_i32_61 : i32
    %c8_i32_62 = arith.constant 8 : i32
    %200 = arith.addi %199, %c8_i32_62 : i32
    %201 = arith.index_cast %200 : i32 to index
    %202 = memref.load %arg1[%201] : memref<256xi32, #tpu.memory_space<smem>>
    %203 = arith.index_cast %202 : i32 to index
    %c0_63 = arith.constant 0 : index
    %204 = vector.load %arg3[%203, %c0_63] : memref<104x128xf32, #tpu.memory_space<vmem>>, vector<1x128xf32>
    %205 = arith.addf %197, %204 : vector<1x128xf32>
    %206 = arith.maximumf %198, %204 : vector<1x128xf32>
    %c16_i32_64 = arith.constant 16 : i32
    %207 = arith.addi %0, %c16_i32_64 : i32
    %c9_i32_65 = arith.constant 9 : i32
    %208 = arith.addi %207, %c9_i32_65 : i32
    %209 = arith.index_cast %208 : i32 to index
    %210 = memref.load %arg1[%209] : memref<256xi32, #tpu.memory_space<smem>>
    %211 = arith.index_cast %210 : i32 to index
    %c0_66 = arith.constant 0 : index
    %212 = vector.load %arg3[%211, %c0_66] : memref<104x128xf32, #tpu.memory_space<vmem>>, vector<1x128xf32>
    %213 = arith.addf %205, %212 : vector<1x128xf32>
    %214 = arith.maximumf %206, %212 : vector<1x128xf32>
    %c16_i32_67 = arith.constant 16 : i32
    %215 = arith.addi %0, %c16_i32_67 : i32
    %c10_i32_68 = arith.constant 10 : i32
    %216 = arith.addi %215, %c10_i32_68 : i32
    %217 = arith.index_cast %216 : i32 to index
    %218 = memref.load %arg1[%217] : memref<256xi32, #tpu.memory_space<smem>>
    %219 = arith.index_cast %218 : i32 to index
    %c0_69 = arith.constant 0 : index
    %220 = vector.load %arg3[%219, %c0_69] : memref<104x128xf32, #tpu.memory_space<vmem>>, vector<1x128xf32>
    %221 = arith.addf %213, %220 : vector<1x128xf32>
    %222 = arith.maximumf %214, %220 : vector<1x128xf32>
    %c16_i32_70 = arith.constant 16 : i32
    %223 = arith.addi %0, %c16_i32_70 : i32
    %c11_i32_71 = arith.constant 11 : i32
    %224 = arith.addi %223, %c11_i32_71 : i32
    %225 = arith.index_cast %224 : i32 to index
    %226 = memref.load %arg1[%225] : memref<256xi32, #tpu.memory_space<smem>>
    %227 = arith.index_cast %226 : i32 to index
    %c0_72 = arith.constant 0 : index
    %228 = vector.load %arg3[%227, %c0_72] : memref<104x128xf32, #tpu.memory_space<vmem>>, vector<1x128xf32>
    %229 = arith.addf %221, %228 : vector<1x128xf32>
    %230 = arith.maximumf %222, %228 : vector<1x128xf32>
    %c16_i32_73 = arith.constant 16 : i32
    %231 = arith.addi %0, %c16_i32_73 : i32
    %c12_i32_74 = arith.constant 12 : i32
    %232 = arith.addi %231, %c12_i32_74 : i32
    %233 = arith.index_cast %232 : i32 to index
    %234 = memref.load %arg1[%233] : memref<256xi32, #tpu.memory_space<smem>>
    %235 = arith.index_cast %234 : i32 to index
    %c0_75 = arith.constant 0 : index
    %236 = vector.load %arg3[%235, %c0_75] : memref<104x128xf32, #tpu.memory_space<vmem>>, vector<1x128xf32>
    %237 = arith.addf %229, %236 : vector<1x128xf32>
    %238 = arith.maximumf %230, %236 : vector<1x128xf32>
    %c16_i32_76 = arith.constant 16 : i32
    %239 = arith.addi %0, %c16_i32_76 : i32
    %c13_i32_77 = arith.constant 13 : i32
    %240 = arith.addi %239, %c13_i32_77 : i32
    %241 = arith.index_cast %240 : i32 to index
    %242 = memref.load %arg1[%241] : memref<256xi32, #tpu.memory_space<smem>>
    %243 = arith.index_cast %242 : i32 to index
    %c0_78 = arith.constant 0 : index
    %244 = vector.load %arg3[%243, %c0_78] : memref<104x128xf32, #tpu.memory_space<vmem>>, vector<1x128xf32>
    %245 = arith.addf %237, %244 : vector<1x128xf32>
    %246 = arith.maximumf %238, %244 : vector<1x128xf32>
    %c16_i32_79 = arith.constant 16 : i32
    %247 = arith.addi %0, %c16_i32_79 : i32
    %c14_i32_80 = arith.constant 14 : i32
    %248 = arith.addi %247, %c14_i32_80 : i32
    %249 = arith.index_cast %248 : i32 to index
    %250 = memref.load %arg1[%249] : memref<256xi32, #tpu.memory_space<smem>>
    %251 = arith.index_cast %250 : i32 to index
    %c0_81 = arith.constant 0 : index
    %252 = vector.load %arg3[%251, %c0_81] : memref<104x128xf32, #tpu.memory_space<vmem>>, vector<1x128xf32>
    %253 = arith.addf %245, %252 : vector<1x128xf32>
    %254 = arith.maximumf %246, %252 : vector<1x128xf32>
    %c16_i32_82 = arith.constant 16 : i32
    %255 = arith.addi %0, %c16_i32_82 : i32
    %c15_i32_83 = arith.constant 15 : i32
    %256 = arith.addi %255, %c15_i32_83 : i32
    %257 = arith.index_cast %256 : i32 to index
    %258 = memref.load %arg1[%257] : memref<256xi32, #tpu.memory_space<smem>>
    %259 = arith.index_cast %258 : i32 to index
    %c0_84 = arith.constant 0 : index
    %260 = vector.load %arg3[%259, %c0_84] : memref<104x128xf32, #tpu.memory_space<vmem>>, vector<1x128xf32>
    %261 = arith.addf %253, %260 : vector<1x128xf32>
    %262 = arith.maximumf %254, %260 : vector<1x128xf32>
    %c1 = arith.constant 1 : index
    %c0_85 = arith.constant 0 : index
    %263 = vector.load %arg10[%c1, %c0_85] : memref<8x128xf32, #tpu.memory_space<vmem>>, vector<1x128xf32>
    tpu.vector_store %arg10[%c1, %c0_85], %261 {strides = array<i32>} : memref<8x128xf32, #tpu.memory_space<vmem>>, vector<1x128xf32>,
    %c1_86 = arith.constant 1 : index
    %c0_87 = arith.constant 0 : index
    %264 = vector.load %arg11[%c1_86, %c0_87] : memref<8x128xf32, #tpu.memory_space<vmem>>, vector<1x128xf32>
    tpu.vector_store %arg11[%c1_86, %c0_87], %262 {strides = array<i32>} : memref<8x128xf32, #tpu.memory_space<vmem>>, vector<1x128xf32>,
    %cst_88 = arith.constant 0.000000e+00 : f32
    %265 = vector.broadcast %cst_88 : f32 to vector<1x128xf32>
    %cst_89 = arith.constant 0xFF800000 : f32
    %266 = vector.broadcast %cst_89 : f32 to vector<1x128xf32>
    %c32_i32 = arith.constant 32 : i32
    %267 = arith.addi %0, %c32_i32 : i32
    %c0_i32_90 = arith.constant 0 : i32
    %268 = arith.addi %267, %c0_i32_90 : i32
    %269 = arith.index_cast %268 : i32 to index
    %270 = memref.load %arg1[%269] : memref<256xi32, #tpu.memory_space<smem>>
    %271 = arith.index_cast %270 : i32 to index
    %c0_91 = arith.constant 0 : index
    %272 = vector.load %arg3[%271, %c0_91] : memref<104x128xf32, #tpu.memory_space<vmem>>, vector<1x128xf32>
    %273 = arith.addf %265, %272 : vector<1x128xf32>
    %274 = arith.maximumf %266, %272 : vector<1x128xf32>
    %c32_i32_92 = arith.constant 32 : i32
    %275 = arith.addi %0, %c32_i32_92 : i32
    %c1_i32_93 = arith.constant 1 : i32
    %276 = arith.addi %275, %c1_i32_93 : i32
    %277 = arith.index_cast %276 : i32 to index
    %278 = memref.load %arg1[%277] : memref<256xi32, #tpu.memory_space<smem>>
    %279 = arith.index_cast %278 : i32 to index
    %c0_94 = arith.constant 0 : index
    %280 = vector.load %arg3[%279, %c0_94] : memref<104x128xf32, #tpu.memory_space<vmem>>, vector<1x128xf32>
    %281 = arith.addf %273, %280 : vector<1x128xf32>
    %282 = arith.maximumf %274, %280 : vector<1x128xf32>
    %c32_i32_95 = arith.constant 32 : i32
    %283 = arith.addi %0, %c32_i32_95 : i32
    %c2_i32_96 = arith.constant 2 : i32
    %284 = arith.addi %283, %c2_i32_96 : i32
    %285 = arith.index_cast %284 : i32 to index
    %286 = memref.load %arg1[%285] : memref<256xi32, #tpu.memory_space<smem>>
    %287 = arith.index_cast %286 : i32 to index
    %c0_97 = arith.constant 0 : index
    %288 = vector.load %arg3[%287, %c0_97] : memref<104x128xf32, #tpu.memory_space<vmem>>, vector<1x128xf32>
    %289 = arith.addf %281, %288 : vector<1x128xf32>
    %290 = arith.maximumf %282, %288 : vector<1x128xf32>
    %c32_i32_98 = arith.constant 32 : i32
    %291 = arith.addi %0, %c32_i32_98 : i32
    %c3_i32_99 = arith.constant 3 : i32
    %292 = arith.addi %291, %c3_i32_99 : i32
    %293 = arith.index_cast %292 : i32 to index
    %294 = memref.load %arg1[%293] : memref<256xi32, #tpu.memory_space<smem>>
    %295 = arith.index_cast %294 : i32 to index
    %c0_100 = arith.constant 0 : index
    %296 = vector.load %arg3[%295, %c0_100] : memref<104x128xf32, #tpu.memory_space<vmem>>, vector<1x128xf32>
    %297 = arith.addf %289, %296 : vector<1x128xf32>
    %298 = arith.maximumf %290, %296 : vector<1x128xf32>
    %c32_i32_101 = arith.constant 32 : i32
    %299 = arith.addi %0, %c32_i32_101 : i32
    %c4_i32_102 = arith.constant 4 : i32
    %300 = arith.addi %299, %c4_i32_102 : i32
    %301 = arith.index_cast %300 : i32 to index
    %302 = memref.load %arg1[%301] : memref<256xi32, #tpu.memory_space<smem>>
    %303 = arith.index_cast %302 : i32 to index
    %c0_103 = arith.constant 0 : index
    %304 = vector.load %arg3[%303, %c0_103] : memref<104x128xf32, #tpu.memory_space<vmem>>, vector<1x128xf32>
    %305 = arith.addf %297, %304 : vector<1x128xf32>
    %306 = arith.maximumf %298, %304 : vector<1x128xf32>
    %c32_i32_104 = arith.constant 32 : i32
    %307 = arith.addi %0, %c32_i32_104 : i32
    %c5_i32_105 = arith.constant 5 : i32
    %308 = arith.addi %307, %c5_i32_105 : i32
    %309 = arith.index_cast %308 : i32 to index
    %310 = memref.load %arg1[%309] : memref<256xi32, #tpu.memory_space<smem>>
    %311 = arith.index_cast %310 : i32 to index
    %c0_106 = arith.constant 0 : index
    %312 = vector.load %arg3[%311, %c0_106] : memref<104x128xf32, #tpu.memory_space<vmem>>, vector<1x128xf32>
    %313 = arith.addf %305, %312 : vector<1x128xf32>
    %314 = arith.maximumf %306, %312 : vector<1x128xf32>
    %c32_i32_107 = arith.constant 32 : i32
    %315 = arith.addi %0, %c32_i32_107 : i32
    %c6_i32_108 = arith.constant 6 : i32
    %316 = arith.addi %315, %c6_i32_108 : i32
    %317 = arith.index_cast %316 : i32 to index
    %318 = memref.load %arg1[%317] : memref<256xi32, #tpu.memory_space<smem>>
    %319 = arith.index_cast %318 : i32 to index
    %c0_109 = arith.constant 0 : index
    %320 = vector.load %arg3[%319, %c0_109] : memref<104x128xf32, #tpu.memory_space<vmem>>, vector<1x128xf32>
    %321 = arith.addf %313, %320 : vector<1x128xf32>
    %322 = arith.maximumf %314, %320 : vector<1x128xf32>
    %c32_i32_110 = arith.constant 32 : i32
    %323 = arith.addi %0, %c32_i32_110 : i32
    %c7_i32_111 = arith.constant 7 : i32
    %324 = arith.addi %323, %c7_i32_111 : i32
    %325 = arith.index_cast %324 : i32 to index
    %326 = memref.load %arg1[%325] : memref<256xi32, #tpu.memory_space<smem>>
    %327 = arith.index_cast %326 : i32 to index
    %c0_112 = arith.constant 0 : index
    %328 = vector.load %arg3[%327, %c0_112] : memref<104x128xf32, #tpu.memory_space<vmem>>, vector<1x128xf32>
    %329 = arith.addf %321, %328 : vector<1x128xf32>
    %330 = arith.maximumf %322, %328 : vector<1x128xf32>
    %c32_i32_113 = arith.constant 32 : i32
    %331 = arith.addi %0, %c32_i32_113 : i32
    %c8_i32_114 = arith.constant 8 : i32
    %332 = arith.addi %331, %c8_i32_114 : i32
    %333 = arith.index_cast %332 : i32 to index
    %334 = memref.load %arg1[%333] : memref<256xi32, #tpu.memory_space<smem>>
    %335 = arith.index_cast %334 : i32 to index
    %c0_115 = arith.constant 0 : index
    %336 = vector.load %arg3[%335, %c0_115] : memref<104x128xf32, #tpu.memory_space<vmem>>, vector<1x128xf32>
    %337 = arith.addf %329, %336 : vector<1x128xf32>
    %338 = arith.maximumf %330, %336 : vector<1x128xf32>
    %c32_i32_116 = arith.constant 32 : i32
    %339 = arith.addi %0, %c32_i32_116 : i32
    %c9_i32_117 = arith.constant 9 : i32
    %340 = arith.addi %339, %c9_i32_117 : i32
    %341 = arith.index_cast %340 : i32 to index
    %342 = memref.load %arg1[%341] : memref<256xi32, #tpu.memory_space<smem>>
    %343 = arith.index_cast %342 : i32 to index
    %c0_118 = arith.constant 0 : index
    %344 = vector.load %arg3[%343, %c0_118] : memref<104x128xf32, #tpu.memory_space<vmem>>, vector<1x128xf32>
    %345 = arith.addf %337, %344 : vector<1x128xf32>
    %346 = arith.maximumf %338, %344 : vector<1x128xf32>
    %c32_i32_119 = arith.constant 32 : i32
    %347 = arith.addi %0, %c32_i32_119 : i32
    %c10_i32_120 = arith.constant 10 : i32
    %348 = arith.addi %347, %c10_i32_120 : i32
    %349 = arith.index_cast %348 : i32 to index
    %350 = memref.load %arg1[%349] : memref<256xi32, #tpu.memory_space<smem>>
    %351 = arith.index_cast %350 : i32 to index
    %c0_121 = arith.constant 0 : index
    %352 = vector.load %arg3[%351, %c0_121] : memref<104x128xf32, #tpu.memory_space<vmem>>, vector<1x128xf32>
    %353 = arith.addf %345, %352 : vector<1x128xf32>
    %354 = arith.maximumf %346, %352 : vector<1x128xf32>
    %c32_i32_122 = arith.constant 32 : i32
    %355 = arith.addi %0, %c32_i32_122 : i32
    %c11_i32_123 = arith.constant 11 : i32
    %356 = arith.addi %355, %c11_i32_123 : i32
    %357 = arith.index_cast %356 : i32 to index
    %358 = memref.load %arg1[%357] : memref<256xi32, #tpu.memory_space<smem>>
    %359 = arith.index_cast %358 : i32 to index
    %c0_124 = arith.constant 0 : index
    %360 = vector.load %arg3[%359, %c0_124] : memref<104x128xf32, #tpu.memory_space<vmem>>, vector<1x128xf32>
    %361 = arith.addf %353, %360 : vector<1x128xf32>
    %362 = arith.maximumf %354, %360 : vector<1x128xf32>
    %c32_i32_125 = arith.constant 32 : i32
    %363 = arith.addi %0, %c32_i32_125 : i32
    %c12_i32_126 = arith.constant 12 : i32
    %364 = arith.addi %363, %c12_i32_126 : i32
    %365 = arith.index_cast %364 : i32 to index
    %366 = memref.load %arg1[%365] : memref<256xi32, #tpu.memory_space<smem>>
    %367 = arith.index_cast %366 : i32 to index
    %c0_127 = arith.constant 0 : index
    %368 = vector.load %arg3[%367, %c0_127] : memref<104x128xf32, #tpu.memory_space<vmem>>, vector<1x128xf32>
    %369 = arith.addf %361, %368 : vector<1x128xf32>
    %370 = arith.maximumf %362, %368 : vector<1x128xf32>
    %c32_i32_128 = arith.constant 32 : i32
    %371 = arith.addi %0, %c32_i32_128 : i32
    %c13_i32_129 = arith.constant 13 : i32
    %372 = arith.addi %371, %c13_i32_129 : i32
    %373 = arith.index_cast %372 : i32 to index
    %374 = memref.load %arg1[%373] : memref<256xi32, #tpu.memory_space<smem>>
    %375 = arith.index_cast %374 : i32 to index
    %c0_130 = arith.constant 0 : index
    %376 = vector.load %arg3[%375, %c0_130] : memref<104x128xf32, #tpu.memory_space<vmem>>, vector<1x128xf32>
    %377 = arith.addf %369, %376 : vector<1x128xf32>
    %378 = arith.maximumf %370, %376 : vector<1x128xf32>
    %c32_i32_131 = arith.constant 32 : i32
    %379 = arith.addi %0, %c32_i32_131 : i32
    %c14_i32_132 = arith.constant 14 : i32
    %380 = arith.addi %379, %c14_i32_132 : i32
    %381 = arith.index_cast %380 : i32 to index
    %382 = memref.load %arg1[%381] : memref<256xi32, #tpu.memory_space<smem>>
    %383 = arith.index_cast %382 : i32 to index
    %c0_133 = arith.constant 0 : index
    %384 = vector.load %arg3[%383, %c0_133] : memref<104x128xf32, #tpu.memory_space<vmem>>, vector<1x128xf32>
    %385 = arith.addf %377, %384 : vector<1x128xf32>
    %386 = arith.maximumf %378, %384 : vector<1x128xf32>
    %c32_i32_134 = arith.constant 32 : i32
    %387 = arith.addi %0, %c32_i32_134 : i32
    %c15_i32_135 = arith.constant 15 : i32
    %388 = arith.addi %387, %c15_i32_135 : i32
    %389 = arith.index_cast %388 : i32 to index
    %390 = memref.load %arg1[%389] : memref<256xi32, #tpu.memory_space<smem>>
    %391 = arith.index_cast %390 : i32 to index
    %c0_136 = arith.constant 0 : index
    %392 = vector.load %arg3[%391, %c0_136] : memref<104x128xf32, #tpu.memory_space<vmem>>, vector<1x128xf32>
    %393 = arith.addf %385, %392 : vector<1x128xf32>
    %394 = arith.maximumf %386, %392 : vector<1x128xf32>
    %c2 = arith.constant 2 : index
    %c0_137 = arith.constant 0 : index
    %395 = vector.load %arg10[%c2, %c0_137] : memref<8x128xf32, #tpu.memory_space<vmem>>, vector<1x128xf32>
    tpu.vector_store %arg10[%c2, %c0_137], %393 {strides = array<i32>} : memref<8x128xf32, #tpu.memory_space<vmem>>, vector<1x128xf32>,
    %c2_138 = arith.constant 2 : index
    %c0_139 = arith.constant 0 : index
    %396 = vector.load %arg11[%c2_138, %c0_139] : memref<8x128xf32, #tpu.memory_space<vmem>>, vector<1x128xf32>
    tpu.vector_store %arg11[%c2_138, %c0_139], %394 {strides = array<i32>} : memref<8x128xf32, #tpu.memory_space<vmem>>, vector<1x128xf32>,
    %cst_140 = arith.constant 0.000000e+00 : f32
    %397 = vector.broadcast %cst_140 : f32 to vector<1x128xf32>
    %cst_141 = arith.constant 0xFF800000 : f32
    %398 = vector.broadcast %cst_141 : f32 to vector<1x128xf32>
    %c48_i32 = arith.constant 48 : i32
    %399 = arith.addi %0, %c48_i32 : i32
    %c0_i32_142 = arith.constant 0 : i32
    %400 = arith.addi %399, %c0_i32_142 : i32
    %401 = arith.index_cast %400 : i32 to index
    %402 = memref.load %arg1[%401] : memref<256xi32, #tpu.memory_space<smem>>
    %403 = arith.index_cast %402 : i32 to index
    %c0_143 = arith.constant 0 : index
    %404 = vector.load %arg3[%403, %c0_143] : memref<104x128xf32, #tpu.memory_space<vmem>>, vector<1x128xf32>
    %405 = arith.addf %397, %404 : vector<1x128xf32>
    %406 = arith.maximumf %398, %404 : vector<1x128xf32>
    %c48_i32_144 = arith.constant 48 : i32
    %407 = arith.addi %0, %c48_i32_144 : i32
    %c1_i32_145 = arith.constant 1 : i32
    %408 = arith.addi %407, %c1_i32_145 : i32
    %409 = arith.index_cast %408 : i32 to index
    %410 = memref.load %arg1[%409] : memref<256xi32, #tpu.memory_space<smem>>
    %411 = arith.index_cast %410 : i32 to index
    %c0_146 = arith.constant 0 : index
    %412 = vector.load %arg3[%411, %c0_146] : memref<104x128xf32, #tpu.memory_space<vmem>>, vector<1x128xf32>
    %413 = arith.addf %405, %412 : vector<1x128xf32>
    %414 = arith.maximumf %406, %412 : vector<1x128xf32>
    %c48_i32_147 = arith.constant 48 : i32
    %415 = arith.addi %0, %c48_i32_147 : i32
    %c2_i32_148 = arith.constant 2 : i32
    %416 = arith.addi %415, %c2_i32_148 : i32
    %417 = arith.index_cast %416 : i32 to index
    %418 = memref.load %arg1[%417] : memref<256xi32, #tpu.memory_space<smem>>
    %419 = arith.index_cast %418 : i32 to index
    %c0_149 = arith.constant 0 : index
    %420 = vector.load %arg3[%419, %c0_149] : memref<104x128xf32, #tpu.memory_space<vmem>>, vector<1x128xf32>
    %421 = arith.addf %413, %420 : vector<1x128xf32>
    %422 = arith.maximumf %414, %420 : vector<1x128xf32>
    %c48_i32_150 = arith.constant 48 : i32
    %423 = arith.addi %0, %c48_i32_150 : i32
    %c3_i32_151 = arith.constant 3 : i32
    %424 = arith.addi %423, %c3_i32_151 : i32
    %425 = arith.index_cast %424 : i32 to index
    %426 = memref.load %arg1[%425] : memref<256xi32, #tpu.memory_space<smem>>
    %427 = arith.index_cast %426 : i32 to index
    %c0_152 = arith.constant 0 : index
    %428 = vector.load %arg3[%427, %c0_152] : memref<104x128xf32, #tpu.memory_space<vmem>>, vector<1x128xf32>
    %429 = arith.addf %421, %428 : vector<1x128xf32>
    %430 = arith.maximumf %422, %428 : vector<1x128xf32>
    %c48_i32_153 = arith.constant 48 : i32
    %431 = arith.addi %0, %c48_i32_153 : i32
    %c4_i32_154 = arith.constant 4 : i32
    %432 = arith.addi %431, %c4_i32_154 : i32
    %433 = arith.index_cast %432 : i32 to index
    %434 = memref.load %arg1[%433] : memref<256xi32, #tpu.memory_space<smem>>
    %435 = arith.index_cast %434 : i32 to index
    %c0_155 = arith.constant 0 : index
    %436 = vector.load %arg3[%435, %c0_155] : memref<104x128xf32, #tpu.memory_space<vmem>>, vector<1x128xf32>
    %437 = arith.addf %429, %436 : vector<1x128xf32>
    %438 = arith.maximumf %430, %436 : vector<1x128xf32>
    %c48_i32_156 = arith.constant 48 : i32
    %439 = arith.addi %0, %c48_i32_156 : i32
    %c5_i32_157 = arith.constant 5 : i32
    %440 = arith.addi %439, %c5_i32_157 : i32
    %441 = arith.index_cast %440 : i32 to index
    %442 = memref.load %arg1[%441] : memref<256xi32, #tpu.memory_space<smem>>
    %443 = arith.index_cast %442 : i32 to index
    %c0_158 = arith.constant 0 : index
    %444 = vector.load %arg3[%443, %c0_158] : memref<104x128xf32, #tpu.memory_space<vmem>>, vector<1x128xf32>
    %445 = arith.addf %437, %444 : vector<1x128xf32>
    %446 = arith.maximumf %438, %444 : vector<1x128xf32>
    %c48_i32_159 = arith.constant 48 : i32
    %447 = arith.addi %0, %c48_i32_159 : i32
    %c6_i32_160 = arith.constant 6 : i32
    %448 = arith.addi %447, %c6_i32_160 : i32
    %449 = arith.index_cast %448 : i32 to index
    %450 = memref.load %arg1[%449] : memref<256xi32, #tpu.memory_space<smem>>
    %451 = arith.index_cast %450 : i32 to index
    %c0_161 = arith.constant 0 : index
    %452 = vector.load %arg3[%451, %c0_161] : memref<104x128xf32, #tpu.memory_space<vmem>>, vector<1x128xf32>
    %453 = arith.addf %445, %452 : vector<1x128xf32>
    %454 = arith.maximumf %446, %452 : vector<1x128xf32>
    %c48_i32_162 = arith.constant 48 : i32
    %455 = arith.addi %0, %c48_i32_162 : i32
    %c7_i32_163 = arith.constant 7 : i32
    %456 = arith.addi %455, %c7_i32_163 : i32
    %457 = arith.index_cast %456 : i32 to index
    %458 = memref.load %arg1[%457] : memref<256xi32, #tpu.memory_space<smem>>
    %459 = arith.index_cast %458 : i32 to index
    %c0_164 = arith.constant 0 : index
    %460 = vector.load %arg3[%459, %c0_164] : memref<104x128xf32, #tpu.memory_space<vmem>>, vector<1x128xf32>
    %461 = arith.addf %453, %460 : vector<1x128xf32>
    %462 = arith.maximumf %454, %460 : vector<1x128xf32>
    %c48_i32_165 = arith.constant 48 : i32
    %463 = arith.addi %0, %c48_i32_165 : i32
    %c8_i32_166 = arith.constant 8 : i32
    %464 = arith.addi %463, %c8_i32_166 : i32
    %465 = arith.index_cast %464 : i32 to index
    %466 = memref.load %arg1[%465] : memref<256xi32, #tpu.memory_space<smem>>
    %467 = arith.index_cast %466 : i32 to index
    %c0_167 = arith.constant 0 : index
    %468 = vector.load %arg3[%467, %c0_167] : memref<104x128xf32, #tpu.memory_space<vmem>>, vector<1x128xf32>
    %469 = arith.addf %461, %468 : vector<1x128xf32>
    %470 = arith.maximumf %462, %468 : vector<1x128xf32>
    %c48_i32_168 = arith.constant 48 : i32
    %471 = arith.addi %0, %c48_i32_168 : i32
    %c9_i32_169 = arith.constant 9 : i32
    %472 = arith.addi %471, %c9_i32_169 : i32
    %473 = arith.index_cast %472 : i32 to index
    %474 = memref.load %arg1[%473] : memref<256xi32, #tpu.memory_space<smem>>
    %475 = arith.index_cast %474 : i32 to index
    %c0_170 = arith.constant 0 : index
    %476 = vector.load %arg3[%475, %c0_170] : memref<104x128xf32, #tpu.memory_space<vmem>>, vector<1x128xf32>
    %477 = arith.addf %469, %476 : vector<1x128xf32>
    %478 = arith.maximumf %470, %476 : vector<1x128xf32>
    %c48_i32_171 = arith.constant 48 : i32
    %479 = arith.addi %0, %c48_i32_171 : i32
    %c10_i32_172 = arith.constant 10 : i32
    %480 = arith.addi %479, %c10_i32_172 : i32
    %481 = arith.index_cast %480 : i32 to index
    %482 = memref.load %arg1[%481] : memref<256xi32, #tpu.memory_space<smem>>
    %483 = arith.index_cast %482 : i32 to index
    %c0_173 = arith.constant 0 : index
    %484 = vector.load %arg3[%483, %c0_173] : memref<104x128xf32, #tpu.memory_space<vmem>>, vector<1x128xf32>
    %485 = arith.addf %477, %484 : vector<1x128xf32>
    %486 = arith.maximumf %478, %484 : vector<1x128xf32>
    %c48_i32_174 = arith.constant 48 : i32
    %487 = arith.addi %0, %c48_i32_174 : i32
    %c11_i32_175 = arith.constant 11 : i32
    %488 = arith.addi %487, %c11_i32_175 : i32
    %489 = arith.index_cast %488 : i32 to index
    %490 = memref.load %arg1[%489] : memref<256xi32, #tpu.memory_space<smem>>
    %491 = arith.index_cast %490 : i32 to index
    %c0_176 = arith.constant 0 : index
    %492 = vector.load %arg3[%491, %c0_176] : memref<104x128xf32, #tpu.memory_space<vmem>>, vector<1x128xf32>
    %493 = arith.addf %485, %492 : vector<1x128xf32>
    %494 = arith.maximumf %486, %492 : vector<1x128xf32>
    %c48_i32_177 = arith.constant 48 : i32
    %495 = arith.addi %0, %c48_i32_177 : i32
    %c12_i32_178 = arith.constant 12 : i32
    %496 = arith.addi %495, %c12_i32_178 : i32
    %497 = arith.index_cast %496 : i32 to index
    %498 = memref.load %arg1[%497] : memref<256xi32, #tpu.memory_space<smem>>
    %499 = arith.index_cast %498 : i32 to index
    %c0_179 = arith.constant 0 : index
    %500 = vector.load %arg3[%499, %c0_179] : memref<104x128xf32, #tpu.memory_space<vmem>>, vector<1x128xf32>
    %501 = arith.addf %493, %500 : vector<1x128xf32>
    %502 = arith.maximumf %494, %500 : vector<1x128xf32>
    %c48_i32_180 = arith.constant 48 : i32
    %503 = arith.addi %0, %c48_i32_180 : i32
    %c13_i32_181 = arith.constant 13 : i32
    %504 = arith.addi %503, %c13_i32_181 : i32
    %505 = arith.index_cast %504 : i32 to index
    %506 = memref.load %arg1[%505] : memref<256xi32, #tpu.memory_space<smem>>
    %507 = arith.index_cast %506 : i32 to index
    %c0_182 = arith.constant 0 : index
    %508 = vector.load %arg3[%507, %c0_182] : memref<104x128xf32, #tpu.memory_space<vmem>>, vector<1x128xf32>
    %509 = arith.addf %501, %508 : vector<1x128xf32>
    %510 = arith.maximumf %502, %508 : vector<1x128xf32>
    %c48_i32_183 = arith.constant 48 : i32
    %511 = arith.addi %0, %c48_i32_183 : i32
    %c14_i32_184 = arith.constant 14 : i32
    %512 = arith.addi %511, %c14_i32_184 : i32
    %513 = arith.index_cast %512 : i32 to index
    %514 = memref.load %arg1[%513] : memref<256xi32, #tpu.memory_space<smem>>
    %515 = arith.index_cast %514 : i32 to index
    %c0_185 = arith.constant 0 : index
    %516 = vector.load %arg3[%515, %c0_185] : memref<104x128xf32, #tpu.memory_space<vmem>>, vector<1x128xf32>
    %517 = arith.addf %509, %516 : vector<1x128xf32>
    %518 = arith.maximumf %510, %516 : vector<1x128xf32>
    %c48_i32_186 = arith.constant 48 : i32
    %519 = arith.addi %0, %c48_i32_186 : i32
    %c15_i32_187 = arith.constant 15 : i32
    %520 = arith.addi %519, %c15_i32_187 : i32
    %521 = arith.index_cast %520 : i32 to index
    %522 = memref.load %arg1[%521] : memref<256xi32, #tpu.memory_space<smem>>
    %523 = arith.index_cast %522 : i32 to index
    %c0_188 = arith.constant 0 : index
    %524 = vector.load %arg3[%523, %c0_188] : memref<104x128xf32, #tpu.memory_space<vmem>>, vector<1x128xf32>
    %525 = arith.addf %517, %524 : vector<1x128xf32>
    %526 = arith.maximumf %518, %524 : vector<1x128xf32>
    %c3 = arith.constant 3 : index
    %c0_189 = arith.constant 0 : index
    %527 = vector.load %arg10[%c3, %c0_189] : memref<8x128xf32, #tpu.memory_space<vmem>>, vector<1x128xf32>
    tpu.vector_store %arg10[%c3, %c0_189], %525 {strides = array<i32>} : memref<8x128xf32, #tpu.memory_space<vmem>>, vector<1x128xf32>,
    %c3_190 = arith.constant 3 : index
    %c0_191 = arith.constant 0 : index
    %528 = vector.load %arg11[%c3_190, %c0_191] : memref<8x128xf32, #tpu.memory_space<vmem>>, vector<1x128xf32>
    tpu.vector_store %arg11[%c3_190, %c0_191], %526 {strides = array<i32>} : memref<8x128xf32, #tpu.memory_space<vmem>>, vector<1x128xf32>,
    %cst_192 = arith.constant 0.000000e+00 : f32
    %529 = vector.broadcast %cst_192 : f32 to vector<1x128xf32>
    %cst_193 = arith.constant 0xFF800000 : f32
    %530 = vector.broadcast %cst_193 : f32 to vector<1x128xf32>
    %c64_i32 = arith.constant 64 : i32
    %531 = arith.addi %0, %c64_i32 : i32
    %c0_i32_194 = arith.constant 0 : i32
    %532 = arith.addi %531, %c0_i32_194 : i32
    %533 = arith.index_cast %532 : i32 to index
    %534 = memref.load %arg1[%533] : memref<256xi32, #tpu.memory_space<smem>>
    %535 = arith.index_cast %534 : i32 to index
    %c0_195 = arith.constant 0 : index
    %536 = vector.load %arg3[%535, %c0_195] : memref<104x128xf32, #tpu.memory_space<vmem>>, vector<1x128xf32>
    %537 = arith.addf %529, %536 : vector<1x128xf32>
    %538 = arith.maximumf %530, %536 : vector<1x128xf32>
    %c64_i32_196 = arith.constant 64 : i32
    %539 = arith.addi %0, %c64_i32_196 : i32
    %c1_i32_197 = arith.constant 1 : i32
    %540 = arith.addi %539, %c1_i32_197 : i32
    %541 = arith.index_cast %540 : i32 to index
    %542 = memref.load %arg1[%541] : memref<256xi32, #tpu.memory_space<smem>>
    %543 = arith.index_cast %542 : i32 to index
    %c0_198 = arith.constant 0 : index
    %544 = vector.load %arg3[%543, %c0_198] : memref<104x128xf32, #tpu.memory_space<vmem>>, vector<1x128xf32>
    %545 = arith.addf %537, %544 : vector<1x128xf32>
    %546 = arith.maximumf %538, %544 : vector<1x128xf32>
    %c64_i32_199 = arith.constant 64 : i32
    %547 = arith.addi %0, %c64_i32_199 : i32
    %c2_i32_200 = arith.constant 2 : i32
    %548 = arith.addi %547, %c2_i32_200 : i32
    %549 = arith.index_cast %548 : i32 to index
    %550 = memref.load %arg1[%549] : memref<256xi32, #tpu.memory_space<smem>>
    %551 = arith.index_cast %550 : i32 to index
    %c0_201 = arith.constant 0 : index
    %552 = vector.load %arg3[%551, %c0_201] : memref<104x128xf32, #tpu.memory_space<vmem>>, vector<1x128xf32>
    %553 = arith.addf %545, %552 : vector<1x128xf32>
    %554 = arith.maximumf %546, %552 : vector<1x128xf32>
    %c64_i32_202 = arith.constant 64 : i32
    %555 = arith.addi %0, %c64_i32_202 : i32
    %c3_i32_203 = arith.constant 3 : i32
    %556 = arith.addi %555, %c3_i32_203 : i32
    %557 = arith.index_cast %556 : i32 to index
    %558 = memref.load %arg1[%557] : memref<256xi32, #tpu.memory_space<smem>>
    %559 = arith.index_cast %558 : i32 to index
    %c0_204 = arith.constant 0 : index
    %560 = vector.load %arg3[%559, %c0_204] : memref<104x128xf32, #tpu.memory_space<vmem>>, vector<1x128xf32>
    %561 = arith.addf %553, %560 : vector<1x128xf32>
    %562 = arith.maximumf %554, %560 : vector<1x128xf32>
    %c64_i32_205 = arith.constant 64 : i32
    %563 = arith.addi %0, %c64_i32_205 : i32
    %c4_i32_206 = arith.constant 4 : i32
    %564 = arith.addi %563, %c4_i32_206 : i32
    %565 = arith.index_cast %564 : i32 to index
    %566 = memref.load %arg1[%565] : memref<256xi32, #tpu.memory_space<smem>>
    %567 = arith.index_cast %566 : i32 to index
    %c0_207 = arith.constant 0 : index
    %568 = vector.load %arg3[%567, %c0_207] : memref<104x128xf32, #tpu.memory_space<vmem>>, vector<1x128xf32>
    %569 = arith.addf %561, %568 : vector<1x128xf32>
    %570 = arith.maximumf %562, %568 : vector<1x128xf32>
    %c64_i32_208 = arith.constant 64 : i32
    %571 = arith.addi %0, %c64_i32_208 : i32
    %c5_i32_209 = arith.constant 5 : i32
    %572 = arith.addi %571, %c5_i32_209 : i32
    %573 = arith.index_cast %572 : i32 to index
    %574 = memref.load %arg1[%573] : memref<256xi32, #tpu.memory_space<smem>>
    %575 = arith.index_cast %574 : i32 to index
    %c0_210 = arith.constant 0 : index
    %576 = vector.load %arg3[%575, %c0_210] : memref<104x128xf32, #tpu.memory_space<vmem>>, vector<1x128xf32>
    %577 = arith.addf %569, %576 : vector<1x128xf32>
    %578 = arith.maximumf %570, %576 : vector<1x128xf32>
    %c64_i32_211 = arith.constant 64 : i32
    %579 = arith.addi %0, %c64_i32_211 : i32
    %c6_i32_212 = arith.constant 6 : i32
    %580 = arith.addi %579, %c6_i32_212 : i32
    %581 = arith.index_cast %580 : i32 to index
    %582 = memref.load %arg1[%581] : memref<256xi32, #tpu.memory_space<smem>>
    %583 = arith.index_cast %582 : i32 to index
    %c0_213 = arith.constant 0 : index
    %584 = vector.load %arg3[%583, %c0_213] : memref<104x128xf32, #tpu.memory_space<vmem>>, vector<1x128xf32>
    %585 = arith.addf %577, %584 : vector<1x128xf32>
    %586 = arith.maximumf %578, %584 : vector<1x128xf32>
    %c64_i32_214 = arith.constant 64 : i32
    %587 = arith.addi %0, %c64_i32_214 : i32
    %c7_i32_215 = arith.constant 7 : i32
    %588 = arith.addi %587, %c7_i32_215 : i32
    %589 = arith.index_cast %588 : i32 to index
    %590 = memref.load %arg1[%589] : memref<256xi32, #tpu.memory_space<smem>>
    %591 = arith.index_cast %590 : i32 to index
    %c0_216 = arith.constant 0 : index
    %592 = vector.load %arg3[%591, %c0_216] : memref<104x128xf32, #tpu.memory_space<vmem>>, vector<1x128xf32>
    %593 = arith.addf %585, %592 : vector<1x128xf32>
    %594 = arith.maximumf %586, %592 : vector<1x128xf32>
    %c64_i32_217 = arith.constant 64 : i32
    %595 = arith.addi %0, %c64_i32_217 : i32
    %c8_i32_218 = arith.constant 8 : i32
    %596 = arith.addi %595, %c8_i32_218 : i32
    %597 = arith.index_cast %596 : i32 to index
    %598 = memref.load %arg1[%597] : memref<256xi32, #tpu.memory_space<smem>>
    %599 = arith.index_cast %598 : i32 to index
    %c0_219 = arith.constant 0 : index
    %600 = vector.load %arg3[%599, %c0_219] : memref<104x128xf32, #tpu.memory_space<vmem>>, vector<1x128xf32>
    %601 = arith.addf %593, %600 : vector<1x128xf32>
    %602 = arith.maximumf %594, %600 : vector<1x128xf32>
    %c64_i32_220 = arith.constant 64 : i32
    %603 = arith.addi %0, %c64_i32_220 : i32
    %c9_i32_221 = arith.constant 9 : i32
    %604 = arith.addi %603, %c9_i32_221 : i32
    %605 = arith.index_cast %604 : i32 to index
    %606 = memref.load %arg1[%605] : memref<256xi32, #tpu.memory_space<smem>>
    %607 = arith.index_cast %606 : i32 to index
    %c0_222 = arith.constant 0 : index
    %608 = vector.load %arg3[%607, %c0_222] : memref<104x128xf32, #tpu.memory_space<vmem>>, vector<1x128xf32>
    %609 = arith.addf %601, %608 : vector<1x128xf32>
    %610 = arith.maximumf %602, %608 : vector<1x128xf32>
    %c64_i32_223 = arith.constant 64 : i32
    %611 = arith.addi %0, %c64_i32_223 : i32
    %c10_i32_224 = arith.constant 10 : i32
    %612 = arith.addi %611, %c10_i32_224 : i32
    %613 = arith.index_cast %612 : i32 to index
    %614 = memref.load %arg1[%613] : memref<256xi32, #tpu.memory_space<smem>>
    %615 = arith.index_cast %614 : i32 to index
    %c0_225 = arith.constant 0 : index
    %616 = vector.load %arg3[%615, %c0_225] : memref<104x128xf32, #tpu.memory_space<vmem>>, vector<1x128xf32>
    %617 = arith.addf %609, %616 : vector<1x128xf32>
    %618 = arith.maximumf %610, %616 : vector<1x128xf32>
    %c64_i32_226 = arith.constant 64 : i32
    %619 = arith.addi %0, %c64_i32_226 : i32
    %c11_i32_227 = arith.constant 11 : i32
    %620 = arith.addi %619, %c11_i32_227 : i32
    %621 = arith.index_cast %620 : i32 to index
    %622 = memref.load %arg1[%621] : memref<256xi32, #tpu.memory_space<smem>>
    %623 = arith.index_cast %622 : i32 to index
    %c0_228 = arith.constant 0 : index
    %624 = vector.load %arg3[%623, %c0_228] : memref<104x128xf32, #tpu.memory_space<vmem>>, vector<1x128xf32>
    %625 = arith.addf %617, %624 : vector<1x128xf32>
    %626 = arith.maximumf %618, %624 : vector<1x128xf32>
    %c64_i32_229 = arith.constant 64 : i32
    %627 = arith.addi %0, %c64_i32_229 : i32
    %c12_i32_230 = arith.constant 12 : i32
    %628 = arith.addi %627, %c12_i32_230 : i32
    %629 = arith.index_cast %628 : i32 to index
    %630 = memref.load %arg1[%629] : memref<256xi32, #tpu.memory_space<smem>>
    %631 = arith.index_cast %630 : i32 to index
    %c0_231 = arith.constant 0 : index
    %632 = vector.load %arg3[%631, %c0_231] : memref<104x128xf32, #tpu.memory_space<vmem>>, vector<1x128xf32>
    %633 = arith.addf %625, %632 : vector<1x128xf32>
    %634 = arith.maximumf %626, %632 : vector<1x128xf32>
    %c64_i32_232 = arith.constant 64 : i32
    %635 = arith.addi %0, %c64_i32_232 : i32
    %c13_i32_233 = arith.constant 13 : i32
    %636 = arith.addi %635, %c13_i32_233 : i32
    %637 = arith.index_cast %636 : i32 to index
    %638 = memref.load %arg1[%637] : memref<256xi32, #tpu.memory_space<smem>>
    %639 = arith.index_cast %638 : i32 to index
    %c0_234 = arith.constant 0 : index
    %640 = vector.load %arg3[%639, %c0_234] : memref<104x128xf32, #tpu.memory_space<vmem>>, vector<1x128xf32>
    %641 = arith.addf %633, %640 : vector<1x128xf32>
    %642 = arith.maximumf %634, %640 : vector<1x128xf32>
    %c64_i32_235 = arith.constant 64 : i32
    %643 = arith.addi %0, %c64_i32_235 : i32
    %c14_i32_236 = arith.constant 14 : i32
    %644 = arith.addi %643, %c14_i32_236 : i32
    %645 = arith.index_cast %644 : i32 to index
    %646 = memref.load %arg1[%645] : memref<256xi32, #tpu.memory_space<smem>>
    %647 = arith.index_cast %646 : i32 to index
    %c0_237 = arith.constant 0 : index
    %648 = vector.load %arg3[%647, %c0_237] : memref<104x128xf32, #tpu.memory_space<vmem>>, vector<1x128xf32>
    %649 = arith.addf %641, %648 : vector<1x128xf32>
    %650 = arith.maximumf %642, %648 : vector<1x128xf32>
    %c64_i32_238 = arith.constant 64 : i32
    %651 = arith.addi %0, %c64_i32_238 : i32
    %c15_i32_239 = arith.constant 15 : i32
    %652 = arith.addi %651, %c15_i32_239 : i32
    %653 = arith.index_cast %652 : i32 to index
    %654 = memref.load %arg1[%653] : memref<256xi32, #tpu.memory_space<smem>>
    %655 = arith.index_cast %654 : i32 to index
    %c0_240 = arith.constant 0 : index
    %656 = vector.load %arg3[%655, %c0_240] : memref<104x128xf32, #tpu.memory_space<vmem>>, vector<1x128xf32>
    %657 = arith.addf %649, %656 : vector<1x128xf32>
    %658 = arith.maximumf %650, %656 : vector<1x128xf32>
    %c4 = arith.constant 4 : index
    %c0_241 = arith.constant 0 : index
    %659 = vector.load %arg10[%c4, %c0_241] : memref<8x128xf32, #tpu.memory_space<vmem>>, vector<1x128xf32>
    tpu.vector_store %arg10[%c4, %c0_241], %657 {strides = array<i32>} : memref<8x128xf32, #tpu.memory_space<vmem>>, vector<1x128xf32>,
    %c4_242 = arith.constant 4 : index
    %c0_243 = arith.constant 0 : index
    %660 = vector.load %arg11[%c4_242, %c0_243] : memref<8x128xf32, #tpu.memory_space<vmem>>, vector<1x128xf32>
    tpu.vector_store %arg11[%c4_242, %c0_243], %658 {strides = array<i32>} : memref<8x128xf32, #tpu.memory_space<vmem>>, vector<1x128xf32>,
    %cst_244 = arith.constant 0.000000e+00 : f32
    %661 = vector.broadcast %cst_244 : f32 to vector<1x128xf32>
    %cst_245 = arith.constant 0xFF800000 : f32
    %662 = vector.broadcast %cst_245 : f32 to vector<1x128xf32>
    %c80_i32 = arith.constant 80 : i32
    %663 = arith.addi %0, %c80_i32 : i32
    %c0_i32_246 = arith.constant 0 : i32
    %664 = arith.addi %663, %c0_i32_246 : i32
    %665 = arith.index_cast %664 : i32 to index
    %666 = memref.load %arg1[%665] : memref<256xi32, #tpu.memory_space<smem>>
    %667 = arith.index_cast %666 : i32 to index
    %c0_247 = arith.constant 0 : index
    %668 = vector.load %arg3[%667, %c0_247] : memref<104x128xf32, #tpu.memory_space<vmem>>, vector<1x128xf32>
    %669 = arith.addf %661, %668 : vector<1x128xf32>
    %670 = arith.maximumf %662, %668 : vector<1x128xf32>
    %c80_i32_248 = arith.constant 80 : i32
    %671 = arith.addi %0, %c80_i32_248 : i32
    %c1_i32_249 = arith.constant 1 : i32
    %672 = arith.addi %671, %c1_i32_249 : i32
    %673 = arith.index_cast %672 : i32 to index
    %674 = memref.load %arg1[%673] : memref<256xi32, #tpu.memory_space<smem>>
    %675 = arith.index_cast %674 : i32 to index
    %c0_250 = arith.constant 0 : index
    %676 = vector.load %arg3[%675, %c0_250] : memref<104x128xf32, #tpu.memory_space<vmem>>, vector<1x128xf32>
    %677 = arith.addf %669, %676 : vector<1x128xf32>
    %678 = arith.maximumf %670, %676 : vector<1x128xf32>
    %c80_i32_251 = arith.constant 80 : i32
    %679 = arith.addi %0, %c80_i32_251 : i32
    %c2_i32_252 = arith.constant 2 : i32
    %680 = arith.addi %679, %c2_i32_252 : i32
    %681 = arith.index_cast %680 : i32 to index
    %682 = memref.load %arg1[%681] : memref<256xi32, #tpu.memory_space<smem>>
    %683 = arith.index_cast %682 : i32 to index
    %c0_253 = arith.constant 0 : index
    %684 = vector.load %arg3[%683, %c0_253] : memref<104x128xf32, #tpu.memory_space<vmem>>, vector<1x128xf32>
    %685 = arith.addf %677, %684 : vector<1x128xf32>
    %686 = arith.maximumf %678, %684 : vector<1x128xf32>
    %c80_i32_254 = arith.constant 80 : i32
    %687 = arith.addi %0, %c80_i32_254 : i32
    %c3_i32_255 = arith.constant 3 : i32
    %688 = arith.addi %687, %c3_i32_255 : i32
    %689 = arith.index_cast %688 : i32 to index
    %690 = memref.load %arg1[%689] : memref<256xi32, #tpu.memory_space<smem>>
    %691 = arith.index_cast %690 : i32 to index
    %c0_256 = arith.constant 0 : index
    %692 = vector.load %arg3[%691, %c0_256] : memref<104x128xf32, #tpu.memory_space<vmem>>, vector<1x128xf32>
    %693 = arith.addf %685, %692 : vector<1x128xf32>
    %694 = arith.maximumf %686, %692 : vector<1x128xf32>
    %c80_i32_257 = arith.constant 80 : i32
    %695 = arith.addi %0, %c80_i32_257 : i32
    %c4_i32_258 = arith.constant 4 : i32
    %696 = arith.addi %695, %c4_i32_258 : i32
    %697 = arith.index_cast %696 : i32 to index
    %698 = memref.load %arg1[%697] : memref<256xi32, #tpu.memory_space<smem>>
    %699 = arith.index_cast %698 : i32 to index
    %c0_259 = arith.constant 0 : index
    %700 = vector.load %arg3[%699, %c0_259] : memref<104x128xf32, #tpu.memory_space<vmem>>, vector<1x128xf32>
    %701 = arith.addf %693, %700 : vector<1x128xf32>
    %702 = arith.maximumf %694, %700 : vector<1x128xf32>
    %c80_i32_260 = arith.constant 80 : i32
    %703 = arith.addi %0, %c80_i32_260 : i32
    %c5_i32_261 = arith.constant 5 : i32
    %704 = arith.addi %703, %c5_i32_261 : i32
    %705 = arith.index_cast %704 : i32 to index
    %706 = memref.load %arg1[%705] : memref<256xi32, #tpu.memory_space<smem>>
    %707 = arith.index_cast %706 : i32 to index
    %c0_262 = arith.constant 0 : index
    %708 = vector.load %arg3[%707, %c0_262] : memref<104x128xf32, #tpu.memory_space<vmem>>, vector<1x128xf32>
    %709 = arith.addf %701, %708 : vector<1x128xf32>
    %710 = arith.maximumf %702, %708 : vector<1x128xf32>
    %c80_i32_263 = arith.constant 80 : i32
    %711 = arith.addi %0, %c80_i32_263 : i32
    %c6_i32_264 = arith.constant 6 : i32
    %712 = arith.addi %711, %c6_i32_264 : i32
    %713 = arith.index_cast %712 : i32 to index
    %714 = memref.load %arg1[%713] : memref<256xi32, #tpu.memory_space<smem>>
    %715 = arith.index_cast %714 : i32 to index
    %c0_265 = arith.constant 0 : index
    %716 = vector.load %arg3[%715, %c0_265] : memref<104x128xf32, #tpu.memory_space<vmem>>, vector<1x128xf32>
    %717 = arith.addf %709, %716 : vector<1x128xf32>
    %718 = arith.maximumf %710, %716 : vector<1x128xf32>
    %c80_i32_266 = arith.constant 80 : i32
    %719 = arith.addi %0, %c80_i32_266 : i32
    %c7_i32_267 = arith.constant 7 : i32
    %720 = arith.addi %719, %c7_i32_267 : i32
    %721 = arith.index_cast %720 : i32 to index
    %722 = memref.load %arg1[%721] : memref<256xi32, #tpu.memory_space<smem>>
    %723 = arith.index_cast %722 : i32 to index
    %c0_268 = arith.constant 0 : index
    %724 = vector.load %arg3[%723, %c0_268] : memref<104x128xf32, #tpu.memory_space<vmem>>, vector<1x128xf32>
    %725 = arith.addf %717, %724 : vector<1x128xf32>
    %726 = arith.maximumf %718, %724 : vector<1x128xf32>
    %c80_i32_269 = arith.constant 80 : i32
    %727 = arith.addi %0, %c80_i32_269 : i32
    %c8_i32_270 = arith.constant 8 : i32
    %728 = arith.addi %727, %c8_i32_270 : i32
    %729 = arith.index_cast %728 : i32 to index
    %730 = memref.load %arg1[%729] : memref<256xi32, #tpu.memory_space<smem>>
    %731 = arith.index_cast %730 : i32 to index
    %c0_271 = arith.constant 0 : index
    %732 = vector.load %arg3[%731, %c0_271] : memref<104x128xf32, #tpu.memory_space<vmem>>, vector<1x128xf32>
    %733 = arith.addf %725, %732 : vector<1x128xf32>
    %734 = arith.maximumf %726, %732 : vector<1x128xf32>
    %c80_i32_272 = arith.constant 80 : i32
    %735 = arith.addi %0, %c80_i32_272 : i32
    %c9_i32_273 = arith.constant 9 : i32
    %736 = arith.addi %735, %c9_i32_273 : i32
    %737 = arith.index_cast %736 : i32 to index
    %738 = memref.load %arg1[%737] : memref<256xi32, #tpu.memory_space<smem>>
    %739 = arith.index_cast %738 : i32 to index
    %c0_274 = arith.constant 0 : index
    %740 = vector.load %arg3[%739, %c0_274] : memref<104x128xf32, #tpu.memory_space<vmem>>, vector<1x128xf32>
    %741 = arith.addf %733, %740 : vector<1x128xf32>
    %742 = arith.maximumf %734, %740 : vector<1x128xf32>
    %c80_i32_275 = arith.constant 80 : i32
    %743 = arith.addi %0, %c80_i32_275 : i32
    %c10_i32_276 = arith.constant 10 : i32
    %744 = arith.addi %743, %c10_i32_276 : i32
    %745 = arith.index_cast %744 : i32 to index
    %746 = memref.load %arg1[%745] : memref<256xi32, #tpu.memory_space<smem>>
    %747 = arith.index_cast %746 : i32 to index
    %c0_277 = arith.constant 0 : index
    %748 = vector.load %arg3[%747, %c0_277] : memref<104x128xf32, #tpu.memory_space<vmem>>, vector<1x128xf32>
    %749 = arith.addf %741, %748 : vector<1x128xf32>
    %750 = arith.maximumf %742, %748 : vector<1x128xf32>
    %c80_i32_278 = arith.constant 80 : i32
    %751 = arith.addi %0, %c80_i32_278 : i32
    %c11_i32_279 = arith.constant 11 : i32
    %752 = arith.addi %751, %c11_i32_279 : i32
    %753 = arith.index_cast %752 : i32 to index
    %754 = memref.load %arg1[%753] : memref<256xi32, #tpu.memory_space<smem>>
    %755 = arith.index_cast %754 : i32 to index
    %c0_280 = arith.constant 0 : index
    %756 = vector.load %arg3[%755, %c0_280] : memref<104x128xf32, #tpu.memory_space<vmem>>, vector<1x128xf32>
    %757 = arith.addf %749, %756 : vector<1x128xf32>
    %758 = arith.maximumf %750, %756 : vector<1x128xf32>
    %c80_i32_281 = arith.constant 80 : i32
    %759 = arith.addi %0, %c80_i32_281 : i32
    %c12_i32_282 = arith.constant 12 : i32
    %760 = arith.addi %759, %c12_i32_282 : i32
    %761 = arith.index_cast %760 : i32 to index
    %762 = memref.load %arg1[%761] : memref<256xi32, #tpu.memory_space<smem>>
    %763 = arith.index_cast %762 : i32 to index
    %c0_283 = arith.constant 0 : index
    %764 = vector.load %arg3[%763, %c0_283] : memref<104x128xf32, #tpu.memory_space<vmem>>, vector<1x128xf32>
    %765 = arith.addf %757, %764 : vector<1x128xf32>
    %766 = arith.maximumf %758, %764 : vector<1x128xf32>
    %c80_i32_284 = arith.constant 80 : i32
    %767 = arith.addi %0, %c80_i32_284 : i32
    %c13_i32_285 = arith.constant 13 : i32
    %768 = arith.addi %767, %c13_i32_285 : i32
    %769 = arith.index_cast %768 : i32 to index
    %770 = memref.load %arg1[%769] : memref<256xi32, #tpu.memory_space<smem>>
    %771 = arith.index_cast %770 : i32 to index
    %c0_286 = arith.constant 0 : index
    %772 = vector.load %arg3[%771, %c0_286] : memref<104x128xf32, #tpu.memory_space<vmem>>, vector<1x128xf32>
    %773 = arith.addf %765, %772 : vector<1x128xf32>
    %774 = arith.maximumf %766, %772 : vector<1x128xf32>
    %c80_i32_287 = arith.constant 80 : i32
    %775 = arith.addi %0, %c80_i32_287 : i32
    %c14_i32_288 = arith.constant 14 : i32
    %776 = arith.addi %775, %c14_i32_288 : i32
    %777 = arith.index_cast %776 : i32 to index
    %778 = memref.load %arg1[%777] : memref<256xi32, #tpu.memory_space<smem>>
    %779 = arith.index_cast %778 : i32 to index
    %c0_289 = arith.constant 0 : index
    %780 = vector.load %arg3[%779, %c0_289] : memref<104x128xf32, #tpu.memory_space<vmem>>, vector<1x128xf32>
    %781 = arith.addf %773, %780 : vector<1x128xf32>
    %782 = arith.maximumf %774, %780 : vector<1x128xf32>
    %c80_i32_290 = arith.constant 80 : i32
    %783 = arith.addi %0, %c80_i32_290 : i32
    %c15_i32_291 = arith.constant 15 : i32
    %784 = arith.addi %783, %c15_i32_291 : i32
    %785 = arith.index_cast %784 : i32 to index
    %786 = memref.load %arg1[%785] : memref<256xi32, #tpu.memory_space<smem>>
    %787 = arith.index_cast %786 : i32 to index
    %c0_292 = arith.constant 0 : index
    %788 = vector.load %arg3[%787, %c0_292] : memref<104x128xf32, #tpu.memory_space<vmem>>, vector<1x128xf32>
    %789 = arith.addf %781, %788 : vector<1x128xf32>
    %790 = arith.maximumf %782, %788 : vector<1x128xf32>
    %c5 = arith.constant 5 : index
    %c0_293 = arith.constant 0 : index
    %791 = vector.load %arg10[%c5, %c0_293] : memref<8x128xf32, #tpu.memory_space<vmem>>, vector<1x128xf32>
    tpu.vector_store %arg10[%c5, %c0_293], %789 {strides = array<i32>} : memref<8x128xf32, #tpu.memory_space<vmem>>, vector<1x128xf32>,
    %c5_294 = arith.constant 5 : index
    %c0_295 = arith.constant 0 : index
    %792 = vector.load %arg11[%c5_294, %c0_295] : memref<8x128xf32, #tpu.memory_space<vmem>>, vector<1x128xf32>
    tpu.vector_store %arg11[%c5_294, %c0_295], %790 {strides = array<i32>} : memref<8x128xf32, #tpu.memory_space<vmem>>, vector<1x128xf32>,
    %cst_296 = arith.constant 0.000000e+00 : f32
    %793 = vector.broadcast %cst_296 : f32 to vector<1x128xf32>
    %cst_297 = arith.constant 0xFF800000 : f32
    %794 = vector.broadcast %cst_297 : f32 to vector<1x128xf32>
    %c96_i32 = arith.constant 96 : i32
    %795 = arith.addi %0, %c96_i32 : i32
    %c0_i32_298 = arith.constant 0 : i32
    %796 = arith.addi %795, %c0_i32_298 : i32
    %797 = arith.index_cast %796 : i32 to index
    %798 = memref.load %arg1[%797] : memref<256xi32, #tpu.memory_space<smem>>
    %799 = arith.index_cast %798 : i32 to index
    %c0_299 = arith.constant 0 : index
    %800 = vector.load %arg3[%799, %c0_299] : memref<104x128xf32, #tpu.memory_space<vmem>>, vector<1x128xf32>
    %801 = arith.addf %793, %800 : vector<1x128xf32>
    %802 = arith.maximumf %794, %800 : vector<1x128xf32>
    %c96_i32_300 = arith.constant 96 : i32
    %803 = arith.addi %0, %c96_i32_300 : i32
    %c1_i32_301 = arith.constant 1 : i32
    %804 = arith.addi %803, %c1_i32_301 : i32
    %805 = arith.index_cast %804 : i32 to index
    %806 = memref.load %arg1[%805] : memref<256xi32, #tpu.memory_space<smem>>
    %807 = arith.index_cast %806 : i32 to index
    %c0_302 = arith.constant 0 : index
    %808 = vector.load %arg3[%807, %c0_302] : memref<104x128xf32, #tpu.memory_space<vmem>>, vector<1x128xf32>
    %809 = arith.addf %801, %808 : vector<1x128xf32>
    %810 = arith.maximumf %802, %808 : vector<1x128xf32>
    %c96_i32_303 = arith.constant 96 : i32
    %811 = arith.addi %0, %c96_i32_303 : i32
    %c2_i32_304 = arith.constant 2 : i32
    %812 = arith.addi %811, %c2_i32_304 : i32
    %813 = arith.index_cast %812 : i32 to index
    %814 = memref.load %arg1[%813] : memref<256xi32, #tpu.memory_space<smem>>
    %815 = arith.index_cast %814 : i32 to index
    %c0_305 = arith.constant 0 : index
    %816 = vector.load %arg3[%815, %c0_305] : memref<104x128xf32, #tpu.memory_space<vmem>>, vector<1x128xf32>
    %817 = arith.addf %809, %816 : vector<1x128xf32>
    %818 = arith.maximumf %810, %816 : vector<1x128xf32>
    %c96_i32_306 = arith.constant 96 : i32
    %819 = arith.addi %0, %c96_i32_306 : i32
    %c3_i32_307 = arith.constant 3 : i32
    %820 = arith.addi %819, %c3_i32_307 : i32
    %821 = arith.index_cast %820 : i32 to index
    %822 = memref.load %arg1[%821] : memref<256xi32, #tpu.memory_space<smem>>
    %823 = arith.index_cast %822 : i32 to index
    %c0_308 = arith.constant 0 : index
    %824 = vector.load %arg3[%823, %c0_308] : memref<104x128xf32, #tpu.memory_space<vmem>>, vector<1x128xf32>
    %825 = arith.addf %817, %824 : vector<1x128xf32>
    %826 = arith.maximumf %818, %824 : vector<1x128xf32>
    %c96_i32_309 = arith.constant 96 : i32
    %827 = arith.addi %0, %c96_i32_309 : i32
    %c4_i32_310 = arith.constant 4 : i32
    %828 = arith.addi %827, %c4_i32_310 : i32
    %829 = arith.index_cast %828 : i32 to index
    %830 = memref.load %arg1[%829] : memref<256xi32, #tpu.memory_space<smem>>
    %831 = arith.index_cast %830 : i32 to index
    %c0_311 = arith.constant 0 : index
    %832 = vector.load %arg3[%831, %c0_311] : memref<104x128xf32, #tpu.memory_space<vmem>>, vector<1x128xf32>
    %833 = arith.addf %825, %832 : vector<1x128xf32>
    %834 = arith.maximumf %826, %832 : vector<1x128xf32>
    %c96_i32_312 = arith.constant 96 : i32
    %835 = arith.addi %0, %c96_i32_312 : i32
    %c5_i32_313 = arith.constant 5 : i32
    %836 = arith.addi %835, %c5_i32_313 : i32
    %837 = arith.index_cast %836 : i32 to index
    %838 = memref.load %arg1[%837] : memref<256xi32, #tpu.memory_space<smem>>
    %839 = arith.index_cast %838 : i32 to index
    %c0_314 = arith.constant 0 : index
    %840 = vector.load %arg3[%839, %c0_314] : memref<104x128xf32, #tpu.memory_space<vmem>>, vector<1x128xf32>
    %841 = arith.addf %833, %840 : vector<1x128xf32>
    %842 = arith.maximumf %834, %840 : vector<1x128xf32>
    %c96_i32_315 = arith.constant 96 : i32
    %843 = arith.addi %0, %c96_i32_315 : i32
    %c6_i32_316 = arith.constant 6 : i32
    %844 = arith.addi %843, %c6_i32_316 : i32
    %845 = arith.index_cast %844 : i32 to index
    %846 = memref.load %arg1[%845] : memref<256xi32, #tpu.memory_space<smem>>
    %847 = arith.index_cast %846 : i32 to index
    %c0_317 = arith.constant 0 : index
    %848 = vector.load %arg3[%847, %c0_317] : memref<104x128xf32, #tpu.memory_space<vmem>>, vector<1x128xf32>
    %849 = arith.addf %841, %848 : vector<1x128xf32>
    %850 = arith.maximumf %842, %848 : vector<1x128xf32>
    %c96_i32_318 = arith.constant 96 : i32
    %851 = arith.addi %0, %c96_i32_318 : i32
    %c7_i32_319 = arith.constant 7 : i32
    %852 = arith.addi %851, %c7_i32_319 : i32
    %853 = arith.index_cast %852 : i32 to index
    %854 = memref.load %arg1[%853] : memref<256xi32, #tpu.memory_space<smem>>
    %855 = arith.index_cast %854 : i32 to index
    %c0_320 = arith.constant 0 : index
    %856 = vector.load %arg3[%855, %c0_320] : memref<104x128xf32, #tpu.memory_space<vmem>>, vector<1x128xf32>
    %857 = arith.addf %849, %856 : vector<1x128xf32>
    %858 = arith.maximumf %850, %856 : vector<1x128xf32>
    %c96_i32_321 = arith.constant 96 : i32
    %859 = arith.addi %0, %c96_i32_321 : i32
    %c8_i32_322 = arith.constant 8 : i32
    %860 = arith.addi %859, %c8_i32_322 : i32
    %861 = arith.index_cast %860 : i32 to index
    %862 = memref.load %arg1[%861] : memref<256xi32, #tpu.memory_space<smem>>
    %863 = arith.index_cast %862 : i32 to index
    %c0_323 = arith.constant 0 : index
    %864 = vector.load %arg3[%863, %c0_323] : memref<104x128xf32, #tpu.memory_space<vmem>>, vector<1x128xf32>
    %865 = arith.addf %857, %864 : vector<1x128xf32>
    %866 = arith.maximumf %858, %864 : vector<1x128xf32>
    %c96_i32_324 = arith.constant 96 : i32
    %867 = arith.addi %0, %c96_i32_324 : i32
    %c9_i32_325 = arith.constant 9 : i32
    %868 = arith.addi %867, %c9_i32_325 : i32
    %869 = arith.index_cast %868 : i32 to index
    %870 = memref.load %arg1[%869] : memref<256xi32, #tpu.memory_space<smem>>
    %871 = arith.index_cast %870 : i32 to index
    %c0_326 = arith.constant 0 : index
    %872 = vector.load %arg3[%871, %c0_326] : memref<104x128xf32, #tpu.memory_space<vmem>>, vector<1x128xf32>
    %873 = arith.addf %865, %872 : vector<1x128xf32>
    %874 = arith.maximumf %866, %872 : vector<1x128xf32>
    %c96_i32_327 = arith.constant 96 : i32
    %875 = arith.addi %0, %c96_i32_327 : i32
    %c10_i32_328 = arith.constant 10 : i32
    %876 = arith.addi %875, %c10_i32_328 : i32
    %877 = arith.index_cast %876 : i32 to index
    %878 = memref.load %arg1[%877] : memref<256xi32, #tpu.memory_space<smem>>
    %879 = arith.index_cast %878 : i32 to index
    %c0_329 = arith.constant 0 : index
    %880 = vector.load %arg3[%879, %c0_329] : memref<104x128xf32, #tpu.memory_space<vmem>>, vector<1x128xf32>
    %881 = arith.addf %873, %880 : vector<1x128xf32>
    %882 = arith.maximumf %874, %880 : vector<1x128xf32>
    %c96_i32_330 = arith.constant 96 : i32
    %883 = arith.addi %0, %c96_i32_330 : i32
    %c11_i32_331 = arith.constant 11 : i32
    %884 = arith.addi %883, %c11_i32_331 : i32
    %885 = arith.index_cast %884 : i32 to index
    %886 = memref.load %arg1[%885] : memref<256xi32, #tpu.memory_space<smem>>
    %887 = arith.index_cast %886 : i32 to index
    %c0_332 = arith.constant 0 : index
    %888 = vector.load %arg3[%887, %c0_332] : memref<104x128xf32, #tpu.memory_space<vmem>>, vector<1x128xf32>
    %889 = arith.addf %881, %888 : vector<1x128xf32>
    %890 = arith.maximumf %882, %888 : vector<1x128xf32>
    %c96_i32_333 = arith.constant 96 : i32
    %891 = arith.addi %0, %c96_i32_333 : i32
    %c12_i32_334 = arith.constant 12 : i32
    %892 = arith.addi %891, %c12_i32_334 : i32
    %893 = arith.index_cast %892 : i32 to index
    %894 = memref.load %arg1[%893] : memref<256xi32, #tpu.memory_space<smem>>
    %895 = arith.index_cast %894 : i32 to index
    %c0_335 = arith.constant 0 : index
    %896 = vector.load %arg3[%895, %c0_335] : memref<104x128xf32, #tpu.memory_space<vmem>>, vector<1x128xf32>
    %897 = arith.addf %889, %896 : vector<1x128xf32>
    %898 = arith.maximumf %890, %896 : vector<1x128xf32>
    %c96_i32_336 = arith.constant 96 : i32
    %899 = arith.addi %0, %c96_i32_336 : i32
    %c13_i32_337 = arith.constant 13 : i32
    %900 = arith.addi %899, %c13_i32_337 : i32
    %901 = arith.index_cast %900 : i32 to index
    %902 = memref.load %arg1[%901] : memref<256xi32, #tpu.memory_space<smem>>
    %903 = arith.index_cast %902 : i32 to index
    %c0_338 = arith.constant 0 : index
    %904 = vector.load %arg3[%903, %c0_338] : memref<104x128xf32, #tpu.memory_space<vmem>>, vector<1x128xf32>
    %905 = arith.addf %897, %904 : vector<1x128xf32>
    %906 = arith.maximumf %898, %904 : vector<1x128xf32>
    %c96_i32_339 = arith.constant 96 : i32
    %907 = arith.addi %0, %c96_i32_339 : i32
    %c14_i32_340 = arith.constant 14 : i32
    %908 = arith.addi %907, %c14_i32_340 : i32
    %909 = arith.index_cast %908 : i32 to index
    %910 = memref.load %arg1[%909] : memref<256xi32, #tpu.memory_space<smem>>
    %911 = arith.index_cast %910 : i32 to index
    %c0_341 = arith.constant 0 : index
    %912 = vector.load %arg3[%911, %c0_341] : memref<104x128xf32, #tpu.memory_space<vmem>>, vector<1x128xf32>
    %913 = arith.addf %905, %912 : vector<1x128xf32>
    %914 = arith.maximumf %906, %912 : vector<1x128xf32>
    %c96_i32_342 = arith.constant 96 : i32
    %915 = arith.addi %0, %c96_i32_342 : i32
    %c15_i32_343 = arith.constant 15 : i32
    %916 = arith.addi %915, %c15_i32_343 : i32
    %917 = arith.index_cast %916 : i32 to index
    %918 = memref.load %arg1[%917] : memref<256xi32, #tpu.memory_space<smem>>
    %919 = arith.index_cast %918 : i32 to index
    %c0_344 = arith.constant 0 : index
    %920 = vector.load %arg3[%919, %c0_344] : memref<104x128xf32, #tpu.memory_space<vmem>>, vector<1x128xf32>
    %921 = arith.addf %913, %920 : vector<1x128xf32>
    %922 = arith.maximumf %914, %920 : vector<1x128xf32>
    %c6 = arith.constant 6 : index
    %c0_345 = arith.constant 0 : index
    %923 = vector.load %arg10[%c6, %c0_345] : memref<8x128xf32, #tpu.memory_space<vmem>>, vector<1x128xf32>
    tpu.vector_store %arg10[%c6, %c0_345], %921 {strides = array<i32>} : memref<8x128xf32, #tpu.memory_space<vmem>>, vector<1x128xf32>,
    %c6_346 = arith.constant 6 : index
    %c0_347 = arith.constant 0 : index
    %924 = vector.load %arg11[%c6_346, %c0_347] : memref<8x128xf32, #tpu.memory_space<vmem>>, vector<1x128xf32>
    tpu.vector_store %arg11[%c6_346, %c0_347], %922 {strides = array<i32>} : memref<8x128xf32, #tpu.memory_space<vmem>>, vector<1x128xf32>,
    %cst_348 = arith.constant 0.000000e+00 : f32
    %925 = vector.broadcast %cst_348 : f32 to vector<1x128xf32>
    %cst_349 = arith.constant 0xFF800000 : f32
    %926 = vector.broadcast %cst_349 : f32 to vector<1x128xf32>
    %c112_i32 = arith.constant 112 : i32
    %927 = arith.addi %0, %c112_i32 : i32
    %c0_i32_350 = arith.constant 0 : i32
    %928 = arith.addi %927, %c0_i32_350 : i32
    %929 = arith.index_cast %928 : i32 to index
    %930 = memref.load %arg1[%929] : memref<256xi32, #tpu.memory_space<smem>>
    %931 = arith.index_cast %930 : i32 to index
    %c0_351 = arith.constant 0 : index
    %932 = vector.load %arg3[%931, %c0_351] : memref<104x128xf32, #tpu.memory_space<vmem>>, vector<1x128xf32>
    %933 = arith.addf %925, %932 : vector<1x128xf32>
    %934 = arith.maximumf %926, %932 : vector<1x128xf32>
    %c112_i32_352 = arith.constant 112 : i32
    %935 = arith.addi %0, %c112_i32_352 : i32
    %c1_i32_353 = arith.constant 1 : i32
    %936 = arith.addi %935, %c1_i32_353 : i32
    %937 = arith.index_cast %936 : i32 to index
    %938 = memref.load %arg1[%937] : memref<256xi32, #tpu.memory_space<smem>>
    %939 = arith.index_cast %938 : i32 to index
    %c0_354 = arith.constant 0 : index
    %940 = vector.load %arg3[%939, %c0_354] : memref<104x128xf32, #tpu.memory_space<vmem>>, vector<1x128xf32>
    %941 = arith.addf %933, %940 : vector<1x128xf32>
    %942 = arith.maximumf %934, %940 : vector<1x128xf32>
    %c112_i32_355 = arith.constant 112 : i32
    %943 = arith.addi %0, %c112_i32_355 : i32
    %c2_i32_356 = arith.constant 2 : i32
    %944 = arith.addi %943, %c2_i32_356 : i32
    %945 = arith.index_cast %944 : i32 to index
    %946 = memref.load %arg1[%945] : memref<256xi32, #tpu.memory_space<smem>>
    %947 = arith.index_cast %946 : i32 to index
    %c0_357 = arith.constant 0 : index
    %948 = vector.load %arg3[%947, %c0_357] : memref<104x128xf32, #tpu.memory_space<vmem>>, vector<1x128xf32>
    %949 = arith.addf %941, %948 : vector<1x128xf32>
    %950 = arith.maximumf %942, %948 : vector<1x128xf32>
    %c112_i32_358 = arith.constant 112 : i32
    %951 = arith.addi %0, %c112_i32_358 : i32
    %c3_i32_359 = arith.constant 3 : i32
    %952 = arith.addi %951, %c3_i32_359 : i32
    %953 = arith.index_cast %952 : i32 to index
    %954 = memref.load %arg1[%953] : memref<256xi32, #tpu.memory_space<smem>>
    %955 = arith.index_cast %954 : i32 to index
    %c0_360 = arith.constant 0 : index
    %956 = vector.load %arg3[%955, %c0_360] : memref<104x128xf32, #tpu.memory_space<vmem>>, vector<1x128xf32>
    %957 = arith.addf %949, %956 : vector<1x128xf32>
    %958 = arith.maximumf %950, %956 : vector<1x128xf32>
    %c112_i32_361 = arith.constant 112 : i32
    %959 = arith.addi %0, %c112_i32_361 : i32
    %c4_i32_362 = arith.constant 4 : i32
    %960 = arith.addi %959, %c4_i32_362 : i32
    %961 = arith.index_cast %960 : i32 to index
    %962 = memref.load %arg1[%961] : memref<256xi32, #tpu.memory_space<smem>>
    %963 = arith.index_cast %962 : i32 to index
    %c0_363 = arith.constant 0 : index
    %964 = vector.load %arg3[%963, %c0_363] : memref<104x128xf32, #tpu.memory_space<vmem>>, vector<1x128xf32>
    %965 = arith.addf %957, %964 : vector<1x128xf32>
    %966 = arith.maximumf %958, %964 : vector<1x128xf32>
    %c112_i32_364 = arith.constant 112 : i32
    %967 = arith.addi %0, %c112_i32_364 : i32
    %c5_i32_365 = arith.constant 5 : i32
    %968 = arith.addi %967, %c5_i32_365 : i32
    %969 = arith.index_cast %968 : i32 to index
    %970 = memref.load %arg1[%969] : memref<256xi32, #tpu.memory_space<smem>>
    %971 = arith.index_cast %970 : i32 to index
    %c0_366 = arith.constant 0 : index
    %972 = vector.load %arg3[%971, %c0_366] : memref<104x128xf32, #tpu.memory_space<vmem>>, vector<1x128xf32>
    %973 = arith.addf %965, %972 : vector<1x128xf32>
    %974 = arith.maximumf %966, %972 : vector<1x128xf32>
    %c112_i32_367 = arith.constant 112 : i32
    %975 = arith.addi %0, %c112_i32_367 : i32
    %c6_i32_368 = arith.constant 6 : i32
    %976 = arith.addi %975, %c6_i32_368 : i32
    %977 = arith.index_cast %976 : i32 to index
    %978 = memref.load %arg1[%977] : memref<256xi32, #tpu.memory_space<smem>>
    %979 = arith.index_cast %978 : i32 to index
    %c0_369 = arith.constant 0 : index
    %980 = vector.load %arg3[%979, %c0_369] : memref<104x128xf32, #tpu.memory_space<vmem>>, vector<1x128xf32>
    %981 = arith.addf %973, %980 : vector<1x128xf32>
    %982 = arith.maximumf %974, %980 : vector<1x128xf32>
    %c112_i32_370 = arith.constant 112 : i32
    %983 = arith.addi %0, %c112_i32_370 : i32
    %c7_i32_371 = arith.constant 7 : i32
    %984 = arith.addi %983, %c7_i32_371 : i32
    %985 = arith.index_cast %984 : i32 to index
    %986 = memref.load %arg1[%985] : memref<256xi32, #tpu.memory_space<smem>>
    %987 = arith.index_cast %986 : i32 to index
    %c0_372 = arith.constant 0 : index
    %988 = vector.load %arg3[%987, %c0_372] : memref<104x128xf32, #tpu.memory_space<vmem>>, vector<1x128xf32>
    %989 = arith.addf %981, %988 : vector<1x128xf32>
    %990 = arith.maximumf %982, %988 : vector<1x128xf32>
    %c112_i32_373 = arith.constant 112 : i32
    %991 = arith.addi %0, %c112_i32_373 : i32
    %c8_i32_374 = arith.constant 8 : i32
    %992 = arith.addi %991, %c8_i32_374 : i32
    %993 = arith.index_cast %992 : i32 to index
    %994 = memref.load %arg1[%993] : memref<256xi32, #tpu.memory_space<smem>>
    %995 = arith.index_cast %994 : i32 to index
    %c0_375 = arith.constant 0 : index
    %996 = vector.load %arg3[%995, %c0_375] : memref<104x128xf32, #tpu.memory_space<vmem>>, vector<1x128xf32>
    %997 = arith.addf %989, %996 : vector<1x128xf32>
    %998 = arith.maximumf %990, %996 : vector<1x128xf32>
    %c112_i32_376 = arith.constant 112 : i32
    %999 = arith.addi %0, %c112_i32_376 : i32
    %c9_i32_377 = arith.constant 9 : i32
    %1000 = arith.addi %999, %c9_i32_377 : i32
    %1001 = arith.index_cast %1000 : i32 to index
    %1002 = memref.load %arg1[%1001] : memref<256xi32, #tpu.memory_space<smem>>
    %1003 = arith.index_cast %1002 : i32 to index
    %c0_378 = arith.constant 0 : index
    %1004 = vector.load %arg3[%1003, %c0_378] : memref<104x128xf32, #tpu.memory_space<vmem>>, vector<1x128xf32>
    %1005 = arith.addf %997, %1004 : vector<1x128xf32>
    %1006 = arith.maximumf %998, %1004 : vector<1x128xf32>
    %c112_i32_379 = arith.constant 112 : i32
    %1007 = arith.addi %0, %c112_i32_379 : i32
    %c10_i32_380 = arith.constant 10 : i32
    %1008 = arith.addi %1007, %c10_i32_380 : i32
    %1009 = arith.index_cast %1008 : i32 to index
    %1010 = memref.load %arg1[%1009] : memref<256xi32, #tpu.memory_space<smem>>
    %1011 = arith.index_cast %1010 : i32 to index
    %c0_381 = arith.constant 0 : index
    %1012 = vector.load %arg3[%1011, %c0_381] : memref<104x128xf32, #tpu.memory_space<vmem>>, vector<1x128xf32>
    %1013 = arith.addf %1005, %1012 : vector<1x128xf32>
    %1014 = arith.maximumf %1006, %1012 : vector<1x128xf32>
    %c112_i32_382 = arith.constant 112 : i32
    %1015 = arith.addi %0, %c112_i32_382 : i32
    %c11_i32_383 = arith.constant 11 : i32
    %1016 = arith.addi %1015, %c11_i32_383 : i32
    %1017 = arith.index_cast %1016 : i32 to index
    %1018 = memref.load %arg1[%1017] : memref<256xi32, #tpu.memory_space<smem>>
    %1019 = arith.index_cast %1018 : i32 to index
    %c0_384 = arith.constant 0 : index
    %1020 = vector.load %arg3[%1019, %c0_384] : memref<104x128xf32, #tpu.memory_space<vmem>>, vector<1x128xf32>
    %1021 = arith.addf %1013, %1020 : vector<1x128xf32>
    %1022 = arith.maximumf %1014, %1020 : vector<1x128xf32>
    %c112_i32_385 = arith.constant 112 : i32
    %1023 = arith.addi %0, %c112_i32_385 : i32
    %c12_i32_386 = arith.constant 12 : i32
    %1024 = arith.addi %1023, %c12_i32_386 : i32
    %1025 = arith.index_cast %1024 : i32 to index
    %1026 = memref.load %arg1[%1025] : memref<256xi32, #tpu.memory_space<smem>>
    %1027 = arith.index_cast %1026 : i32 to index
    %c0_387 = arith.constant 0 : index
    %1028 = vector.load %arg3[%1027, %c0_387] : memref<104x128xf32, #tpu.memory_space<vmem>>, vector<1x128xf32>
    %1029 = arith.addf %1021, %1028 : vector<1x128xf32>
    %1030 = arith.maximumf %1022, %1028 : vector<1x128xf32>
    %c112_i32_388 = arith.constant 112 : i32
    %1031 = arith.addi %0, %c112_i32_388 : i32
    %c13_i32_389 = arith.constant 13 : i32
    %1032 = arith.addi %1031, %c13_i32_389 : i32
    %1033 = arith.index_cast %1032 : i32 to index
    %1034 = memref.load %arg1[%1033] : memref<256xi32, #tpu.memory_space<smem>>
    %1035 = arith.index_cast %1034 : i32 to index
    %c0_390 = arith.constant 0 : index
    %1036 = vector.load %arg3[%1035, %c0_390] : memref<104x128xf32, #tpu.memory_space<vmem>>, vector<1x128xf32>
    %1037 = arith.addf %1029, %1036 : vector<1x128xf32>
    %1038 = arith.maximumf %1030, %1036 : vector<1x128xf32>
    %c112_i32_391 = arith.constant 112 : i32
    %1039 = arith.addi %0, %c112_i32_391 : i32
    %c14_i32_392 = arith.constant 14 : i32
    %1040 = arith.addi %1039, %c14_i32_392 : i32
    %1041 = arith.index_cast %1040 : i32 to index
    %1042 = memref.load %arg1[%1041] : memref<256xi32, #tpu.memory_space<smem>>
    %1043 = arith.index_cast %1042 : i32 to index
    %c0_393 = arith.constant 0 : index
    %1044 = vector.load %arg3[%1043, %c0_393] : memref<104x128xf32, #tpu.memory_space<vmem>>, vector<1x128xf32>
    %1045 = arith.addf %1037, %1044 : vector<1x128xf32>
    %1046 = arith.maximumf %1038, %1044 : vector<1x128xf32>
    %c112_i32_394 = arith.constant 112 : i32
    %1047 = arith.addi %0, %c112_i32_394 : i32
    %c15_i32_395 = arith.constant 15 : i32
    %1048 = arith.addi %1047, %c15_i32_395 : i32
    %1049 = arith.index_cast %1048 : i32 to index
    %1050 = memref.load %arg1[%1049] : memref<256xi32, #tpu.memory_space<smem>>
    %1051 = arith.index_cast %1050 : i32 to index
    %c0_396 = arith.constant 0 : index
    %1052 = vector.load %arg3[%1051, %c0_396] : memref<104x128xf32, #tpu.memory_space<vmem>>, vector<1x128xf32>
    %1053 = arith.addf %1045, %1052 : vector<1x128xf32>
    %1054 = arith.maximumf %1046, %1052 : vector<1x128xf32>
    %c7 = arith.constant 7 : index
    %c0_397 = arith.constant 0 : index
    %1055 = vector.load %arg10[%c7, %c0_397] : memref<8x128xf32, #tpu.memory_space<vmem>>, vector<1x128xf32>
    tpu.vector_store %arg10[%c7, %c0_397], %1053 {strides = array<i32>} : memref<8x128xf32, #tpu.memory_space<vmem>>, vector<1x128xf32>,
    %c7_398 = arith.constant 7 : index
    %c0_399 = arith.constant 0 : index
    %1056 = vector.load %arg11[%c7_398, %c0_399] : memref<8x128xf32, #tpu.memory_space<vmem>>, vector<1x128xf32>
    tpu.vector_store %arg11[%c7_398, %c0_399], %1054 {strides = array<i32>} : memref<8x128xf32, #tpu.memory_space<vmem>>, vector<1x128xf32>,
    %c0_400 = arith.constant 0 : index
    %c0_401 = arith.constant 0 : index
    %1057 = vector.load %arg10[%c0_400, %c0_401] : memref<8x128xf32, #tpu.memory_space<vmem>>, vector<8x128xf32>
    %c0_402 = arith.constant 0 : index
    %c0_403 = arith.constant 0 : index
    %1058 = vector.load %arg2[%c0_402, %c0_403] : memref<8x1xf32, #tpu.memory_space<vmem>>, vector<8x1xf32>
    %1059 = vector.broadcast %1058 : vector<8x1xf32> to vector<8x128xf32>
    %1060 = arith.mulf %1057, %1059 : vector<8x128xf32>
    %c0_404 = arith.constant 0 : index
    %c0_405 = arith.constant 0 : index
    %1061 = vector.load %arg4[%c0_404, %c0_405] : memref<128x128xf32, #tpu.memory_space<vmem>>, vector<128x128xf32>
    %cst_406 = arith.constant dense<0.000000e+00> : vector<8x128xf32>
    %1062 = tpu.matmul %1060, %1061, %cst_406 {dimension_numbers = #tpu.dot_dimension_numbers<[1], [0], [0], [1], [0, 0, 1, 1], [], []>} : vector<8x128xf32>, vector<128x128xf32>, vector<8x128xf32> -> vector<8x128xf32>
    %c0_407 = arith.constant 0 : index
    %c0_408 = arith.constant 0 : index
    %1063 = vector.load %arg11[%c0_407, %c0_408] : memref<8x128xf32, #tpu.memory_space<vmem>>, vector<8x128xf32>
    %c0_409 = arith.constant 0 : index
    %c0_410 = arith.constant 0 : index
    %1064 = vector.load %arg5[%c0_409, %c0_410] : memref<128x128xf32, #tpu.memory_space<vmem>>, vector<128x128xf32>
    %cst_411 = arith.constant dense<0.000000e+00> : vector<8x128xf32>
    %1065 = tpu.matmul %1063, %1064, %cst_411 {dimension_numbers = #tpu.dot_dimension_numbers<[1], [0], [0], [1], [0, 0, 1, 1], [], []>} : vector<8x128xf32>, vector<128x128xf32>, vector<8x128xf32> -> vector<8x128xf32>
    %1066 = arith.addf %1062, %1065 : vector<8x128xf32>
    %c0_412 = arith.constant 0 : index
    %c0_413 = arith.constant 0 : index
    %1067 = vector.load %arg6[%c0_412, %c0_413] : memref<1x128xf32, #tpu.memory_space<vmem>>, vector<1x128xf32>
    %1068 = vector.broadcast %1067 : vector<1x128xf32> to vector<8x128xf32>
    %1069 = arith.addf %1066, %1068 : vector<8x128xf32>
    %cst_414 = arith.constant 0.000000e+00 : f32
    %1070 = vector.broadcast %cst_414 : f32 to vector<8x128xf32>
    %1071 = arith.maximumf %1069, %1070 : vector<8x128xf32>
    %c0_415 = arith.constant 0 : index
    %c0_416 = arith.constant 0 : index
    %1072 = vector.load %arg7[%c0_415, %c0_416] : memref<128x128xf32, #tpu.memory_space<vmem>>, vector<128x128xf32>
    %cst_417 = arith.constant dense<0.000000e+00> : vector<8x128xf32>
    %1073 = tpu.matmul %1071, %1072, %cst_417 {dimension_numbers = #tpu.dot_dimension_numbers<[1], [0], [0], [1], [0, 0, 1, 1], [], []>} : vector<8x128xf32>, vector<128x128xf32>, vector<8x128xf32> -> vector<8x128xf32>
    %c0_418 = arith.constant 0 : index
    %c0_419 = arith.constant 0 : index
    %1074 = vector.load %arg8[%c0_418, %c0_419] : memref<1x128xf32, #tpu.memory_space<vmem>>, vector<1x128xf32>
    %1075 = vector.broadcast %1074 : vector<1x128xf32> to vector<8x128xf32>
    %1076 = arith.addf %1073, %1075 : vector<8x128xf32>
    %c0_420 = arith.constant 0 : index
    %c0_421 = arith.constant 0 : index
    %1077 = vector.load %arg9[%c0_420, %c0_421] : memref<8x128xf32, #tpu.memory_space<vmem>>, vector<8x128xf32>
    tpu.vector_store %arg9[%c0_420, %c0_421], %1076 {strides = array<i32>} : memref<8x128xf32, #tpu.memory_space<vmem>>, vector<8x128xf32>,
    return
  }
  func.func @transform_0(%arg0: i32, %arg1: memref<256xi32, #tpu.memory_space<smem>>) -> (i32, i32) {
    %c0_i32 = arith.constant 0 : i32
    %c0_i32_0 = arith.constant 0 : i32
    return %arg0, %c0_i32 : i32, i32
  }
  func.func @transform_1(%arg0: i32, %arg1: memref<256xi32, #tpu.memory_space<smem>>) -> (i32, i32) {
    %c0_i32 = arith.constant 0 : i32
    %c0_i32_0 = arith.constant 0 : i32
    %c0_i32_1 = arith.constant 0 : i32
    return %c0_i32, %c0_i32_0 : i32, i32
  }
  func.func @transform_2(%arg0: i32, %arg1: memref<256xi32, #tpu.memory_space<smem>>) -> (i32, i32) {
    %c0_i32 = arith.constant 0 : i32
    %c0_i32_0 = arith.constant 0 : i32
    %c0_i32_1 = arith.constant 0 : i32
    return %c0_i32, %c0_i32_0 : i32, i32
  }
  func.func @transform_3(%arg0: i32, %arg1: memref<256xi32, #tpu.memory_space<smem>>) -> (i32, i32) {
    %c0_i32 = arith.constant 0 : i32
    %c0_i32_0 = arith.constant 0 : i32
    %c0_i32_1 = arith.constant 0 : i32
    return %c0_i32, %c0_i32_0 : i32, i32
  }
  func.func @transform_4(%arg0: i32, %arg1: memref<256xi32, #tpu.memory_space<smem>>) -> (i32, i32) {
    %c0_i32 = arith.constant 0 : i32
    %c0_i32_0 = arith.constant 0 : i32
    %c0_i32_1 = arith.constant 0 : i32
    return %c0_i32, %c0_i32_0 : i32, i32
  }
  func.func @transform_5(%arg0: i32, %arg1: memref<256xi32, #tpu.memory_space<smem>>) -> (i32, i32) {
    %c0_i32 = arith.constant 0 : i32
    %c0_i32_0 = arith.constant 0 : i32
    %c0_i32_1 = arith.constant 0 : i32
    return %c0_i32, %c0_i32_0 : i32, i32
  }
  func.func @transform_6(%arg0: i32, %arg1: memref<256xi32, #tpu.memory_space<smem>>) -> (i32, i32) {
    %c0_i32 = arith.constant 0 : i32
    %c0_i32_0 = arith.constant 0 : i32
    %c0_i32_1 = arith.constant 0 : i32
    return %c0_i32, %c0_i32_0 : i32, i32
  }
  func.func @transform_7(%arg0: i32, %arg1: memref<256xi32, #tpu.memory_space<smem>>) -> (i32, i32) {
    %c0_i32 = arith.constant 0 : i32
    %c0_i32_0 = arith.constant 0 : i32
    return %arg0, %c0_i32 : i32, i32
  }
}

</mosaic_0001>

<llo_original>
// kernel: tpu_custom_call.1
$region0: #{tpu_custom_call.1}
  #allocation0 [shape = 'u32[]', space=smem, size = 0x4, offset = 0x4, fixed_abs, tag = 'smem constant byte address 0x4 - core index']
  #allocation1 [shape = 'u32[72,128]{1,0:T(1,128)}', space=vmem, size = 0x9000, scoped, tag = 'internal scratch']
  #allocation2 [shape = 'f32[8,128]{1,0:T(8,128)}', space=vmem, size = 0x1000, scoped, tag = 'scratch operand']
  #allocation3 [shape = 'f32[8,128]{1,0:T(8,128)}', space=vmem, size = 0x1000, scoped, tag = 'scratch operand']
  #allocation4 [shape = 's32[1]{0}', space=sflag, size = 0x4, scoped, tag = 'scoped memory for tpu_custom_call.1']
  #allocation5 [shape = 'u8[1024]{0}', space=smem, size = 0x400, scoped, tag = 'prefetched SMEM operand 0']
  %s0 = inlined_call_operand.vmem [shape: s32[256], index: 0, kind: input, shape index: {}]
  %s1 = inlined_call_operand.vmem [shape: f32[16,1], index: 1, kind: input, shape index: {}]
  %s2 = inlined_call_operand.hbm [shape: f32[104,128], index: 2, kind: input, shape index: {}]
  %s3 = inlined_call_operand.hbm [shape: f32[128,128], index: 3, kind: input, shape index: {}]
  %s4 = inlined_call_operand.hbm [shape: f32[128,128], index: 4, kind: input, shape index: {}]
  %s5 = inlined_call_operand.vmem [shape: f32[1,128], index: 5, kind: input, shape index: {}]
  %s6 = inlined_call_operand.hbm [shape: f32[128,128], index: 6, kind: input, shape index: {}]
  %s7 = inlined_call_operand.vmem [shape: f32[1,128], index: 7, kind: input, shape index: {}]
  %s8 = inlined_call_operand.hbm [shape: f32[16,128], index: 8, kind: output, shape index: {}]
  %s9 = sld [smem:[#allocation0]]
  $region77: #{tpu_custom_call.1} parent=0
    _
  %s11 = ssub.s32 1, %s9
  %s12 = scalar_select 0, %s11, %s9
  %s14 = sshll.u32 %s0, 4
  %s15 = int_to_ptr.vmem [resolvable:$true] %s14
  %17 = dma.vmem_to_smem %s15, 32, [#allocation5], [#allocation4]
  %19 = dma.done [#allocation4], 32
  %20 = sfence
  $region1: #{tpu_custom_call.1} parent=0
    #allocation6 [shape = 'u8[53248]{0}', space=vmem, size = 0xd000, scoped, tag = 'input window, operand 2, single buffered']
    #allocation7 [shape = 's32[2]{0}', space=sflag, size = 0x8, scoped, tag = 'scoped memory for tpu_custom_call.1']
    #allocation8 [shape = 's32[2]{0}', space=sflag, size = 0x8, scoped, tag = 'scoped memory for tpu_custom_call.1']
    #allocation9 [shape = 'u8[65536]{0}', space=vmem, size = 0x10000, scoped, tag = 'input window, operand 3, single buffered']
    #allocation10 [shape = 's32[1]{0}', space=sflag, size = 0x4, scoped, tag = 'scoped memory for tpu_custom_call.1']
    #allocation11 [shape = 'u8[65536]{0}', space=vmem, size = 0x10000, scoped, tag = 'input window, operand 4, single buffered']
    #allocation12 [shape = 'u8[65536]{0}', space=vmem, size = 0x10000, scoped, tag = 'input window, operand 6, single buffered']
    #allocation13 [shape = 's32[1]{0}', space=sflag, size = 0x4, scoped, tag = 'scoped memory for tpu_custom_call.1']
    #allocation14 [shape = 'u8[8192]{0}', space=vmem, size = 0x2000, scoped, tag = 'output window, operand 0']
    %21 = vsyncpa [#allocation7], 0
    %22 = vsyncpa [#allocation10], 0
    %23 = vsyncpa [#allocation13], 0
    %24 = vsyncpa [#allocation8], 0
    %s25 = scalar_lea.sflag [#allocation8], 1
    %26 = vsyncpa %s25, 0
    loop: start=0, step=1, limit=4
    $region2: #{tpu_custom_call.1} parent=1 // loop_pre_header
      _
    $region3: #{tpu_custom_call.1} parent=1 // loop_header
      %s28 = sphi 0, %s32
      %p29 = scmp.ge.s32.totalorder %s28, 4
      %s38 = sphi 0, %s40
      %s41 = sphi 0, %s38
      %s42 = sphi 0, %s41
      %s58 = sphi 0, %s42
      %s62 = sphi 0, %s62
      %s64 = sphi 0, %s62
      %s65 = sphi 0, %s64
      %s79 = sphi 0, %s65
      %s83 = sphi 0, %s83
      %s85 = sphi 0, %s83
      %s86 = sphi 0, %s85
      %s100 = sphi 0, %s86
      %s104 = sphi 0, %s104
      %s106 = sphi 0, %s104
      %s107 = sphi 0, %s106
      %s121 = sphi 0, %s107
      %s125 = sphi 0, %s125
      %s127 = sphi 0, %s125
      %s128 = sphi 0, %s127
      %s142 = sphi 0, %s128
      %s146 = sphi 0, %s146
      %s148 = sphi 0, %s146
      %s149 = sphi 0, %s148
      %s163 = sphi 0, %s149
      %s167 = sphi 0, %s167
      %s169 = sphi 0, %s167
      %s170 = sphi 0, %s169
      %s184 = sphi 0, %s170
      %s190 = sphi 0, %s192
      %s193 = sphi 0, %s190
      %s194 = sphi 0, %s193
      %s210 = sphi 0, %s194
    $region4: #{tpu_custom_call.1} parent=1 // loop_header_branch
      %31 = sbr.rel (%p29) target = $region8
    $region5: #{tpu_custom_call.1} parent=1 // loop_body
      %s33 = ssub.s32 %s28, 1
      %s34 = ssub.s32 %s28, 2
      %s35 = sadd.s32 %s28, 1
      %s36 = ssub.s32 %s28, %s35
      %p37 = scmp.eq.s32.totalorder %s36, 0
      %s39 = sadd.s32 %s38, 1
      %s40 = scalar_select %p37, %s38, %s39
      %p43 = pneg %p37
      %p44 = scmp.eq.s32.totalorder %s28, 1
      %p45 = por %p43, %p44
      %p46 = scmp.ne.s32.totalorder %s38, %s41
      %p47 = scmp.eq.s32.totalorder %s28, 0
      %p48 = por %p46, %p47
      %p49 = scmp.ne.s32.totalorder %s38, %s41
      %p50 = scmp.eq.s32.totalorder %s33, 1
      %p51 = por %p49, %p50
      %p52 = scmp.ne.s32.totalorder %s41, %s42
      %p53 = scmp.eq.s32.totalorder %s33, 0
      %p54 = por %p52, %p53
      %p55 = scmp.ne.s32.totalorder %s41, %s42
      %p56 = scmp.eq.s32.totalorder %s34, 1
      %p57 = por %p55, %p56
      %p59 = scmp.ne.s32.totalorder %s42, %s58
      %p60 = scmp.eq.s32.totalorder %s34, 0
      %p61 = por %p59, %p60
      %s63 = sadd.s32 %s62, 1
      %p66 = scmp.eq.s32.totalorder %s28, 1
      %p67 = scmp.ne.s32.totalorder %s62, %s64
      %p68 = scmp.eq.s32.totalorder %s28, 0
      %p69 = por %p67, %p68
      %p70 = scmp.ne.s32.totalorder %s62, %s64
      %p71 = scmp.eq.s32.totalorder %s33, 1
      %p72 = por %p70, %p71
      %p73 = scmp.ne.s32.totalorder %s64, %s65
      %p74 = scmp.eq.s32.totalorder %s33, 0
      %p75 = por %p73, %p74
      %p76 = scmp.ne.s32.totalorder %s64, %s65
      %p77 = scmp.eq.s32.totalorder %s34, 1
      %p78 = por %p76, %p77
      %p80 = scmp.ne.s32.totalorder %s65, %s79
      %p81 = scmp.eq.s32.totalorder %s34, 0
      %p82 = por %p80, %p81
      %s84 = sadd.s32 %s83, 1
      %p87 = scmp.eq.s32.totalorder %s28, 1
      %p88 = scmp.ne.s32.totalorder %s83, %s85
      %p89 = scmp.eq.s32.totalorder %s28, 0
      %p90 = por %p88, %p89
      %p91 = scmp.ne.s32.totalorder %s83, %s85
      %p92 = scmp.eq.s32.totalorder %s33, 1
      %p93 = por %p91, %p92
      %p94 = scmp.ne.s32.totalorder %s85, %s86
      %p95 = scmp.eq.s32.totalorder %s33, 0
      %p96 = por %p94, %p95
      %p97 = scmp.ne.s32.totalorder %s85, %s86
      %p98 = scmp.eq.s32.totalorder %s34, 1
      %p99 = por %p97, %p98
      %p101 = scmp.ne.s32.totalorder %s86, %s100
      %p102 = scmp.eq.s32.totalorder %s34, 0
      %p103 = por %p101, %p102
      %s105 = sadd.s32 %s104, 1
      %p108 = scmp.eq.s32.totalorder %s28, 1
      %p109 = scmp.ne.s32.totalorder %s104, %s106
      %p110 = scmp.eq.s32.totalorder %s28, 0
      %p111 = por %p109, %p110
      %p112 = scmp.ne.s32.totalorder %s104, %s106
      %p113 = scmp.eq.s32.totalorder %s33, 1
      %p114 = por %p112, %p113
      %p115 = scmp.ne.s32.totalorder %s106, %s107
      %p116 = scmp.eq.s32.totalorder %s33, 0
      %p117 = por %p115, %p116
      %p118 = scmp.ne.s32.totalorder %s106, %s107
      %p119 = scmp.eq.s32.totalorder %s34, 1
      %p120 = por %p118, %p119
      %p122 = scmp.ne.s32.totalorder %s107, %s121
      %p123 = scmp.eq.s32.totalorder %s34, 0
      %p124 = por %p122, %p123
      %s126 = sadd.s32 %s125, 1
      %p129 = scmp.eq.s32.totalorder %s28, 1
      %p130 = scmp.ne.s32.totalorder %s125, %s127
      %p131 = scmp.eq.s32.totalorder %s28, 0
      %p132 = por %p130, %p131
      %p133 = scmp.ne.s32.totalorder %s125, %s127
      %p134 = scmp.eq.s32.totalorder %s33, 1
      %p135 = por %p133, %p134
      %p136 = scmp.ne.s32.totalorder %s127, %s128
      %p137 = scmp.eq.s32.totalorder %s33, 0
      %p138 = por %p136, %p137
      %p139 = scmp.ne.s32.totalorder %s127, %s128
      %p140 = scmp.eq.s32.totalorder %s34, 1
      %p141 = por %p139, %p140
      %p143 = scmp.ne.s32.totalorder %s128, %s142
      %p144 = scmp.eq.s32.totalorder %s34, 0
      %p145 = por %p143, %p144
      %s147 = sadd.s32 %s146, 1
      %p150 = scmp.eq.s32.totalorder %s28, 1
      %p151 = scmp.ne.s32.totalorder %s146, %s148
      %p152 = scmp.eq.s32.totalorder %s28, 0
      %p153 = por %p151, %p152
      %p154 = scmp.ne.s32.totalorder %s146, %s148
      %p155 = scmp.eq.s32.totalorder %s33, 1
      %p156 = por %p154, %p155
      %p157 = scmp.ne.s32.totalorder %s148, %s149
      %p158 = scmp.eq.s32.totalorder %s33, 0
      %p159 = por %p157, %p158
      %p160 = scmp.ne.s32.totalorder %s148, %s149
      %p161 = scmp.eq.s32.totalorder %s34, 1
      %p162 = por %p160, %p161
      %p164 = scmp.ne.s32.totalorder %s149, %s163
      %p165 = scmp.eq.s32.totalorder %s34, 0
      %p166 = por %p164, %p165
      %s168 = sadd.s32 %s167, 1
      %p171 = scmp.eq.s32.totalorder %s28, 1
      %p172 = scmp.ne.s32.totalorder %s167, %s169
      %p173 = scmp.eq.s32.totalorder %s28, 0
      %p174 = por %p172, %p173
      %p175 = scmp.ne.s32.totalorder %s167, %s169
      %p176 = scmp.eq.s32.totalorder %s33, 1
      %p177 = por %p175, %p176
      %p178 = scmp.ne.s32.totalorder %s169, %s170
      %p179 = scmp.eq.s32.totalorder %s33, 0
      %p180 = por %p178, %p179
      %p181 = scmp.ne.s32.totalorder %s169, %s170
      %p182 = scmp.eq.s32.totalorder %s34, 1
      %p183 = por %p181, %p182
      %p185 = scmp.ne.s32.totalorder %s170, %s184
      %p186 = scmp.eq.s32.totalorder %s34, 0
      %p187 = por %p185, %p186
      %s188 = ssub.s32 %s28, %s35
      %p189 = scmp.eq.s32.totalorder %s188, 0
      %s191 = sadd.s32 %s190, 1
      %s192 = scalar_select %p189, %s190, %s191
      %p195 = pneg %p189
      %p196 = scmp.eq.s32.totalorder %s28, 1
      %p197 = por %p195, %p196
      %p198 = scmp.ne.s32.totalorder %s190, %s193
      %p199 = scmp.eq.s32.totalorder %s28, 0
      %p200 = por %p198, %p199
      %p201 = scmp.ne.s32.totalorder %s190, %s193
      %p202 = scmp.eq.s32.totalorder %s33, 1
      %p203 = por %p201, %p202
      %p204 = scmp.ne.s32.totalorder %s193, %s194
      %p205 = scmp.eq.s32.totalorder %s33, 0
      %p206 = por %p204, %p205
      %p207 = scmp.ne.s32.totalorder %s193, %s194
      %p208 = scmp.eq.s32.totalorder %s34, 1
      %p209 = por %p207, %p208
      %p211 = scmp.ne.s32.totalorder %s194, %s210
      %p212 = scmp.eq.s32.totalorder %s34, 0
      %p213 = por %p211, %p212
      %p214 = scmp.le.s32.totalorder 1, %s28
      %p215 = scmp.lt.s32.totalorder %s28, 3
      %p216 = pnand %p214, %p215
      %p217 = pneg %p216
      // Predicated region
      $region9: #{tpu_custom_call.1} parent=5 // pred_check
        _
      $region10: #{tpu_custom_call.1} parent=5 // pred_check_branch
        %219 = sbr.rel (%p216) target = $region12
      $region11: #{tpu_custom_call.1} parent=5 // pred_region
        %s220 = ssub.s32 %s28, 1
        // Predicated region
        $region13: #{tpu_custom_call.1} parent=11 // pred_check
          %p221 = pneg %p75
        $region14: #{tpu_custom_call.1} parent=11 // pred_check_branch
          %223 = sbr.rel (%p221) target = $region16
        $region15: #{tpu_custom_call.1} parent=11 // pred_region
          %225 = vsyncadd [#allocation7], 0
          %s226 = sshll.u32 %s2, 4
          %s227 = int_to_ptr.hbm [resolvable:$true] %s226
          %s228 = sshll.u32 [#allocation6], 4
          %s229 = int_to_ptr.vmem [resolvable:$true] %s228
          %234 = dma.hbm_to_vmem [thread:$0]  %s227, 1664, %s229, [#allocation7], 128, 128, 8
        $region16: #{tpu_custom_call.1} parent=11 // pred_fallthru
          _
        // Predicated region
        $region17: #{tpu_custom_call.1} parent=11 // pred_check
          %p235 = pneg %p96
        $region18: #{tpu_custom_call.1} parent=11 // pred_check_branch
          %237 = sbr.rel (%p235) target = $region20
        $region19: #{tpu_custom_call.1} parent=11 // pred_region
          %239 = vsyncadd [#allocation10], 0
          %s240 = sshll.u32 %s3, 4
          %s241 = int_to_ptr.hbm [resolvable:$true] %s240
          %s242 = sshll.u32 [#allocation9], 4
          %s243 = int_to_ptr.vmem [resolvable:$true] %s242
          %248 = dma.hbm_to_vmem [thread:$0]  %s241, 2048, %s243, [#allocation10], 128, 128, 8
        $region20: #{tpu_custom_call.1} parent=11 // pred_fallthru
          _
        // Predicated region
        $region21: #{tpu_custom_call.1} parent=11 // pred_check
          %p249 = pneg %p117
        $region22: #{tpu_custom_call.1} parent=11 // pred_check_branch
          %251 = sbr.rel (%p249) target = $region24
        $region23: #{tpu_custom_call.1} parent=11 // pred_region
          %253 = vsyncadd [#allocation10], 0
          %s254 = sshll.u32 %s4, 4
          %s255 = int_to_ptr.hbm [resolvable:$true] %s254
          %s256 = sshll.u32 [#allocation11], 4
          %s257 = int_to_ptr.vmem [resolvable:$true] %s256
          %262 = dma.hbm_to_vmem [thread:$0]  %s255, 2048, %s257, [#allocation10], 128, 128, 8
        $region24: #{tpu_custom_call.1} parent=11 // pred_fallthru
          _
        // Predicated region
        $region25: #{tpu_custom_call.1} parent=11 // pred_check
          %p263 = pneg %p138
        $region26: #{tpu_custom_call.1} parent=11 // pred_check_branch
          %265 = sbr.rel (%p263) target = $region28
        $region27: #{tpu_custom_call.1} parent=11 // pred_region
          _
        $region28: #{tpu_custom_call.1} parent=11 // pred_fallthru
          _
        // Predicated region
        $region29: #{tpu_custom_call.1} parent=11 // pred_check
          %p266 = pneg %p159
        $region30: #{tpu_custom_call.1} parent=11 // pred_check_branch
          %268 = sbr.rel (%p266) target = $region32
        $region31: #{tpu_custom_call.1} parent=11 // pred_region
          %270 = vsyncadd [#allocation13], 0
          %s271 = sshll.u32 %s6, 4
          %s272 = int_to_ptr.hbm [resolvable:$true] %s271
          %s273 = sshll.u32 [#allocation12], 4
          %s274 = int_to_ptr.vmem [resolvable:$true] %s273
          %279 = dma.hbm_to_vmem [thread:$0]  %s272, 2048, %s274, [#allocation13], 128, 128, 8
        $region32: #{tpu_custom_call.1} parent=11 // pred_fallthru
          _
        // Predicated region
        $region33: #{tpu_custom_call.1} parent=11 // pred_check
          %p280 = pneg %p180
        $region34: #{tpu_custom_call.1} parent=11 // pred_check_branch
          %282 = sbr.rel (%p280) target = $region36
        $region35: #{tpu_custom_call.1} parent=11 // pred_region
          _
        $region36: #{tpu_custom_call.1} parent=11 // pred_fallthru
          _
      $region12: #{tpu_custom_call.1} parent=5 // pred_fallthru
        _
      %p283 = scmp.lt.s32.totalorder %s28, 2
      // Predicated region
      $region37: #{tpu_custom_call.1} parent=5 // pred_check
        %p284 = pneg %p283
      $region38: #{tpu_custom_call.1} parent=5 // pred_check_branch
        %286 = sbr.rel (%p284) target = $region40
      $region39: #{tpu_custom_call.1} parent=5 // pred_region
        // Predicated region
        $region41: #{tpu_custom_call.1} parent=39 // pred_check
          %p287 = pneg %p48
        $region42: #{tpu_custom_call.1} parent=39 // pred_check_branch
          %289 = sbr.rel (%p287) target = $region44
        $region43: #{tpu_custom_call.1} parent=39 // pred_region
          %p290 = scmp.lt.s32.totalorder %s28, 1
          %s291 = scalar_select %p290, %s28, 1
          %s292 = smul.addr %s291, 8
          %s293 = scalar_lea.vmem %s1, %s292
        $region44: #{tpu_custom_call.1} parent=39 // pred_fallthru
          _
      $region40: #{tpu_custom_call.1} parent=5 // pred_fallthru
        _
      %p294 = scmp.le.s32.totalorder 1, %s28
      %p295 = scmp.lt.s32.totalorder %s28, 3
      %p296 = pnand %p294, %p295
      %p297 = pneg %p296
      // Predicated region
      $region45: #{tpu_custom_call.1} parent=5 // pred_check
        _
      $region46: #{tpu_custom_call.1} parent=5 // pred_check_branch
        %299 = sbr.rel (%p296) target = $region48
      $region47: #{tpu_custom_call.1} parent=5 // pred_region
        %s300 = ssub.s32 %s28, 1
        // Predicated region
        $region49: #{tpu_custom_call.1} parent=47 // pred_check
          %p301 = pneg %p75
        $region50: #{tpu_custom_call.1} parent=47 // pred_check_branch
          %303 = sbr.rel (%p301) target = $region52
        $region51: #{tpu_custom_call.1} parent=47 // pred_region
          %305 = dma.done [#allocation7], 1664
        $region52: #{tpu_custom_call.1} parent=47 // pred_fallthru
          _
        // Predicated region
        $region53: #{tpu_custom_call.1} parent=47 // pred_check
          %p306 = pneg %p96
        $region54: #{tpu_custom_call.1} parent=47 // pred_check_branch
          %308 = sbr.rel (%p306) target = $region56
        $region55: #{tpu_custom_call.1} parent=47 // pred_region
          %310 = dma.done [#allocation10], 2048
        $region56: #{tpu_custom_call.1} parent=47 // pred_fallthru
          _
        // Predicated region
        $region57: #{tpu_custom_call.1} parent=47 // pred_check
          %p311 = pneg %p117
        $region58: #{tpu_custom_call.1} parent=47 // pred_check_branch
          %313 = sbr.rel (%p311) target = $region60
        $region59: #{tpu_custom_call.1} parent=47 // pred_region
          %315 = dma.done [#allocation10], 2048
        $region60: #{tpu_custom_call.1} parent=47 // pred_fallthru
          _
        // Predicated region
        $region61: #{tpu_custom_call.1} parent=47 // pred_check
          %p316 = pneg %p159
        $region62: #{tpu_custom_call.1} parent=47 // pred_check_branch
          %318 = sbr.rel (%p316) target = $region64
        $region63: #{tpu_custom_call.1} parent=47 // pred_region
          %320 = dma.done [#allocation13], 2048
        $region64: #{tpu_custom_call.1} parent=47 // pred_fallthru
          _
        %p321 = scmp.lt.s32.totalorder %s33, 1
        %s322 = scalar_select %p321, %s33, 1
        %s323 = smul.addr %s322, 8
        %s324 = scalar_lea.vmem %s1, %s323
        %p325 = pneg %p54
        %p326 = pneg %p51
        %p327 = pneg %p75
        %p328 = pneg %p72
        %p329 = pneg %p96
        %p330 = pneg %p93
        %p331 = pneg %p117
        %p332 = pneg %p114
        %p333 = pneg %p138
        %p334 = pneg %p135
        %p335 = pneg %p159
        %p336 = pneg %p156
        %p337 = pneg %p180
        %p338 = pneg %p177
        %p339 = pneg %p206
        %p340 = pneg %p203
        %s341 = sand.u32 %s193, 1
        %s342 = scalar_lea.sflag [#allocation8], %s341
        %s343 = sand.u32 %s193, 1
        %s344 = smul.addr %s343, 8
        %s345 = scalar_lea.vmem [#allocation14], %s344
        %p346 = scmp.lt.s32.totalorder %s33, 1
        %s347 = scalar_select %p346, %s33, 1
        %s348 = smul.addr %s347, 8
        %s349 = scalar_lea.vmem %s1, %s348
        %s350 = smul.u32 %s33, 128
        %s351 = sld [smem:[#allocation5 + %s350]]
        %s352 = scalar_lea.vmem [#allocation6], %s351
        %v353 = vld [vmem:[%s352] sm:$0x1]
        %v354 = vadd.f32 %v353, 0.0
        %s355 = sadd.s32 %s350, 1
        %s356 = sld [smem:[#allocation5 + %s355]]
        %s357 = scalar_lea.vmem [#allocation6], %s356
        %v358 = vld [vmem:[%s357] sm:$0x1]
        %v359 = vadd.f32 %v354, %v358
        %v360 = vmax.f32 %v353, %v358
        %s361 = sadd.s32 %s350, 2
        %s362 = sld [smem:[#allocation5 + %s361]]
        %s363 = scalar_lea.vmem [#allocation6], %s362
        %v364 = vld [vmem:[%s363] sm:$0x1]
        %v365 = vadd.f32 %v359, %v364
        %v366 = vmax.f32 %v360, %v364
        %s367 = sadd.s32 %s350, 3
        %s368 = sld [smem:[#allocation5 + %s367]]
        %s369 = scalar_lea.vmem [#allocation6], %s368
        %v370 = vld [vmem:[%s369] sm:$0x1]
        %v371 = vadd.f32 %v365, %v370
        %v372 = vmax.f32 %v366, %v370
        %s373 = sadd.s32 %s350, 4
        %s374 = sld [smem:[#allocation5 + %s373]]
        %s375 = scalar_lea.vmem [#allocation6], %s374
        %v376 = vld [vmem:[%s375] sm:$0x1]
        %v377 = vadd.f32 %v371, %v376
        %v378 = vmax.f32 %v372, %v376
        %s379 = sadd.s32 %s350, 5
        %s380 = sld [smem:[#allocation5 + %s379]]
        %s381 = scalar_lea.vmem [#allocation6], %s380
        %v382 = vld [vmem:[%s381] sm:$0x1]
        %v383 = vadd.f32 %v377, %v382
        %v384 = vmax.f32 %v378, %v382
        %s385 = sadd.s32 %s350, 6
        %s386 = sld [smem:[#allocation5 + %s385]]
        %s387 = scalar_lea.vmem [#allocation6], %s386
        %v388 = vld [vmem:[%s387] sm:$0x1]
        %v389 = vadd.f32 %v383, %v388
        %v390 = vmax.f32 %v384, %v388
        %s391 = sadd.s32 %s350, 7
        %s392 = sld [smem:[#allocation5 + %s391]]
        %s393 = scalar_lea.vmem [#allocation6], %s392
        %v394 = vld [vmem:[%s393] sm:$0x1]
        %v395 = vadd.f32 %v389, %v394
        %v396 = vmax.f32 %v390, %v394
        %s397 = sadd.s32 %s350, 8
        %s398 = sld [smem:[#allocation5 + %s397]]
        %s399 = scalar_lea.vmem [#allocation6], %s398
        %v400 = vld [vmem:[%s399] sm:$0x1]
        %v401 = vadd.f32 %v395, %v400
        %v402 = vmax.f32 %v396, %v400
        %s403 = sadd.s32 %s350, 9
        %s404 = sld [smem:[#allocation5 + %s403]]
        %s405 = scalar_lea.vmem [#allocation6], %s404
        %v406 = vld [vmem:[%s405] sm:$0x1]
        %v407 = vadd.f32 %v401, %v406
        %v408 = vmax.f32 %v402, %v406
        %s409 = sadd.s32 %s350, 10
        %s410 = sld [smem:[#allocation5 + %s409]]
        %s411 = scalar_lea.vmem [#allocation6], %s410
        %v412 = vld [vmem:[%s411] sm:$0x1]
        %v413 = vadd.f32 %v407, %v412
        %v414 = vmax.f32 %v408, %v412
        %s415 = sadd.s32 %s350, 11
        %s416 = sld [smem:[#allocation5 + %s415]]
        %s417 = scalar_lea.vmem [#allocation6], %s416
        %v418 = vld [vmem:[%s417] sm:$0x1]
        %v419 = vadd.f32 %v413, %v418
        %v420 = vmax.f32 %v414, %v418
        %s421 = sadd.s32 %s350, 12
        %s422 = sld [smem:[#allocation5 + %s421]]
        %s423 = scalar_lea.vmem [#allocation6], %s422
        %v424 = vld [vmem:[%s423] sm:$0x1]
        %v425 = vadd.f32 %v419, %v424
        %v426 = vmax.f32 %v420, %v424
        %s427 = sadd.s32 %s350, 13
        %s428 = sld [smem:[#allocation5 + %s427]]
        %s429 = scalar_lea.vmem [#allocation6], %s428
        %v430 = vld [vmem:[%s429] sm:$0x1]
        %v431 = vadd.f32 %v425, %v430
        %v432 = vmax.f32 %v426, %v430
        %s433 = sadd.s32 %s350, 14
        %s434 = sld [smem:[#allocation5 + %s433]]
        %s435 = scalar_lea.vmem [#allocation6], %s434
        %v436 = vld [vmem:[%s435] sm:$0x1]
        %v437 = vadd.f32 %v431, %v436
        %v438 = vmax.f32 %v432, %v436
        %s439 = sadd.s32 %s350, 15
        %s440 = sld [smem:[#allocation5 + %s439]]
        %s441 = scalar_lea.vmem [#allocation6], %s440
        %v442 = vld [vmem:[%s441] sm:$0x1]
        %v443 = vadd.f32 %v437, %v442
        %v444 = vmax.f32 %v438, %v442
        %445 = vst [vmem:[#allocation2] sm:$0x1] %v443
        %446 = vst [vmem:[#allocation3] sm:$0x1] %v444
        %s447 = sadd.s32 %s350, 16
        %s448 = sld [smem:[#allocation5 + %s447]]
        %s449 = scalar_lea.vmem [#allocation6], %s448
        %v450 = vld [vmem:[%s449] sm:$0x1]
        %v451 = vadd.f32 %v450, 0.0
        %s452 = sadd.s32 %s350, 17
        %s453 = sld [smem:[#allocation5 + %s452]]
        %s454 = scalar_lea.vmem [#allocation6], %s453
        %v455 = vld [vmem:[%s454] sm:$0x1]
        %v456 = vadd.f32 %v451, %v455
        %v457 = vmax.f32 %v450, %v455
        %s458 = sadd.s32 %s350, 18
        %s459 = sld [smem:[#allocation5 + %s458]]
        %s460 = scalar_lea.vmem [#allocation6], %s459
        %v461 = vld [vmem:[%s460] sm:$0x1]
        %v462 = vadd.f32 %v456, %v461
        %v463 = vmax.f32 %v457, %v461
        %s464 = sadd.s32 %s350, 19
        %s465 = sld [smem:[#allocation5 + %s464]]
        %s466 = scalar_lea.vmem [#allocation6], %s465
        %v467 = vld [vmem:[%s466] sm:$0x1]
        %v468 = vadd.f32 %v462, %v467
        %v469 = vmax.f32 %v463, %v467
        %s470 = sadd.s32 %s350, 20
        %s471 = sld [smem:[#allocation5 + %s470]]
        %s472 = scalar_lea.vmem [#allocation6], %s471
        %v473 = vld [vmem:[%s472] sm:$0x1]
        %v474 = vadd.f32 %v468, %v473
        %v475 = vmax.f32 %v469, %v473
        %s476 = sadd.s32 %s350, 21
        %s477 = sld [smem:[#allocation5 + %s476]]
        %s478 = scalar_lea.vmem [#allocation6], %s477
        %v479 = vld [vmem:[%s478] sm:$0x1]
        %v480 = vadd.f32 %v474, %v479
        %v481 = vmax.f32 %v475, %v479
        %s482 = sadd.s32 %s350, 22
        %s483 = sld [smem:[#allocation5 + %s482]]
        %s484 = scalar_lea.vmem [#allocation6], %s483
        %v485 = vld [vmem:[%s484] sm:$0x1]
        %v486 = vadd.f32 %v480, %v485
        %v487 = vmax.f32 %v481, %v485
        %s488 = sadd.s32 %s350, 23
        %s489 = sld [smem:[#allocation5 + %s488]]
        %s490 = scalar_lea.vmem [#allocation6], %s489
        %v491 = vld [vmem:[%s490] sm:$0x1]
        %v492 = vadd.f32 %v486, %v491
        %v493 = vmax.f32 %v487, %v491
        %s494 = sadd.s32 %s350, 24
        %s495 = sld [smem:[#allocation5 + %s494]]
        %s496 = scalar_lea.vmem [#allocation6], %s495
        %v497 = vld [vmem:[%s496] sm:$0x1]
        %v498 = vadd.f32 %v492, %v497
        %v499 = vmax.f32 %v493, %v497
        %s500 = sadd.s32 %s350, 25
        %s501 = sld [smem:[#allocation5 + %s500]]
        %s502 = scalar_lea.vmem [#allocation6], %s501
        %v503 = vld [vmem:[%s502] sm:$0x1]
        %v504 = vadd.f32 %v498, %v503
        %v505 = vmax.f32 %v499, %v503
        %s506 = sadd.s32 %s350, 26
        %s507 = sld [smem:[#allocation5 + %s506]]
        %s508 = scalar_lea.vmem [#allocation6], %s507
        %v509 = vld [vmem:[%s508] sm:$0x1]
        %v510 = vadd.f32 %v504, %v509
        %v511 = vmax.f32 %v505, %v509
        %s512 = sadd.s32 %s350, 27
        %s513 = sld [smem:[#allocation5 + %s512]]
        %s514 = scalar_lea.vmem [#allocation6], %s513
        %v515 = vld [vmem:[%s514] sm:$0x1]
        %v516 = vadd.f32 %v510, %v515
        %v517 = vmax.f32 %v511, %v515
        %s518 = sadd.s32 %s350, 28
        %s519 = sld [smem:[#allocation5 + %s518]]
        %s520 = scalar_lea.vmem [#allocation6], %s519
        %v521 = vld [vmem:[%s520] sm:$0x1]
        %v522 = vadd.f32 %v516, %v521
        %v523 = vmax.f32 %v517, %v521
        %s524 = sadd.s32 %s350, 29
        %s525 = sld [smem:[#allocation5 + %s524]]
        %s526 = scalar_lea.vmem [#allocation6], %s525
        %v527 = vld [vmem:[%s526] sm:$0x1]
        %v528 = vadd.f32 %v522, %v527
        %v529 = vmax.f32 %v523, %v527
        %s530 = sadd.s32 %s350, 30
        %s531 = sld [smem:[#allocation5 + %s530]]
        %s532 = scalar_lea.vmem [#allocation6], %s531
        %v533 = vld [vmem:[%s532] sm:$0x1]
        %v534 = vadd.f32 %v528, %v533
        %v535 = vmax.f32 %v529, %v533
        %s536 = sadd.s32 %s350, 31
        %s537 = sld [smem:[#allocation5 + %s536]]
        %s538 = scalar_lea.vmem [#allocation6], %s537
        %v539 = vld [vmem:[%s538] sm:$0x1]
        %v540 = vadd.f32 %v534, %v539
        %v541 = vmax.f32 %v535, %v539
        %542 = vst [vmem:[#allocation2 + $0x1] sm:$0x1] %v540
        %543 = vst [vmem:[#allocation3 + $0x1] sm:$0x1] %v541
        %s544 = sadd.s32 %s350, 32
        %s545 = sld [smem:[#allocation5 + %s544]]
        %s546 = scalar_lea.vmem [#allocation6], %s545
        %v547 = vld [vmem:[%s546] sm:$0x1]
        %v548 = vadd.f32 %v547, 0.0
        %s549 = sadd.s32 %s350, 33
        %s550 = sld [smem:[#allocation5 + %s549]]
        %s551 = scalar_lea.vmem [#allocation6], %s550
        %v552 = vld [vmem:[%s551] sm:$0x1]
        %v553 = vadd.f32 %v548, %v552
        %v554 = vmax.f32 %v547, %v552
        %s555 = sadd.s32 %s350, 34
        %s556 = sld [smem:[#allocation5 + %s555]]
        %s557 = scalar_lea.vmem [#allocation6], %s556
        %v558 = vld [vmem:[%s557] sm:$0x1]
        %v559 = vadd.f32 %v553, %v558
        %v560 = vmax.f32 %v554, %v558
        %s561 = sadd.s32 %s350, 35
        %s562 = sld [smem:[#allocation5 + %s561]]
        %s563 = scalar_lea.vmem [#allocation6], %s562
        %v564 = vld [vmem:[%s563] sm:$0x1]
        %v565 = vadd.f32 %v559, %v564
        %v566 = vmax.f32 %v560, %v564
        %s567 = sadd.s32 %s350, 36
        %s568 = sld [smem:[#allocation5 + %s567]]
        %s569 = scalar_lea.vmem [#allocation6], %s568
        %v570 = vld [vmem:[%s569] sm:$0x1]
        %v571 = vadd.f32 %v565, %v570
        %v572 = vmax.f32 %v566, %v570
        %s573 = sadd.s32 %s350, 37
        %s574 = sld [smem:[#allocation5 + %s573]]
        %s575 = scalar_lea.vmem [#allocation6], %s574
        %v576 = vld [vmem:[%s575] sm:$0x1]
        %v577 = vadd.f32 %v571, %v576
        %v578 = vmax.f32 %v572, %v576
        %s579 = sadd.s32 %s350, 38
        %s580 = sld [smem:[#allocation5 + %s579]]
        %s581 = scalar_lea.vmem [#allocation6], %s580
        %v582 = vld [vmem:[%s581] sm:$0x1]
        %v583 = vadd.f32 %v577, %v582
        %v584 = vmax.f32 %v578, %v582
        %s585 = sadd.s32 %s350, 39
        %s586 = sld [smem:[#allocation5 + %s585]]
        %s587 = scalar_lea.vmem [#allocation6], %s586
        %v588 = vld [vmem:[%s587] sm:$0x1]
        %v589 = vadd.f32 %v583, %v588
        %v590 = vmax.f32 %v584, %v588
        %s591 = sadd.s32 %s350, 40
        %s592 = sld [smem:[#allocation5 + %s591]]
        %s593 = scalar_lea.vmem [#allocation6], %s592
        %v594 = vld [vmem:[%s593] sm:$0x1]
        %v595 = vadd.f32 %v589, %v594
        %v596 = vmax.f32 %v590, %v594
        %s597 = sadd.s32 %s350, 41
        %s598 = sld [smem:[#allocation5 + %s597]]
        %s599 = scalar_lea.vmem [#allocation6], %s598
        %v600 = vld [vmem:[%s599] sm:$0x1]
        %v601 = vadd.f32 %v595, %v600
        %v602 = vmax.f32 %v596, %v600
        %s603 = sadd.s32 %s350, 42
        %s604 = sld [smem:[#allocation5 + %s603]]
        %s605 = scalar_lea.vmem [#allocation6], %s604
        %v606 = vld [vmem:[%s605] sm:$0x1]
        %v607 = vadd.f32 %v601, %v606
        %v608 = vmax.f32 %v602, %v606
        %s609 = sadd.s32 %s350, 43
        %s610 = sld [smem:[#allocation5 + %s609]]
        %s611 = scalar_lea.vmem [#allocation6], %s610
        %v612 = vld [vmem:[%s611] sm:$0x1]
        %v613 = vadd.f32 %v607, %v612
        %v614 = vmax.f32 %v608, %v612
        %s615 = sadd.s32 %s350, 44
        %s616 = sld [smem:[#allocation5 + %s615]]
        %s617 = scalar_lea.vmem [#allocation6], %s616
        %v618 = vld [vmem:[%s617] sm:$0x1]
        %v619 = vadd.f32 %v613, %v618
        %v620 = vmax.f32 %v614, %v618
        %s621 = sadd.s32 %s350, 45
        %s622 = sld [smem:[#allocation5 + %s621]]
        %s623 = scalar_lea.vmem [#allocation6], %s622
        %v624 = vld [vmem:[%s623] sm:$0x1]
        %v625 = vadd.f32 %v619, %v624
        %v626 = vmax.f32 %v620, %v624
        %s627 = sadd.s32 %s350, 46
        %s628 = sld [smem:[#allocation5 + %s627]]
        %s629 = scalar_lea.vmem [#allocation6], %s628
        %v630 = vld [vmem:[%s629] sm:$0x1]
        %v631 = vadd.f32 %v625, %v630
        %v632 = vmax.f32 %v626, %v630
        %s633 = sadd.s32 %s350, 47
        %s634 = sld [smem:[#allocation5 + %s633]]
        %s635 = scalar_lea.vmem [#allocation6], %s634
        %v636 = vld [vmem:[%s635] sm:$0x1]
        %v637 = vadd.f32 %v631, %v636
        %v638 = vmax.f32 %v632, %v636
        %639 = vst [vmem:[#allocation2 + $0x2] sm:$0x1] %v637
        %640 = vst [vmem:[#allocation3 + $0x2] sm:$0x1] %v638
        %s641 = sadd.s32 %s350, 48
        %s642 = sld [smem:[#allocation5 + %s641]]
        %s643 = scalar_lea.vmem [#allocation6], %s642
        %v644 = vld [vmem:[%s643] sm:$0x1]
        %v645 = vadd.f32 %v644, 0.0
        %s646 = sadd.s32 %s350, 49
        %s647 = sld [smem:[#allocation5 + %s646]]
        %s648 = scalar_lea.vmem [#allocation6], %s647
        %v649 = vld [vmem:[%s648] sm:$0x1]
        %v650 = vadd.f32 %v645, %v649
        %v651 = vmax.f32 %v644, %v649
        %s652 = sadd.s32 %s350, 50
        %s653 = sld [smem:[#allocation5 + %s652]]
        %s654 = scalar_lea.vmem [#allocation6], %s653
        %v655 = vld [vmem:[%s654] sm:$0x1]
        %v656 = vadd.f32 %v650, %v655
        %v657 = vmax.f32 %v651, %v655
        %s658 = sadd.s32 %s350, 51
        %s659 = sld [smem:[#allocation5 + %s658]]
        %s660 = scalar_lea.vmem [#allocation6], %s659
        %v661 = vld [vmem:[%s660] sm:$0x1]
        %v662 = vadd.f32 %v656, %v661
        %v663 = vmax.f32 %v657, %v661
        %s664 = sadd.s32 %s350, 52
        %s665 = sld [smem:[#allocation5 + %s664]]
        %s666 = scalar_lea.vmem [#allocation6], %s665
        %v667 = vld [vmem:[%s666] sm:$0x1]
        %v668 = vadd.f32 %v662, %v667
        %v669 = vmax.f32 %v663, %v667
        %s670 = sadd.s32 %s350, 53
        %s671 = sld [smem:[#allocation5 + %s670]]
        %s672 = scalar_lea.vmem [#allocation6], %s671
        %v673 = vld [vmem:[%s672] sm:$0x1]
        %v674 = vadd.f32 %v668, %v673
        %v675 = vmax.f32 %v669, %v673
        %s676 = sadd.s32 %s350, 54
        %s677 = sld [smem:[#allocation5 + %s676]]
        %s678 = scalar_lea.vmem [#allocation6], %s677
        %v679 = vld [vmem:[%s678] sm:$0x1]
        %v680 = vadd.f32 %v674, %v679
        %v681 = vmax.f32 %v675, %v679
        %s682 = sadd.s32 %s350, 55
        %s683 = sld [smem:[#allocation5 + %s682]]
        %s684 = scalar_lea.vmem [#allocation6], %s683
        %v685 = vld [vmem:[%s684] sm:$0x1]
        %v686 = vadd.f32 %v680, %v685
        %v687 = vmax.f32 %v681, %v685
        %s688 = sadd.s32 %s350, 56
        %s689 = sld [smem:[#allocation5 + %s688]]
        %s690 = scalar_lea.vmem [#allocation6], %s689
        %v691 = vld [vmem:[%s690] sm:$0x1]
        %v692 = vadd.f32 %v686, %v691
        %v693 = vmax.f32 %v687, %v691
        %s694 = sadd.s32 %s350, 57
        %s695 = sld [smem:[#allocation5 + %s694]]
        %s696 = scalar_lea.vmem [#allocation6], %s695
        %v697 = vld [vmem:[%s696] sm:$0x1]
        %v698 = vadd.f32 %v692, %v697
        %v699 = vmax.f32 %v693, %v697
        %s700 = sadd.s32 %s350, 58
        %s701 = sld [smem:[#allocation5 + %s700]]
        %s702 = scalar_lea.vmem [#allocation6], %s701
        %v703 = vld [vmem:[%s702] sm:$0x1]
        %v704 = vadd.f32 %v698, %v703
        %v705 = vmax.f32 %v699, %v703
        %s706 = sadd.s32 %s350, 59
        %s707 = sld [smem:[#allocation5 + %s706]]
        %s708 = scalar_lea.vmem [#allocation6], %s707
        %v709 = vld [vmem:[%s708] sm:$0x1]
        %v710 = vadd.f32 %v704, %v709
        %v711 = vmax.f32 %v705, %v709
        %s712 = sadd.s32 %s350, 60
        %s713 = sld [smem:[#allocation5 + %s712]]
        %s714 = scalar_lea.vmem [#allocation6], %s713
        %v715 = vld [vmem:[%s714] sm:$0x1]
        %v716 = vadd.f32 %v710, %v715
        %v717 = vmax.f32 %v711, %v715
        %s718 = sadd.s32 %s350, 61
        %s719 = sld [smem:[#allocation5 + %s718]]
        %s720 = scalar_lea.vmem [#allocation6], %s719
        %v721 = vld [vmem:[%s720] sm:$0x1]
        %v722 = vadd.f32 %v716, %v721
        %v723 = vmax.f32 %v717, %v721
        %s724 = sadd.s32 %s350, 62
        %s725 = sld [smem:[#allocation5 + %s724]]
        %s726 = scalar_lea.vmem [#allocation6], %s725
        %v727 = vld [vmem:[%s726] sm:$0x1]
        %v728 = vadd.f32 %v722, %v727
        %v729 = vmax.f32 %v723, %v727
        %s730 = sadd.s32 %s350, 63
        %s731 = sld [smem:[#allocation5 + %s730]]
        %s732 = scalar_lea.vmem [#allocation6], %s731
        %v733 = vld [vmem:[%s732] sm:$0x1]
        %v734 = vadd.f32 %v728, %v733
        %v735 = vmax.f32 %v729, %v733
        %736 = vst [vmem:[#allocation2 + $0x3] sm:$0x1] %v734
        %737 = vst [vmem:[#allocation3 + $0x3] sm:$0x1] %v735
        %s738 = sadd.s32 %s350, 64
        %s739 = sld [smem:[#allocation5 + %s738]]
        %s740 = scalar_lea.vmem [#allocation6], %s739
        %v741 = vld [vmem:[%s740] sm:$0x1]
        %v742 = vadd.f32 %v741, 0.0
        %s743 = sadd.s32 %s350, 65
        %s744 = sld [smem:[#allocation5 + %s743]]
        %s745 = scalar_lea.vmem [#allocation6], %s744
        %v746 = vld [vmem:[%s745] sm:$0x1]
        %v747 = vadd.f32 %v742, %v746
        %v748 = vmax.f32 %v741, %v746
        %s749 = sadd.s32 %s350, 66
        %s750 = sld [smem:[#allocation5 + %s749]]
        %s751 = scalar_lea.vmem [#allocation6], %s750
        %v752 = vld [vmem:[%s751] sm:$0x1]
        %v753 = vadd.f32 %v747, %v752
        %v754 = vmax.f32 %v748, %v752
        %s755 = sadd.s32 %s350, 67
        %s756 = sld [smem:[#allocation5 + %s755]]
        %s757 = scalar_lea.vmem [#allocation6], %s756
        %v758 = vld [vmem:[%s757] sm:$0x1]
        %v759 = vadd.f32 %v753, %v758
        %v760 = vmax.f32 %v754, %v758
        %s761 = sadd.s32 %s350, 68
        %s762 = sld [smem:[#allocation5 + %s761]]
        %s763 = scalar_lea.vmem [#allocation6], %s762
        %v764 = vld [vmem:[%s763] sm:$0x1]
        %v765 = vadd.f32 %v759, %v764
        %v766 = vmax.f32 %v760, %v764
        %s767 = sadd.s32 %s350, 69
        %s768 = sld [smem:[#allocation5 + %s767]]
        %s769 = scalar_lea.vmem [#allocation6], %s768
        %v770 = vld [vmem:[%s769] sm:$0x1]
        %v771 = vadd.f32 %v765, %v770
        %v772 = vmax.f32 %v766, %v770
        %s773 = sadd.s32 %s350, 70
        %s774 = sld [smem:[#allocation5 + %s773]]
        %s775 = scalar_lea.vmem [#allocation6], %s774
        %v776 = vld [vmem:[%s775] sm:$0x1]
        %v777 = vadd.f32 %v771, %v776
        %v778 = vmax.f32 %v772, %v776
        %s779 = sadd.s32 %s350, 71
        %s780 = sld [smem:[#allocation5 + %s779]]
        %s781 = scalar_lea.vmem [#allocation6], %s780
        %v782 = vld [vmem:[%s781] sm:$0x1]
        %v783 = vadd.f32 %v777, %v782
        %v784 = vmax.f32 %v778, %v782
        %s785 = sadd.s32 %s350, 72
        %s786 = sld [smem:[#allocation5 + %s785]]
        %s787 = scalar_lea.vmem [#allocation6], %s786
        %v788 = vld [vmem:[%s787] sm:$0x1]
        %v789 = vadd.f32 %v783, %v788
        %v790 = vmax.f32 %v784, %v788
        %s791 = sadd.s32 %s350, 73
        %s792 = sld [smem:[#allocation5 + %s791]]
        %s793 = scalar_lea.vmem [#allocation6], %s792
        %v794 = vld [vmem:[%s793] sm:$0x1]
        %v795 = vadd.f32 %v789, %v794
        %v796 = vmax.f32 %v790, %v794
        %s797 = sadd.s32 %s350, 74
        %s798 = sld [smem:[#allocation5 + %s797]]
        %s799 = scalar_lea.vmem [#allocation6], %s798
        %v800 = vld [vmem:[%s799] sm:$0x1]
        %v801 = vadd.f32 %v795, %v800
        %v802 = vmax.f32 %v796, %v800
        %s803 = sadd.s32 %s350, 75
        %s804 = sld [smem:[#allocation5 + %s803]]
        %s805 = scalar_lea.vmem [#allocation6], %s804
        %v806 = vld [vmem:[%s805] sm:$0x1]
        %v807 = vadd.f32 %v801, %v806
        %v808 = vmax.f32 %v802, %v806
        %s809 = sadd.s32 %s350, 76
        %s810 = sld [smem:[#allocation5 + %s809]]
        %s811 = scalar_lea.vmem [#allocation6], %s810
        %v812 = vld [vmem:[%s811] sm:$0x1]
        %v813 = vadd.f32 %v807, %v812
        %v814 = vmax.f32 %v808, %v812
        %s815 = sadd.s32 %s350, 77
        %s816 = sld [smem:[#allocation5 + %s815]]
        %s817 = scalar_lea.vmem [#allocation6], %s816
        %v818 = vld [vmem:[%s817] sm:$0x1]
        %v819 = vadd.f32 %v813, %v818
        %v820 = vmax.f32 %v814, %v818
        %s821 = sadd.s32 %s350, 78
        %s822 = sld [smem:[#allocation5 + %s821]]
        %s823 = scalar_lea.vmem [#allocation6], %s822
        %v824 = vld [vmem:[%s823] sm:$0x1]
        %v825 = vadd.f32 %v819, %v824
        %v826 = vmax.f32 %v820, %v824
        %s827 = sadd.s32 %s350, 79
        %s828 = sld [smem:[#allocation5 + %s827]]
        %s829 = scalar_lea.vmem [#allocation6], %s828
        %v830 = vld [vmem:[%s829] sm:$0x1]
        %v831 = vadd.f32 %v825, %v830
        %v832 = vmax.f32 %v826, %v830
        %833 = vst [vmem:[#allocation2 + $0x4] sm:$0x1] %v831
        %834 = vst [vmem:[#allocation3 + $0x4] sm:$0x1] %v832
        %s835 = sadd.s32 %s350, 80
        %s836 = sld [smem:[#allocation5 + %s835]]
        %s837 = scalar_lea.vmem [#allocation6], %s836
        %v838 = vld [vmem:[%s837] sm:$0x1]
        %v839 = vadd.f32 %v838, 0.0
        %s840 = sadd.s32 %s350, 81
        %s841 = sld [smem:[#allocation5 + %s840]]
        %s842 = scalar_lea.vmem [#allocation6], %s841
        %v843 = vld [vmem:[%s842] sm:$0x1]
        %v844 = vadd.f32 %v839, %v843
        %v845 = vmax.f32 %v838, %v843
        %s846 = sadd.s32 %s350, 82
        %s847 = sld [smem:[#allocation5 + %s846]]
        %s848 = scalar_lea.vmem [#allocation6], %s847
        %v849 = vld [vmem:[%s848] sm:$0x1]
        %v850 = vadd.f32 %v844, %v849
        %v851 = vmax.f32 %v845, %v849
        %s852 = sadd.s32 %s350, 83
        %s853 = sld [smem:[#allocation5 + %s852]]
        %s854 = scalar_lea.vmem [#allocation6], %s853
        %v855 = vld [vmem:[%s854] sm:$0x1]
        %v856 = vadd.f32 %v850, %v855
        %v857 = vmax.f32 %v851, %v855
        %s858 = sadd.s32 %s350, 84
        %s859 = sld [smem:[#allocation5 + %s858]]
        %s860 = scalar_lea.vmem [#allocation6], %s859
        %v861 = vld [vmem:[%s860] sm:$0x1]
        %v862 = vadd.f32 %v856, %v861
        %v863 = vmax.f32 %v857, %v861
        %s864 = sadd.s32 %s350, 85
        %s865 = sld [smem:[#allocation5 + %s864]]
        %s866 = scalar_lea.vmem [#allocation6], %s865
        %v867 = vld [vmem:[%s866] sm:$0x1]
        %v868 = vadd.f32 %v862, %v867
        %v869 = vmax.f32 %v863, %v867
        %s870 = sadd.s32 %s350, 86
        %s871 = sld [smem:[#allocation5 + %s870]]
        %s872 = scalar_lea.vmem [#allocation6], %s871
        %v873 = vld [vmem:[%s872] sm:$0x1]
        %v874 = vadd.f32 %v868, %v873
        %v875 = vmax.f32 %v869, %v873
        %s876 = sadd.s32 %s350, 87
        %s877 = sld [smem:[#allocation5 + %s876]]
        %s878 = scalar_lea.vmem [#allocation6], %s877
        %v879 = vld [vmem:[%s878] sm:$0x1]
        %v880 = vadd.f32 %v874, %v879
        %v881 = vmax.f32 %v875, %v879
        %s882 = sadd.s32 %s350, 88
        %s883 = sld [smem:[#allocation5 + %s882]]
        %s884 = scalar_lea.vmem [#allocation6], %s883
        %v885 = vld [vmem:[%s884] sm:$0x1]
        %v886 = vadd.f32 %v880, %v885
        %v887 = vmax.f32 %v881, %v885
        %s888 = sadd.s32 %s350, 89
        %s889 = sld [smem:[#allocation5 + %s888]]
        %s890 = scalar_lea.vmem [#allocation6], %s889
        %v891 = vld [vmem:[%s890] sm:$0x1]
        %v892 = vadd.f32 %v886, %v891
        %v893 = vmax.f32 %v887, %v891
        %s894 = sadd.s32 %s350, 90
        %s895 = sld [smem:[#allocation5 + %s894]]
        %s896 = scalar_lea.vmem [#allocation6], %s895
        %v897 = vld [vmem:[%s896] sm:$0x1]
        %v898 = vadd.f32 %v892, %v897
        %v899 = vmax.f32 %v893, %v897
        %s900 = sadd.s32 %s350, 91
        %s901 = sld [smem:[#allocation5 + %s900]]
        %s902 = scalar_lea.vmem [#allocation6], %s901
        %v903 = vld [vmem:[%s902] sm:$0x1]
        %v904 = vadd.f32 %v898, %v903
        %v905 = vmax.f32 %v899, %v903
        %s906 = sadd.s32 %s350, 92
        %s907 = sld [smem:[#allocation5 + %s906]]
        %s908 = scalar_lea.vmem [#allocation6], %s907
        %v909 = vld [vmem:[%s908] sm:$0x1]
        %v910 = vadd.f32 %v904, %v909
        %v911 = vmax.f32 %v905, %v909
        %s912 = sadd.s32 %s350, 93
        %s913 = sld [smem:[#allocation5 + %s912]]
        %s914 = scalar_lea.vmem [#allocation6], %s913
        %v915 = vld [vmem:[%s914] sm:$0x1]
        %v916 = vadd.f32 %v910, %v915
        %v917 = vmax.f32 %v911, %v915
        %s918 = sadd.s32 %s350, 94
        %s919 = sld [smem:[#allocation5 + %s918]]
        %s920 = scalar_lea.vmem [#allocation6], %s919
        %v921 = vld [vmem:[%s920] sm:$0x1]
        %v922 = vadd.f32 %v916, %v921
        %v923 = vmax.f32 %v917, %v921
        %s924 = sadd.s32 %s350, 95
        %s925 = sld [smem:[#allocation5 + %s924]]
        %s926 = scalar_lea.vmem [#allocation6], %s925
        %v927 = vld [vmem:[%s926] sm:$0x1]
        %v928 = vadd.f32 %v922, %v927
        %v929 = vmax.f32 %v923, %v927
        %930 = vst [vmem:[#allocation2 + $0x5] sm:$0x1] %v928
        %931 = vst [vmem:[#allocation3 + $0x5] sm:$0x1] %v929
        %s932 = sadd.s32 %s350, 96
        %s933 = sld [smem:[#allocation5 + %s932]]
        %s934 = scalar_lea.vmem [#allocation6], %s933
        %v935 = vld [vmem:[%s934] sm:$0x1]
        %v936 = vadd.f32 %v935, 0.0
        %s937 = sadd.s32 %s350, 97
        %s938 = sld [smem:[#allocation5 + %s937]]
        %s939 = scalar_lea.vmem [#allocation6], %s938
        %v940 = vld [vmem:[%s939] sm:$0x1]
        %v941 = vadd.f32 %v936, %v940
        %v942 = vmax.f32 %v935, %v940
        %s943 = sadd.s32 %s350, 98
        %s944 = sld [smem:[#allocation5 + %s943]]
        %s945 = scalar_lea.vmem [#allocation6], %s944
        %v946 = vld [vmem:[%s945] sm:$0x1]
        %v947 = vadd.f32 %v941, %v946
        %v948 = vmax.f32 %v942, %v946
        %s949 = sadd.s32 %s350, 99
        %s950 = sld [smem:[#allocation5 + %s949]]
        %s951 = scalar_lea.vmem [#allocation6], %s950
        %v952 = vld [vmem:[%s951] sm:$0x1]
        %v953 = vadd.f32 %v947, %v952
        %v954 = vmax.f32 %v948, %v952
        %s955 = sadd.s32 %s350, 100
        %s956 = sld [smem:[#allocation5 + %s955]]
        %s957 = scalar_lea.vmem [#allocation6], %s956
        %v958 = vld [vmem:[%s957] sm:$0x1]
        %v959 = vadd.f32 %v953, %v958
        %v960 = vmax.f32 %v954, %v958
        %s961 = sadd.s32 %s350, 101
        %s962 = sld [smem:[#allocation5 + %s961]]
        %s963 = scalar_lea.vmem [#allocation6], %s962
        %v964 = vld [vmem:[%s963] sm:$0x1]
        %v965 = vadd.f32 %v959, %v964
        %v966 = vmax.f32 %v960, %v964
        %s967 = sadd.s32 %s350, 102
        %s968 = sld [smem:[#allocation5 + %s967]]
        %s969 = scalar_lea.vmem [#allocation6], %s968
        %v970 = vld [vmem:[%s969] sm:$0x1]
        %v971 = vadd.f32 %v965, %v970
        %v972 = vmax.f32 %v966, %v970
        %s973 = sadd.s32 %s350, 103
        %s974 = sld [smem:[#allocation5 + %s973]]
        %s975 = scalar_lea.vmem [#allocation6], %s974
        %v976 = vld [vmem:[%s975] sm:$0x1]
        %v977 = vadd.f32 %v971, %v976
        %v978 = vmax.f32 %v972, %v976
        %s979 = sadd.s32 %s350, 104
        %s980 = sld [smem:[#allocation5 + %s979]]
        %s981 = scalar_lea.vmem [#allocation6], %s980
        %v982 = vld [vmem:[%s981] sm:$0x1]
        %v983 = vadd.f32 %v977, %v982
        %v984 = vmax.f32 %v978, %v982
        %s985 = sadd.s32 %s350, 105
        %s986 = sld [smem:[#allocation5 + %s985]]
        %s987 = scalar_lea.vmem [#allocation6], %s986
        %v988 = vld [vmem:[%s987] sm:$0x1]
        %v989 = vadd.f32 %v983, %v988
        %v990 = vmax.f32 %v984, %v988
        %s991 = sadd.s32 %s350, 106
        %s992 = sld [smem:[#allocation5 + %s991]]
        %s993 = scalar_lea.vmem [#allocation6], %s992
        %v994 = vld [vmem:[%s993] sm:$0x1]
        %v995 = vadd.f32 %v989, %v994
        %v996 = vmax.f32 %v990, %v994
        %s997 = sadd.s32 %s350, 107
        %s998 = sld [smem:[#allocation5 + %s997]]
        %s999 = scalar_lea.vmem [#allocation6], %s998
        %v1000 = vld [vmem:[%s999] sm:$0x1]
        %v1001 = vadd.f32 %v995, %v1000
        %v1002 = vmax.f32 %v996, %v1000
        %s1003 = sadd.s32 %s350, 108
        %s1004 = sld [smem:[#allocation5 + %s1003]]
        %s1005 = scalar_lea.vmem [#allocation6], %s1004
        %v1006 = vld [vmem:[%s1005] sm:$0x1]
        %v1007 = vadd.f32 %v1001, %v1006
        %v1008 = vmax.f32 %v1002, %v1006
        %s1009 = sadd.s32 %s350, 109
        %s1010 = sld [smem:[#allocation5 + %s1009]]
        %s1011 = scalar_lea.vmem [#allocation6], %s1010
        %v1012 = vld [vmem:[%s1011] sm:$0x1]
        %v1013 = vadd.f32 %v1007, %v1012
        %v1014 = vmax.f32 %v1008, %v1012
        %s1015 = sadd.s32 %s350, 110
        %s1016 = sld [smem:[#allocation5 + %s1015]]
        %s1017 = scalar_lea.vmem [#allocation6], %s1016
        %v1018 = vld [vmem:[%s1017] sm:$0x1]
        %v1019 = vadd.f32 %v1013, %v1018
        %v1020 = vmax.f32 %v1014, %v1018
        %s1021 = sadd.s32 %s350, 111
        %s1022 = sld [smem:[#allocation5 + %s1021]]
        %s1023 = scalar_lea.vmem [#allocation6], %s1022
        %v1024 = vld [vmem:[%s1023] sm:$0x1]
        %v1025 = vadd.f32 %v1019, %v1024
        %v1026 = vmax.f32 %v1020, %v1024
        %1027 = vst [vmem:[#allocation2 + $0x6] sm:$0x1] %v1025
        %1028 = vst [vmem:[#allocation3 + $0x6] sm:$0x1] %v1026
        %s1029 = sadd.s32 %s350, 112
        %s1030 = sld [smem:[#allocation5 + %s1029]]
        %s1031 = scalar_lea.vmem [#allocation6], %s1030
        %v1032 = vld [vmem:[%s1031] sm:$0x1]
        %v1033 = vadd.f32 %v1032, 0.0
        %s1034 = sadd.s32 %s350, 113
        %s1035 = sld [smem:[#allocation5 + %s1034]]
        %s1036 = scalar_lea.vmem [#allocation6], %s1035
        %v1037 = vld [vmem:[%s1036] sm:$0x1]
        %v1038 = vadd.f32 %v1033, %v1037
        %v1039 = vmax.f32 %v1032, %v1037
        %s1040 = sadd.s32 %s350, 114
        %s1041 = sld [smem:[#allocation5 + %s1040]]
        %s1042 = scalar_lea.vmem [#allocation6], %s1041
        %v1043 = vld [vmem:[%s1042] sm:$0x1]
        %v1044 = vadd.f32 %v1038, %v1043
        %v1045 = vmax.f32 %v1039, %v1043
        %s1046 = sadd.s32 %s350, 115
        %s1047 = sld [smem:[#allocation5 + %s1046]]
        %s1048 = scalar_lea.vmem [#allocation6], %s1047
        %v1049 = vld [vmem:[%s1048] sm:$0x1]
        %v1050 = vadd.f32 %v1044, %v1049
        %v1051 = vmax.f32 %v1045, %v1049
        %s1052 = sadd.s32 %s350, 116
        %s1053 = sld [smem:[#allocation5 + %s1052]]
        %s1054 = scalar_lea.vmem [#allocation6], %s1053
        %v1055 = vld [vmem:[%s1054] sm:$0x1]
        %v1056 = vadd.f32 %v1050, %v1055
        %v1057 = vmax.f32 %v1051, %v1055
        %s1058 = sadd.s32 %s350, 117
        %s1059 = sld [smem:[#allocation5 + %s1058]]
        %s1060 = scalar_lea.vmem [#allocation6], %s1059
        %v1061 = vld [vmem:[%s1060] sm:$0x1]
        %v1062 = vadd.f32 %v1056, %v1061
        %v1063 = vmax.f32 %v1057, %v1061
        %s1064 = sadd.s32 %s350, 118
        %s1065 = sld [smem:[#allocation5 + %s1064]]
        %s1066 = scalar_lea.vmem [#allocation6], %s1065
        %v1067 = vld [vmem:[%s1066] sm:$0x1]
        %v1068 = vadd.f32 %v1062, %v1067
        %v1069 = vmax.f32 %v1063, %v1067
        %s1070 = sadd.s32 %s350, 119
        %s1071 = sld [smem:[#allocation5 + %s1070]]
        %s1072 = scalar_lea.vmem [#allocation6], %s1071
        %v1073 = vld [vmem:[%s1072] sm:$0x1]
        %v1074 = vadd.f32 %v1068, %v1073
        %v1075 = vmax.f32 %v1069, %v1073
        %s1076 = sadd.s32 %s350, 120
        %s1077 = sld [smem:[#allocation5 + %s1076]]
        %s1078 = scalar_lea.vmem [#allocation6], %s1077
        %v1079 = vld [vmem:[%s1078] sm:$0x1]
        %v1080 = vadd.f32 %v1074, %v1079
        %v1081 = vmax.f32 %v1075, %v1079
        %s1082 = sadd.s32 %s350, 121
        %s1083 = sld [smem:[#allocation5 + %s1082]]
        %s1084 = scalar_lea.vmem [#allocation6], %s1083
        %v1085 = vld [vmem:[%s1084] sm:$0x1]
        %v1086 = vadd.f32 %v1080, %v1085
        %v1087 = vmax.f32 %v1081, %v1085
        %s1088 = sadd.s32 %s350, 122
        %s1089 = sld [smem:[#allocation5 + %s1088]]
        %s1090 = scalar_lea.vmem [#allocation6], %s1089
        %v1091 = vld [vmem:[%s1090] sm:$0x1]
        %v1092 = vadd.f32 %v1086, %v1091
        %v1093 = vmax.f32 %v1087, %v1091
        %s1094 = sadd.s32 %s350, 123
        %s1095 = sld [smem:[#allocation5 + %s1094]]
        %s1096 = scalar_lea.vmem [#allocation6], %s1095
        %v1097 = vld [vmem:[%s1096] sm:$0x1]
        %v1098 = vadd.f32 %v1092, %v1097
        %v1099 = vmax.f32 %v1093, %v1097
        %s1100 = sadd.s32 %s350, 124
        %s1101 = sld [smem:[#allocation5 + %s1100]]
        %s1102 = scalar_lea.vmem [#allocation6], %s1101
        %v1103 = vld [vmem:[%s1102] sm:$0x1]
        %v1104 = vadd.f32 %v1098, %v1103
        %v1105 = vmax.f32 %v1099, %v1103
        %s1106 = sadd.s32 %s350, 125
        %s1107 = sld [smem:[#allocation5 + %s1106]]
        %s1108 = scalar_lea.vmem [#allocation6], %s1107
        %v1109 = vld [vmem:[%s1108] sm:$0x1]
        %v1110 = vadd.f32 %v1104, %v1109
        %v1111 = vmax.f32 %v1105, %v1109
        %s1112 = sadd.s32 %s350, 126
        %s1113 = sld [smem:[#allocation5 + %s1112]]
        %s1114 = scalar_lea.vmem [#allocation6], %s1113
        %v1115 = vld [vmem:[%s1114] sm:$0x1]
        %v1116 = vadd.f32 %v1110, %v1115
        %v1117 = vmax.f32 %v1111, %v1115
        %s1118 = sadd.s32 %s350, 127
        %s1119 = sld [smem:[#allocation5 + %s1118]]
        %s1120 = scalar_lea.vmem [#allocation6], %s1119
        %v1121 = vld [vmem:[%s1120] sm:$0x1]
        %v1122 = vadd.f32 %v1116, %v1121
        %v1123 = vmax.f32 %v1117, %v1121
        %1124 = vst [vmem:[#allocation2 + $0x7] sm:$0x1] %v1122
        %1125 = vst [vmem:[#allocation3 + $0x7] sm:$0x1] %v1123
        %v1126 = vld [vmem:[#allocation2] sm:$0xff]
        %v1127 = vld [vmem:[%s349] sm:$0xff]
        %1129 = vset.pattern.permute.xlu0 0
        %1130 = vperm.xlu0 %1129, %v1127
        %v1131 = vpop.permute.xlu0 %1130
        %v1133 = vmul.f32 %v1126, %v1131
        %v1134 = vld [vmem:[#allocation9] sm:$0xff]
        %v1135 = vld [vmem:[#allocation9 + $0x8] sm:$0xff]
        %v1136 = vld [vmem:[#allocation9 + $0x10] sm:$0xff]
        %v1137 = vld [vmem:[#allocation9 + $0x18] sm:$0xff]
        %v1138 = vld [vmem:[#allocation9 + $0x20] sm:$0xff]
        %v1139 = vld [vmem:[#allocation9 + $0x28] sm:$0xff]
        %v1140 = vld [vmem:[#allocation9 + $0x30] sm:$0xff]
        %v1141 = vld [vmem:[#allocation9 + $0x38] sm:$0xff]
        %v1142 = vld [vmem:[#allocation9 + $0x40] sm:$0xff]
        %v1143 = vld [vmem:[#allocation9 + $0x48] sm:$0xff]
        %v1144 = vld [vmem:[#allocation9 + $0x50] sm:$0xff]
        %v1145 = vld [vmem:[#allocation9 + $0x58] sm:$0xff]
        %v1146 = vld [vmem:[#allocation9 + $0x60] sm:$0xff]
        %v1147 = vld [vmem:[#allocation9 + $0x68] sm:$0xff]
        %v1148 = vld [vmem:[#allocation9 + $0x70] sm:$0xff]
        %v1149 = vld [vmem:[#allocation9 + $0x78] sm:$0xff]
        %v1150 = vld [vmem:[#allocation3] sm:$0xff]
        %v1151 = vld [vmem:[#allocation11] sm:$0xff]
        %v1152 = vld [vmem:[#allocation11 + $0x8] sm:$0xff]
        %v1153 = vld [vmem:[#allocation11 + $0x10] sm:$0xff]
        %v1154 = vld [vmem:[#allocation11 + $0x18] sm:$0xff]
        %v1155 = vld [vmem:[#allocation11 + $0x20] sm:$0xff]
        %v1156 = vld [vmem:[#allocation11 + $0x28] sm:$0xff]
        %v1157 = vld [vmem:[#allocation11 + $0x30] sm:$0xff]
        %v1158 = vld [vmem:[#allocation11 + $0x38] sm:$0xff]
        %v1159 = vld [vmem:[#allocation11 + $0x40] sm:$0xff]
        %v1160 = vld [vmem:[#allocation11 + $0x48] sm:$0xff]
        %v1161 = vld [vmem:[#allocation11 + $0x50] sm:$0xff]
        %v1162 = vld [vmem:[#allocation11 + $0x58] sm:$0xff]
        %v1163 = vld [vmem:[#allocation11 + $0x60] sm:$0xff]
        %v1164 = vld [vmem:[#allocation11 + $0x68] sm:$0xff]
        %v1165 = vld [vmem:[#allocation11 + $0x70] sm:$0xff]
        %v1166 = vld [vmem:[#allocation11 + $0x78] sm:$0xff]
        %1167 = vmatpush.msra.mxu0 %v1166
        %1168 = vmatpush.msra.mxu0 %v1165
        %1169 = vmatpush.msra.mxu0 %v1164
        %1170 = vmatpush.msra.mxu0 %v1163
        %1171 = vmatpush.msra.mxu0 %v1162
        %1172 = vmatpush.msra.mxu0 %v1161
        %1173 = vmatpush.msra.mxu0 %v1160
        %1174 = vmatpush.msra.mxu0 %v1159
        %1175 = vmatpush.msra.mxu0 %v1158
        %1176 = vmatpush.msra.mxu0 %v1157
        %1177 = vmatpush.msra.mxu0 %v1156
        %1178 = vmatpush.msra.mxu0 %v1155
        %1179 = vmatpush.msra.mxu0 %v1154
        %1180 = vmatpush.msra.mxu0 %v1153
        %1181 = vmatpush.msra.mxu0 %v1152
        %1182 = vmatpush.msra.mxu0 %v1151
        %1183 = vmatmul.f32.gmra.mxu0 %v1150
        %v1184 = vpop.f32.mrf.mxu0
        %v1185 = vadd.f32 0.0, %v1184
        %1186 = vdwg.mxu0
        %1187 = vmatpush.msra.mxu0 %v1149
        %1188 = vmatpush.msra.mxu0 %v1148
        %1189 = vmatpush.msra.mxu0 %v1147
        %1190 = vmatpush.msra.mxu0 %v1146
        %1191 = vmatpush.msra.mxu0 %v1145
        %1192 = vmatpush.msra.mxu0 %v1144
        %1193 = vmatpush.msra.mxu0 %v1143
        %1194 = vmatpush.msra.mxu0 %v1142
        %1195 = vmatpush.msra.mxu0 %v1141
        %1196 = vmatpush.msra.mxu0 %v1140
        %1197 = vmatpush.msra.mxu0 %v1139
        %1198 = vmatpush.msra.mxu0 %v1138
        %1199 = vmatpush.msra.mxu0 %v1137
        %1200 = vmatpush.msra.mxu0 %v1136
        %1201 = vmatpush.msra.mxu0 %v1135
        %1202 = vmatpush.msra.mxu0 %v1134
        %1203 = vmatmul.f32.gmra.mxu0 %v1133
        %v1204 = vpop.f32.mrf.mxu0
        %v1205 = vadd.f32 %v1185, %v1204
        %1206 = vdwg.mxu0
        %v1207 = vld [vmem:[%s5] sm:$0x1]
        %v1209 = vperm.slane %v1207, 0
        %v1211 = vadd.f32 %v1205, %v1209
        %v1212 = vmax.f32 %v1211, 0.0
        %v1213 = vld [vmem:[#allocation12] sm:$0xff]
        %v1214 = vld [vmem:[#allocation12 + $0x8] sm:$0xff]
        %v1215 = vld [vmem:[#allocation12 + $0x10] sm:$0xff]
        %v1216 = vld [vmem:[#allocation12 + $0x18] sm:$0xff]
        %v1217 = vld [vmem:[#allocation12 + $0x20] sm:$0xff]
        %v1218 = vld [vmem:[#allocation12 + $0x28] sm:$0xff]
        %v1219 = vld [vmem:[#allocation12 + $0x30] sm:$0xff]
        %v1220 = vld [vmem:[#allocation12 + $0x38] sm:$0xff]
        %v1221 = vld [vmem:[#allocation12 + $0x40] sm:$0xff]
        %v1222 = vld [vmem:[#allocation12 + $0x48] sm:$0xff]
        %v1223 = vld [vmem:[#allocation12 + $0x50] sm:$0xff]
        %v1224 = vld [vmem:[#allocation12 + $0x58] sm:$0xff]
        %v1225 = vld [vmem:[#allocation12 + $0x60] sm:$0xff]
        %v1226 = vld [vmem:[#allocation12 + $0x68] sm:$0xff]
        %v1227 = vld [vmem:[#allocation12 + $0x70] sm:$0xff]
        %v1228 = vld [vmem:[#allocation12 + $0x78] sm:$0xff]
        %v1229 = vld [vmem:[%s7] sm:$0x1]
        %v1231 = vperm.slane %v1229, 0
        %1233 = vmatpush.msra.mxu0 %v1228
        %1234 = vmatpush.msra.mxu0 %v1227
        %1235 = vmatpush.msra.mxu0 %v1226
        %1236 = vmatpush.msra.mxu0 %v1225
        %1237 = vmatpush.msra.mxu0 %v1224
        %1238 = vmatpush.msra.mxu0 %v1223
        %1239 = vmatpush.msra.mxu0 %v1222
        %1240 = vmatpush.msra.mxu0 %v1221
        %1241 = vmatpush.msra.mxu0 %v1220
        %1242 = vmatpush.msra.mxu0 %v1219
        %1243 = vmatpush.msra.mxu0 %v1218
        %1244 = vmatpush.msra.mxu0 %v1217
        %1245 = vmatpush.msra.mxu0 %v1216
        %1246 = vmatpush.msra.mxu0 %v1215
        %1247 = vmatpush.msra.mxu0 %v1214
        %1248 = vmatpush.msra.mxu0 %v1213
        %1249 = vmatmul.f32.gmra.mxu0 %v1212
        %v1250 = vpop.f32.mrf.mxu0
        %v1251 = vadd.f32 %v1231, %v1250
        %1252 = vdwg.mxu0
        %1253 = vst [vmem:[%s345] sm:$0xff] %v1251
        %s1254 = sand.u32 %s193, 1
        %s1255 = scalar_lea.sflag [#allocation8], %s1254
        %s1256 = sand.u32 %s193, 1
        %s1257 = smul.addr %s1256, 8
        %s1258 = scalar_lea.vmem [#allocation14], %s1257
        // Predicated region
        $region65: #{tpu_custom_call.1} parent=47 // pred_check
          %p1259 = pneg %p203
        $region66: #{tpu_custom_call.1} parent=47 // pred_check_branch
          %1261 = sbr.rel (%p1259) target = $region68
        $region67: #{tpu_custom_call.1} parent=47 // pred_region
          %1263 = vsyncadd %s1255, 0
          %s1264 = smul.addr %s33, 8
          %s1265 = scalar_lea.hbm %s8, %s1264
          %s1267 = sshll.u32 %s1258, 4
          %s1268 = int_to_ptr.vmem [resolvable:$true] %s1267
          %s1269 = sshll.u32 %s1265, 4
          %s1270 = int_to_ptr.hbm [resolvable:$true] %s1269
          %1272 = dma.vmem_to_hbm [thread:$0]  %s1268, 128, %s1270, %s1255
        $region68: #{tpu_custom_call.1} parent=47 // pred_fallthru
          _
      $region48: #{tpu_custom_call.1} parent=5 // pred_fallthru
        _
      %p1273 = scmp.le.s32.totalorder 2, %s28
      // Predicated region
      $region69: #{tpu_custom_call.1} parent=5 // pred_check
        %p1274 = pneg %p1273
      $region70: #{tpu_custom_call.1} parent=5 // pred_check_branch
        %1276 = sbr.rel (%p1274) target = $region72
      $region71: #{tpu_custom_call.1} parent=5 // pred_region
        %s1277 = ssub.s32 %s28, 2
        // Predicated region
        $region73: #{tpu_custom_call.1} parent=71 // pred_check
          %p1278 = pneg %p209
        $region74: #{tpu_custom_call.1} parent=71 // pred_check_branch
          %1280 = sbr.rel (%p1278) target = $region76
        $region75: #{tpu_custom_call.1} parent=71 // pred_region
          %s1281 = sand.u32 %s194, 1
          %s1282 = scalar_lea.sflag [#allocation8], %s1281
          %s1283 = sand.u32 %s194, 1
          %s1284 = smul.addr %s1283, 8
          %s1285 = scalar_lea.vmem [#allocation14], %s1284
          %1287 = dma.done %s1282, 128
        $region76: #{tpu_custom_call.1} parent=71 // pred_fallthru
          _
      $region72: #{tpu_custom_call.1} parent=5 // pred_fallthru
        _
    $region6: #{tpu_custom_call.1} parent=1 // loop_footer
      %s32 = sadd.s32 1, %s28
    $region7: #{tpu_custom_call.1} parent=1 // loop_footer_branch
      %27 = sbr.rel target = $region3
    $region8: #{tpu_custom_call.1} parent=1 // loop_exit
      _
    %1288 = vsyncpa [#allocation7], 1
    %s1289 = scalar_lea.sflag [#allocation7], 1
    %1290 = vsyncpa %s1289, 1
    %1291 = vsyncpa [#allocation10], 1
    %1292 = vsyncpa [#allocation13], 1
    %1293 = vsyncpa [#allocation8], 1
    %s1294 = scalar_lea.sflag [#allocation8], 1
    %1295 = vsyncpa %s1294, 1

</llo_original>
